<compile_context>
chip_gen: v5e
topology: v5e:2x2
jax: 0.10.0
libtpu: 0.0.40
codegen_flags: <defaults>
</compile_context>

<pallas_src>
import jax
import jax.numpy as jnp
from jax import lax
from jax.experimental import pallas as pl
from jax.experimental.pallas import tpu as pltpu


# ------------------------------ fused kernel -------------------------------

def _cnn_fused_kernel(x_ref, w1_ref, b1_ref, sel1_ref, w2_ref, b2_ref,
                      s_ref, m_ref, f_ref, fb_ref, o_ref,
                      im1_ref, im2_ref):
    """Whole CNN forward for one image.

    x_ref   : (1, 1, 1024) f32  zero-padded 32x32 canvas, flattened row-major
    w1_ref  : (32, 16)     f32  conv1 taps (cols 9..15 are zero padding)
    b1_ref  : (32, 1)      f32
    sel1_ref: (863, 272)   bf16 pool1 top-left -> padded 16-wide conv2 canvas
    w2_ref  : (64, 288)    bf16 conv2 weights, K = 9 taps x 32 cin
    b2_ref  : (64, 1)      f32
    s_ref   : (207, 640)   bf16 pool2 selection fused with FC weight, col=10c+j
    m_ref   : (64, 640)    f32  own-channel block mask
    f_ref   : (640, 10)    f32  class fold matrix (k % 10 == j)
    fb_ref  : (1, 10)      f32  FC bias
    o_ref   : (1, 1, 10)   f32  logits
    im1_ref : (16, 896)    f32  conv1 im2col scratch
    im2_ref : (288, 224)   bf16 conv2 im2col scratch
    """
    # ---- layer 1: conv(1->32, 3x3, p=1) + bias + ReLU (f32 MXU matmul) -----
    xr = x_ref[0]                                      # (1, 1024)
    im1_ref[...] = jnp.zeros_like(im1_ref)             # rows 9..15 must stay 0
    for t in range(9):
        shift = (t // 3) * 32 + (t % 3)                # dy*32 + dx
        im1_ref[t:t + 1, :] = xr[:, shift:shift + 896]
    h1 = jnp.dot(w1_ref[...], im1_ref[...],
                 preferred_element_type=jnp.float32)   # (32, 896)
    h1 = jnp.maximum(h1 + b1_ref[...], 0.0)

    # ---- 2x2/2 maxpool: elementwise max of 4 lane-shifted views, then one
    #      0/1 selection matmul that scatters into the zero-padded conv2 canvas
    m1 = jnp.maximum(jnp.maximum(h1[:, 0:863], h1[:, 1:864]),
                     jnp.maximum(h1[:, 32:895], h1[:, 33:896]))      # (32, 863)
    a1 = jnp.dot(m1.astype(jnp.bfloat16), sel1_ref[...],
                 preferred_element_type=jnp.float32).astype(jnp.bfloat16)  # (32, 272)

    # ---- layer 2: conv(32->64, 3x3, p=1): in-VMEM im2col, single K=288 matmul
    for t in range(9):
        shift = (t // 3) * 16 + (t % 3)                # dy*16 + dx
        im2_ref[32 * t:32 * (t + 1), :] = a1[:, shift:shift + 224]
    h2 = jnp.dot(w2_ref[...], im2_ref[...],
                 preferred_element_type=jnp.float32)   # (64, 224)
    h2 = jnp.maximum(h2 + b2_ref[...], 0.0)

    # ---- 2x2/2 maxpool via lane shifts ----
    m2 = jnp.maximum(jnp.maximum(h2[:, 0:207], h2[:, 1:208]),
                     jnp.maximum(h2[:, 16:223], h2[:, 17:224]))      # (64, 207)

    # ---- FC fused: pool2-selection + FC weight in one matmul (cols = 10c+j),
    #      own-channel diagonal blocks kept by the mask, folded over classes.
    g = jnp.dot(m2.astype(jnp.bfloat16), s_ref[...],
                preferred_element_type=jnp.float32)    # (64, 640)
    g = g * m_ref[...]                                 # keep block c of row c
    p = jnp.dot(g, f_ref[...],
                preferred_element_type=jnp.float32)    # (64, 10): p[c,j]=G[c,10c+j]
    logits = jnp.sum(p, axis=0, keepdims=True) + fb_ref[...]         # (1, 10)
    o_ref[0] = logits


# ---------------------------- one-time weight prep ---------------------------

def prepare_params(params):
    """Hoisted out of the jitted forward: reshapes, bf16 casts, selection mats."""
    w1, b1, w2, b2, fw, fb = params

    w1k = jnp.pad(w1.reshape(32, 9).astype(jnp.float32), ((0, 0), (0, 7)))  # (32,16)
    b1k = b1.reshape(32, 1).astype(jnp.float32)

    # pool1 top-left flat index (64*(hh-1) + 2*(ww-1)) -> conv2 canvas (16*hh+ww)
    hh = jnp.arange(1, 15)
    ww = jnp.arange(1, 15)
    src1 = (64 * (hh - 1)[:, None] + 2 * (ww - 1)[None, :]).reshape(-1)
    dst1 = (16 * hh[:, None] + ww[None, :]).reshape(-1)
    sel1 = (jnp.zeros((863, 272), jnp.float32)
            .at[src1, dst1].set(1.0).astype(jnp.bfloat16))

    # conv2 weights: (cout, cin, dy, dx) -> (cout, (3*dy+dx)*32 + cin)
    w2r = jnp.transpose(w2, (0, 2, 3, 1)).reshape(64, 288).astype(jnp.bfloat16)
    b2k = b2.reshape(64, 1).astype(jnp.float32)

    # pool2 selection fused with FC weight:
    #   S[32*py + 2*px, 10*c + j] = fw[j, c*49 + 7*py + px]
    wr = jnp.transpose(fw.reshape(10, 64, 7, 7), (2, 3, 1, 0)).reshape(49, 640)
    rows2 = (32 * jnp.arange(7)[:, None] + 2 * jnp.arange(7)[None, :]).reshape(-1)
    S = (jnp.zeros((207, 640), jnp.float32)
         .at[rows2].set(wr).astype(jnp.bfloat16))

    M = (jnp.arange(640)[None, :] // 10 == jnp.arange(64)[:, None]).astype(jnp.float32)
    F = (jnp.arange(640)[:, None] % 10 == jnp.arange(10)[None, :]).astype(jnp.float32)
    fbk = fb.reshape(1, 10).astype(jnp.float32)
    return (w1k, b1k, sel1, w2r, b2k, S, M, F, fbk)


# ------------------------------ forward pass -------------------------------

def cnn_forward(x_nchw, prep):
    w1k, b1k, sel1, w2r, b2k, S, M, F, fbk = prep
    N = x_nchw.shape[0]

    # The only XLA glue: zero-pad to the 32x32 canvas and flatten row-major.
    # TODO(synk): the pad could be folded into the kernel with a zeroed VMEM
    # canvas + 28 row copies; kept in XLA since it is one tiny op per call.
    xpad = jnp.pad(x_nchw[:, 0], ((0, 0), (1, 3), (1, 3)))     # (N, 32, 32)
    xflat = xpad.reshape(N, 1, 1024)

    out = pl.pallas_call(
        _cnn_fused_kernel,
        out_shape=jax.ShapeDtypeStruct((N, 1, 10), jnp.float32),
        grid=(N,),
        in_specs=[
            pl.BlockSpec((1, 1, 1024), lambda n: (n, 0, 0)),   # image
            pl.BlockSpec((32, 16), lambda n: (0, 0)),          # w1
            pl.BlockSpec((32, 1), lambda n: (0, 0)),           # b1
            pl.BlockSpec((863, 272), lambda n: (0, 0)),        # sel1
            pl.BlockSpec((64, 288), lambda n: (0, 0)),         # w2
            pl.BlockSpec((64, 1), lambda n: (0, 0)),           # b2
            pl.BlockSpec((207, 640), lambda n: (0, 0)),        # S (pool2+FC)
            pl.BlockSpec((64, 640), lambda n: (0, 0)),         # mask
            pl.BlockSpec((640, 10), lambda n: (0, 0)),         # fold
            pl.BlockSpec((1, 10), lambda n: (0, 0)),           # fc bias
        ],
        out_specs=pl.BlockSpec((1, 1, 10), lambda n: (n, 0, 0)),
        scratch_shapes=[
            pltpu.VMEM((16, 896), jnp.float32),                # conv1 im2col
            pltpu.VMEM((288, 224), jnp.bfloat16),              # conv2 im2col
        ],
        compiler_params=pltpu.CompilerParams(dimension_semantics=("parallel",)),
    )(xflat, w1k, b1k, sel1, w2r, b2k, S, M, F, fbk)
    return out.reshape(N, 10)


# ------------------------------ params & ref -------------------------------

def init_params(key):
    k1, k2, k3, k4, k5, k6 = jax.random.split(key, 6)
    w1 = 0.10 * jax.random.normal(k1, (32, 1, 3, 3), jnp.float32)   # OIHW
    b1 = 0.01 * jax.random.normal(k2, (32,), jnp.float32)
    w2 = 0.05 * jax.random.normal(k3, (64, 32, 3, 3), jnp.float32)  # OIHW
    b2 = 0.01 * jax.random.normal(k4, (64,), jnp.float32)
    limit = (6.0 / (3136 + 10)) ** 0.5                               # xavier_uniform_
    fw = jax.random.uniform(k5, (10, 3136), jnp.float32, -limit, limit)
    fb = 0.01 * jax.random.normal(k6, (10,), jnp.float32)
    return (w1, b1, w2, b2, fw, fb)


def ref_forward(x_nchw, params):
    """Pure-JAX/XLA f32 reference matching the PyTorch forward exactly."""
    w1, b1, w2, b2, fw, fb = params

    def conv(x, w, b):
        y = lax.conv_general_dilated(x, w, (1, 1), "SAME",
                                     dimension_numbers=("NCHW", "OIHW", "NCHW"))
        return jax.nn.relu(y + b[None, :, None, None])

    def pool(x):
        return lax.reduce_window(x, -jnp.inf, lax.max,
                                 (1, 1, 2, 2), (1, 1, 2, 2), "VALID")

    y = pool(conv(x_nchw, w1, b1))
    y = pool(conv(y, w2, b2))
    flat = y.reshape(x_nchw.shape[0], -1)
    return flat @ fw.T + fb


# ----------------------------------- main -----------------------------------

if __name__ == "__main__":
    key = jax.random.PRNGKey(0)
    kx, kp = jax.random.split(key)
    params = init_params(kp)
    # Module hard-codes fc = 7*7*64, which implies 28x28 single-channel inputs.
    x = jax.random.normal(kx, (2, 1, 28, 28), jnp.float32)

    prep = prepare_params(params)                 # one-time, outside jit
    out = jax.jit(cnn_forward)(x, prep)
    out = jax.block_until_ready(out)

    ref = ref_forward(x, params)
    assert out.shape == (2, 10)
    err = float(jnp.max(jnp.abs(out - ref)))
    # bf16 MXU operands (pool1/pool2 activations, conv2/FC weights) with f32
    # accumulation: expected |err| ~ 1e-3 on O(1) outputs, well inside 2e-2.
    assert jnp.allclose(out, ref, atol=2e-2, rtol=2e-2), err
    print("KERNEL_OK")
</pallas_src>

<mosaic_0001>
module attributes {stable_mosaic.version = 11 : i64} {
  func.func @_cnn_fused_kernel(%arg0: i32, %arg1: memref<1x1x1024xf32, #tpu.memory_space<vmem>>, %arg2: memref<32x16xf32, #tpu.memory_space<vmem>>, %arg3: memref<32x1xf32, #tpu.memory_space<vmem>>, %arg4: memref<863x272xbf16, #tpu.memory_space<vmem>>, %arg5: memref<64x288xbf16, #tpu.memory_space<vmem>>, %arg6: memref<64x1xf32, #tpu.memory_space<vmem>>, %arg7: memref<207x640xbf16, #tpu.memory_space<vmem>>, %arg8: memref<64x640xf32, #tpu.memory_space<vmem>>, %arg9: memref<640x10xf32, #tpu.memory_space<vmem>>, %arg10: memref<1x10xf32, #tpu.memory_space<vmem>>, %arg11: memref<1x1x10xf32, #tpu.memory_space<vmem>>, %arg12: memref<16x896xf32, #tpu.memory_space<vmem>>, %arg13: memref<288x224xbf16, #tpu.memory_space<vmem>>) attributes {dimension_semantics = [#tpu.dimension_semantics<parallel>], iteration_bounds = array<i64: 2>, scalar_prefetch = 0 : i64, scratch_operands = 2 : i64, tpu.core_type = #tpu.core_type<tc>, window_params = [{transform_indices = @transform_0, window_bounds = array<i64: 1, 1, 1024>}, {pipeline_mode = #tpu.pipeline_mode<synchronous>, transform_indices = @transform_1, window_bounds = array<i64: 32, 16>}, {pipeline_mode = #tpu.pipeline_mode<synchronous>, transform_indices = @transform_2, window_bounds = array<i64: 32, 1>}, {pipeline_mode = #tpu.pipeline_mode<synchronous>, transform_indices = @transform_3, window_bounds = array<i64: 863, 272>}, {pipeline_mode = #tpu.pipeline_mode<synchronous>, transform_indices = @transform_4, window_bounds = array<i64: 64, 288>}, {pipeline_mode = #tpu.pipeline_mode<synchronous>, transform_indices = @transform_5, window_bounds = array<i64: 64, 1>}, {pipeline_mode = #tpu.pipeline_mode<synchronous>, transform_indices = @transform_6, window_bounds = array<i64: 207, 640>}, {pipeline_mode = #tpu.pipeline_mode<synchronous>, transform_indices = @transform_7, window_bounds = array<i64: 64, 640>}, {pipeline_mode = #tpu.pipeline_mode<synchronous>, transform_indices = @transform_8, window_bounds = array<i64: 640, 10>}, {pipeline_mode = #tpu.pipeline_mode<synchronous>, transform_indices = @transform_9, window_bounds = array<i64: 1, 10>}, {transform_indices = @transform_10, window_bounds = array<i64: 1, 1, 10>}]} {
    %c0 = arith.constant 0 : index
    %c0_0 = arith.constant 0 : index
    %c0_1 = arith.constant 0 : index
    %0 = vector.load %arg1[%c0, %c0_0, %c0_1] : memref<1x1x1024xf32, #tpu.memory_space<vmem>>, vector<1x1x1024xf32>
    %1 = vector.shape_cast %0 : vector<1x1x1024xf32> to vector<1x1024xf32>
    %cst = arith.constant 0.000000e+00 : f32
    %2 = vector.broadcast %cst : f32 to vector<16x896xf32>
    %c0_2 = arith.constant 0 : index
    %c0_3 = arith.constant 0 : index
    %3 = vector.load %arg12[%c0_2, %c0_3] : memref<16x896xf32, #tpu.memory_space<vmem>>, vector<16x896xf32>
    tpu.vector_store %arg12[%c0_2, %c0_3], %2 {strides = array<i32>} : memref<16x896xf32, #tpu.memory_space<vmem>>, vector<16x896xf32>,
    %4 = vector.extract_strided_slice %1 {offsets = [0, 0], sizes = [1, 896], strides = [1, 1]} : vector<1x1024xf32> to vector<1x896xf32>
    %c0_4 = arith.constant 0 : index
    %c0_5 = arith.constant 0 : index
    %5 = vector.load %arg12[%c0_4, %c0_5] : memref<16x896xf32, #tpu.memory_space<vmem>>, vector<1x896xf32>
    tpu.vector_store %arg12[%c0_4, %c0_5], %4 {strides = array<i32>} : memref<16x896xf32, #tpu.memory_space<vmem>>, vector<1x896xf32>,
    %6 = vector.extract_strided_slice %1 {offsets = [0, 1], sizes = [1, 896], strides = [1, 1]} : vector<1x1024xf32> to vector<1x896xf32>
    %c1 = arith.constant 1 : index
    %c0_6 = arith.constant 0 : index
    %7 = vector.load %arg12[%c1, %c0_6] : memref<16x896xf32, #tpu.memory_space<vmem>>, vector<1x896xf32>
    tpu.vector_store %arg12[%c1, %c0_6], %6 {strides = array<i32>} : memref<16x896xf32, #tpu.memory_space<vmem>>, vector<1x896xf32>,
    %8 = vector.extract_strided_slice %1 {offsets = [0, 2], sizes = [1, 896], strides = [1, 1]} : vector<1x1024xf32> to vector<1x896xf32>
    %c2 = arith.constant 2 : index
    %c0_7 = arith.constant 0 : index
    %9 = vector.load %arg12[%c2, %c0_7] : memref<16x896xf32, #tpu.memory_space<vmem>>, vector<1x896xf32>
    tpu.vector_store %arg12[%c2, %c0_7], %8 {strides = array<i32>} : memref<16x896xf32, #tpu.memory_space<vmem>>, vector<1x896xf32>,
    %10 = vector.extract_strided_slice %1 {offsets = [0, 32], sizes = [1, 896], strides = [1, 1]} : vector<1x1024xf32> to vector<1x896xf32>
    %c3 = arith.constant 3 : index
    %c0_8 = arith.constant 0 : index
    %11 = vector.load %arg12[%c3, %c0_8] : memref<16x896xf32, #tpu.memory_space<vmem>>, vector<1x896xf32>
    tpu.vector_store %arg12[%c3, %c0_8], %10 {strides = array<i32>} : memref<16x896xf32, #tpu.memory_space<vmem>>, vector<1x896xf32>,
    %12 = vector.extract_strided_slice %1 {offsets = [0, 33], sizes = [1, 896], strides = [1, 1]} : vector<1x1024xf32> to vector<1x896xf32>
    %c4 = arith.constant 4 : index
    %c0_9 = arith.constant 0 : index
    %13 = vector.load %arg12[%c4, %c0_9] : memref<16x896xf32, #tpu.memory_space<vmem>>, vector<1x896xf32>
    tpu.vector_store %arg12[%c4, %c0_9], %12 {strides = array<i32>} : memref<16x896xf32, #tpu.memory_space<vmem>>, vector<1x896xf32>,
    %14 = vector.extract_strided_slice %1 {offsets = [0, 34], sizes = [1, 896], strides = [1, 1]} : vector<1x1024xf32> to vector<1x896xf32>
    %c5 = arith.constant 5 : index
    %c0_10 = arith.constant 0 : index
    %15 = vector.load %arg12[%c5, %c0_10] : memref<16x896xf32, #tpu.memory_space<vmem>>, vector<1x896xf32>
    tpu.vector_store %arg12[%c5, %c0_10], %14 {strides = array<i32>} : memref<16x896xf32, #tpu.memory_space<vmem>>, vector<1x896xf32>,
    %16 = vector.extract_strided_slice %1 {offsets = [0, 64], sizes = [1, 896], strides = [1, 1]} : vector<1x1024xf32> to vector<1x896xf32>
    %c6 = arith.constant 6 : index
    %c0_11 = arith.constant 0 : index
    %17 = vector.load %arg12[%c6, %c0_11] : memref<16x896xf32, #tpu.memory_space<vmem>>, vector<1x896xf32>
    tpu.vector_store %arg12[%c6, %c0_11], %16 {strides = array<i32>} : memref<16x896xf32, #tpu.memory_space<vmem>>, vector<1x896xf32>,
    %18 = vector.extract_strided_slice %1 {offsets = [0, 65], sizes = [1, 896], strides = [1, 1]} : vector<1x1024xf32> to vector<1x896xf32>
    %c7 = arith.constant 7 : index
    %c0_12 = arith.constant 0 : index
    %19 = vector.load %arg12[%c7, %c0_12] : memref<16x896xf32, #tpu.memory_space<vmem>>, vector<1x896xf32>
    tpu.vector_store %arg12[%c7, %c0_12], %18 {strides = array<i32>} : memref<16x896xf32, #tpu.memory_space<vmem>>, vector<1x896xf32>,
    %20 = vector.extract_strided_slice %1 {offsets = [0, 66], sizes = [1, 896], strides = [1, 1]} : vector<1x1024xf32> to vector<1x896xf32>
    %c8 = arith.constant 8 : index
    %c0_13 = arith.constant 0 : index
    %21 = vector.load %arg12[%c8, %c0_13] : memref<16x896xf32, #tpu.memory_space<vmem>>, vector<1x896xf32>
    tpu.vector_store %arg12[%c8, %c0_13], %20 {strides = array<i32>} : memref<16x896xf32, #tpu.memory_space<vmem>>, vector<1x896xf32>,
    %c0_14 = arith.constant 0 : index
    %c0_15 = arith.constant 0 : index
    %22 = vector.load %arg2[%c0_14, %c0_15] : memref<32x16xf32, #tpu.memory_space<vmem>>, vector<32x16xf32>
    %c0_16 = arith.constant 0 : index
    %c0_17 = arith.constant 0 : index
    %23 = vector.load %arg12[%c0_16, %c0_17] : memref<16x896xf32, #tpu.memory_space<vmem>>, vector<16x896xf32>
    %cst_18 = arith.constant dense<0.000000e+00> : vector<32x896xf32>
    %24 = tpu.matmul %22, %23, %cst_18 {dimension_numbers = #tpu.dot_dimension_numbers<[1], [0], [0], [1], [0, 0, 1, 1], [], []>} : vector<32x16xf32>, vector<16x896xf32>, vector<32x896xf32> -> vector<32x896xf32>
    %c0_19 = arith.constant 0 : index
    %c0_20 = arith.constant 0 : index
    %25 = vector.load %arg3[%c0_19, %c0_20] : memref<32x1xf32, #tpu.memory_space<vmem>>, vector<32x1xf32>
    %26 = vector.broadcast %25 : vector<32x1xf32> to vector<32x896xf32>
    %27 = arith.addf %24, %26 : vector<32x896xf32>
    %cst_21 = arith.constant 0.000000e+00 : f32
    %28 = vector.broadcast %cst_21 : f32 to vector<32x896xf32>
    %29 = arith.maximumf %27, %28 : vector<32x896xf32>
    %30 = vector.extract_strided_slice %29 {offsets = [0, 0], sizes = [32, 863], strides = [1, 1]} : vector<32x896xf32> to vector<32x863xf32>
    %31 = vector.extract_strided_slice %29 {offsets = [0, 1], sizes = [32, 863], strides = [1, 1]} : vector<32x896xf32> to vector<32x863xf32>
    %32 = arith.maximumf %30, %31 : vector<32x863xf32>
    %33 = vector.extract_strided_slice %29 {offsets = [0, 32], sizes = [32, 863], strides = [1, 1]} : vector<32x896xf32> to vector<32x863xf32>
    %34 = vector.extract_strided_slice %29 {offsets = [0, 33], sizes = [32, 863], strides = [1, 1]} : vector<32x896xf32> to vector<32x863xf32>
    %35 = arith.maximumf %33, %34 : vector<32x863xf32>
    %36 = arith.maximumf %32, %35 : vector<32x863xf32>
    %37 = arith.truncf %36 : vector<32x863xf32> to vector<32x863xbf16>
    %c0_22 = arith.constant 0 : index
    %c0_23 = arith.constant 0 : index
    %38 = vector.load %arg4[%c0_22, %c0_23] : memref<863x272xbf16, #tpu.memory_space<vmem>>, vector<863x272xbf16>
    %cst_24 = arith.constant dense<0.000000e+00> : vector<32x272xf32>
    %39 = tpu.matmul %37, %38, %cst_24 {dimension_numbers = #tpu.dot_dimension_numbers<[1], [0], [0], [1], [0, 0, 1, 1], [], []>} : vector<32x863xbf16>, vector<863x272xbf16>, vector<32x272xf32> -> vector<32x272xf32>
    %40 = arith.truncf %39 : vector<32x272xf32> to vector<32x272xbf16>
    %41 = vector.extract_strided_slice %40 {offsets = [0, 0], sizes = [32, 224], strides = [1, 1]} : vector<32x272xbf16> to vector<32x224xbf16>
    %c0_25 = arith.constant 0 : index
    %c0_26 = arith.constant 0 : index
    %42 = vector.load %arg13[%c0_25, %c0_26] : memref<288x224xbf16, #tpu.memory_space<vmem>>, vector<32x224xbf16>
    tpu.vector_store %arg13[%c0_25, %c0_26], %41 {strides = array<i32>} : memref<288x224xbf16, #tpu.memory_space<vmem>>, vector<32x224xbf16>,
    %43 = vector.extract_strided_slice %40 {offsets = [0, 1], sizes = [32, 224], strides = [1, 1]} : vector<32x272xbf16> to vector<32x224xbf16>
    %c32 = arith.constant 32 : index
    %c0_27 = arith.constant 0 : index
    %44 = vector.load %arg13[%c32, %c0_27] : memref<288x224xbf16, #tpu.memory_space<vmem>>, vector<32x224xbf16>
    tpu.vector_store %arg13[%c32, %c0_27], %43 {strides = array<i32>} : memref<288x224xbf16, #tpu.memory_space<vmem>>, vector<32x224xbf16>,
    %45 = vector.extract_strided_slice %40 {offsets = [0, 2], sizes = [32, 224], strides = [1, 1]} : vector<32x272xbf16> to vector<32x224xbf16>
    %c64 = arith.constant 64 : index
    %c0_28 = arith.constant 0 : index
    %46 = vector.load %arg13[%c64, %c0_28] : memref<288x224xbf16, #tpu.memory_space<vmem>>, vector<32x224xbf16>
    tpu.vector_store %arg13[%c64, %c0_28], %45 {strides = array<i32>} : memref<288x224xbf16, #tpu.memory_space<vmem>>, vector<32x224xbf16>,
    %47 = vector.extract_strided_slice %40 {offsets = [0, 16], sizes = [32, 224], strides = [1, 1]} : vector<32x272xbf16> to vector<32x224xbf16>
    %c96 = arith.constant 96 : index
    %c0_29 = arith.constant 0 : index
    %48 = vector.load %arg13[%c96, %c0_29] : memref<288x224xbf16, #tpu.memory_space<vmem>>, vector<32x224xbf16>
    tpu.vector_store %arg13[%c96, %c0_29], %47 {strides = array<i32>} : memref<288x224xbf16, #tpu.memory_space<vmem>>, vector<32x224xbf16>,
    %49 = vector.extract_strided_slice %40 {offsets = [0, 17], sizes = [32, 224], strides = [1, 1]} : vector<32x272xbf16> to vector<32x224xbf16>
    %c128 = arith.constant 128 : index
    %c0_30 = arith.constant 0 : index
    %50 = vector.load %arg13[%c128, %c0_30] : memref<288x224xbf16, #tpu.memory_space<vmem>>, vector<32x224xbf16>
    tpu.vector_store %arg13[%c128, %c0_30], %49 {strides = array<i32>} : memref<288x224xbf16, #tpu.memory_space<vmem>>, vector<32x224xbf16>,
    %51 = vector.extract_strided_slice %40 {offsets = [0, 18], sizes = [32, 224], strides = [1, 1]} : vector<32x272xbf16> to vector<32x224xbf16>
    %c160 = arith.constant 160 : index
    %c0_31 = arith.constant 0 : index
    %52 = vector.load %arg13[%c160, %c0_31] : memref<288x224xbf16, #tpu.memory_space<vmem>>, vector<32x224xbf16>
    tpu.vector_store %arg13[%c160, %c0_31], %51 {strides = array<i32>} : memref<288x224xbf16, #tpu.memory_space<vmem>>, vector<32x224xbf16>,
    %53 = vector.extract_strided_slice %40 {offsets = [0, 32], sizes = [32, 224], strides = [1, 1]} : vector<32x272xbf16> to vector<32x224xbf16>
    %c192 = arith.constant 192 : index
    %c0_32 = arith.constant 0 : index
    %54 = vector.load %arg13[%c192, %c0_32] : memref<288x224xbf16, #tpu.memory_space<vmem>>, vector<32x224xbf16>
    tpu.vector_store %arg13[%c192, %c0_32], %53 {strides = array<i32>} : memref<288x224xbf16, #tpu.memory_space<vmem>>, vector<32x224xbf16>,
    %55 = vector.extract_strided_slice %40 {offsets = [0, 33], sizes = [32, 224], strides = [1, 1]} : vector<32x272xbf16> to vector<32x224xbf16>
    %c224 = arith.constant 224 : index
    %c0_33 = arith.constant 0 : index
    %56 = vector.load %arg13[%c224, %c0_33] : memref<288x224xbf16, #tpu.memory_space<vmem>>, vector<32x224xbf16>
    tpu.vector_store %arg13[%c224, %c0_33], %55 {strides = array<i32>} : memref<288x224xbf16, #tpu.memory_space<vmem>>, vector<32x224xbf16>,
    %57 = vector.extract_strided_slice %40 {offsets = [0, 34], sizes = [32, 224], strides = [1, 1]} : vector<32x272xbf16> to vector<32x224xbf16>
    %c256 = arith.constant 256 : index
    %c0_34 = arith.constant 0 : index
    %58 = vector.load %arg13[%c256, %c0_34] : memref<288x224xbf16, #tpu.memory_space<vmem>>, vector<32x224xbf16>
    tpu.vector_store %arg13[%c256, %c0_34], %57 {strides = array<i32>} : memref<288x224xbf16, #tpu.memory_space<vmem>>, vector<32x224xbf16>,
    %c0_35 = arith.constant 0 : index
    %c0_36 = arith.constant 0 : index
    %59 = vector.load %arg5[%c0_35, %c0_36] : memref<64x288xbf16, #tpu.memory_space<vmem>>, vector<64x288xbf16>
    %c0_37 = arith.constant 0 : index
    %c0_38 = arith.constant 0 : index
    %60 = vector.load %arg13[%c0_37, %c0_38] : memref<288x224xbf16, #tpu.memory_space<vmem>>, vector<288x224xbf16>
    %cst_39 = arith.constant dense<0.000000e+00> : vector<64x224xf32>
    %61 = tpu.matmul %59, %60, %cst_39 {dimension_numbers = #tpu.dot_dimension_numbers<[1], [0], [0], [1], [0, 0, 1, 1], [], []>} : vector<64x288xbf16>, vector<288x224xbf16>, vector<64x224xf32> -> vector<64x224xf32>
    %c0_40 = arith.constant 0 : index
    %c0_41 = arith.constant 0 : index
    %62 = vector.load %arg6[%c0_40, %c0_41] : memref<64x1xf32, #tpu.memory_space<vmem>>, vector<64x1xf32>
    %63 = vector.broadcast %62 : vector<64x1xf32> to vector<64x224xf32>
    %64 = arith.addf %61, %63 : vector<64x224xf32>
    %cst_42 = arith.constant 0.000000e+00 : f32
    %65 = vector.broadcast %cst_42 : f32 to vector<64x224xf32>
    %66 = arith.maximumf %64, %65 : vector<64x224xf32>
    %67 = vector.extract_strided_slice %66 {offsets = [0, 0], sizes = [64, 207], strides = [1, 1]} : vector<64x224xf32> to vector<64x207xf32>
    %68 = vector.extract_strided_slice %66 {offsets = [0, 1], sizes = [64, 207], strides = [1, 1]} : vector<64x224xf32> to vector<64x207xf32>
    %69 = arith.maximumf %67, %68 : vector<64x207xf32>
    %70 = vector.extract_strided_slice %66 {offsets = [0, 16], sizes = [64, 207], strides = [1, 1]} : vector<64x224xf32> to vector<64x207xf32>
    %71 = vector.extract_strided_slice %66 {offsets = [0, 17], sizes = [64, 207], strides = [1, 1]} : vector<64x224xf32> to vector<64x207xf32>
    %72 = arith.maximumf %70, %71 : vector<64x207xf32>
    %73 = arith.maximumf %69, %72 : vector<64x207xf32>
    %74 = arith.truncf %73 : vector<64x207xf32> to vector<64x207xbf16>
    %c0_43 = arith.constant 0 : index
    %c0_44 = arith.constant 0 : index
    %75 = vector.load %arg7[%c0_43, %c0_44] : memref<207x640xbf16, #tpu.memory_space<vmem>>, vector<207x640xbf16>
    %cst_45 = arith.constant dense<0.000000e+00> : vector<64x640xf32>
    %76 = tpu.matmul %74, %75, %cst_45 {dimension_numbers = #tpu.dot_dimension_numbers<[1], [0], [0], [1], [0, 0, 1, 1], [], []>} : vector<64x207xbf16>, vector<207x640xbf16>, vector<64x640xf32> -> vector<64x640xf32>
    %c0_46 = arith.constant 0 : index
    %c0_47 = arith.constant 0 : index
    %77 = vector.load %arg8[%c0_46, %c0_47] : memref<64x640xf32, #tpu.memory_space<vmem>>, vector<64x640xf32>
    %78 = arith.mulf %76, %77 : vector<64x640xf32>
    %c0_48 = arith.constant 0 : index
    %c0_49 = arith.constant 0 : index
    %79 = vector.load %arg9[%c0_48, %c0_49] : memref<640x10xf32, #tpu.memory_space<vmem>>, vector<640x10xf32>
    %cst_50 = arith.constant dense<0.000000e+00> : vector<64x10xf32>
    %80 = tpu.matmul %78, %79, %cst_50 {dimension_numbers = #tpu.dot_dimension_numbers<[1], [0], [0], [1], [0, 0, 1, 1], [], []>} : vector<64x640xf32>, vector<640x10xf32>, vector<64x10xf32> -> vector<64x10xf32>
    %cst_51 = arith.constant dense<0.000000e+00> : vector<10xf32>
    %81 = vector.multi_reduction <add>, %80, %cst_51 [0] : vector<64x10xf32> to vector<10xf32>
    %82 = vector.shape_cast %81 : vector<10xf32> to vector<1x10xf32>
    %c0_52 = arith.constant 0 : index
    %c0_53 = arith.constant 0 : index
    %83 = vector.load %arg10[%c0_52, %c0_53] : memref<1x10xf32, #tpu.memory_space<vmem>>, vector<1x10xf32>
    %84 = arith.addf %82, %83 : vector<1x10xf32>
    %c0_54 = arith.constant 0 : index
    %c0_55 = arith.constant 0 : index
    %c0_56 = arith.constant 0 : index
    %85 = vector.load %arg11[%c0_54, %c0_55, %c0_56] : memref<1x1x10xf32, #tpu.memory_space<vmem>>, vector<1x1x10xf32>
    %86 = vector.shape_cast %85 : vector<1x1x10xf32> to vector<1x10xf32>
    %87 = vector.shape_cast %84 : vector<1x10xf32> to vector<1x1x10xf32>
    tpu.vector_store %arg11[%c0_54, %c0_55, %c0_56], %87 {strides = array<i32>} : memref<1x1x10xf32, #tpu.memory_space<vmem>>, vector<1x1x10xf32>,
    return
  }
  func.func @transform_0(%arg0: i32) -> (i32, i32, i32) {
    %c0_i32 = arith.constant 0 : i32
    %c0_i32_0 = arith.constant 0 : i32
    %c0_i32_1 = arith.constant 0 : i32
    return %arg0, %c0_i32, %c0_i32_0 : i32, i32, i32
  }
  func.func @transform_1(%arg0: i32) -> (i32, i32) {
    %c0_i32 = arith.constant 0 : i32
    %c0_i32_0 = arith.constant 0 : i32
    %c0_i32_1 = arith.constant 0 : i32
    return %c0_i32, %c0_i32_0 : i32, i32
  }
  func.func @transform_2(%arg0: i32) -> (i32, i32) {
    %c0_i32 = arith.constant 0 : i32
    %c0_i32_0 = arith.constant 0 : i32
    %c0_i32_1 = arith.constant 0 : i32
    return %c0_i32, %c0_i32_0 : i32, i32
  }
  func.func @transform_3(%arg0: i32) -> (i32, i32) {
    %c0_i32 = arith.constant 0 : i32
    %c0_i32_0 = arith.constant 0 : i32
    %c0_i32_1 = arith.constant 0 : i32
    return %c0_i32, %c0_i32_0 : i32, i32
  }
  func.func @transform_4(%arg0: i32) -> (i32, i32) {
    %c0_i32 = arith.constant 0 : i32
    %c0_i32_0 = arith.constant 0 : i32
    %c0_i32_1 = arith.constant 0 : i32
    return %c0_i32, %c0_i32_0 : i32, i32
  }
  func.func @transform_5(%arg0: i32) -> (i32, i32) {
    %c0_i32 = arith.constant 0 : i32
    %c0_i32_0 = arith.constant 0 : i32
    %c0_i32_1 = arith.constant 0 : i32
    return %c0_i32, %c0_i32_0 : i32, i32
  }
  func.func @transform_6(%arg0: i32) -> (i32, i32) {
    %c0_i32 = arith.constant 0 : i32
    %c0_i32_0 = arith.constant 0 : i32
    %c0_i32_1 = arith.constant 0 : i32
    return %c0_i32, %c0_i32_0 : i32, i32
  }
  func.func @transform_7(%arg0: i32) -> (i32, i32) {
    %c0_i32 = arith.constant 0 : i32
    %c0_i32_0 = arith.constant 0 : i32
    %c0_i32_1 = arith.constant 0 : i32
    return %c0_i32, %c0_i32_0 : i32, i32
  }
  func.func @transform_8(%arg0: i32) -> (i32, i32) {
    %c0_i32 = arith.constant 0 : i32
    %c0_i32_0 = arith.constant 0 : i32
    %c0_i32_1 = arith.constant 0 : i32
    return %c0_i32, %c0_i32_0 : i32, i32
  }
  func.func @transform_9(%arg0: i32) -> (i32, i32) {
    %c0_i32 = arith.constant 0 : i32
    %c0_i32_0 = arith.constant 0 : i32
    %c0_i32_1 = arith.constant 0 : i32
    return %c0_i32, %c0_i32_0 : i32, i32
  }
  func.func @transform_10(%arg0: i32) -> (i32, i32, i32) {
    %c0_i32 = arith.constant 0 : i32
    %c0_i32_0 = arith.constant 0 : i32
    %c0_i32_1 = arith.constant 0 : i32
    return %arg0, %c0_i32, %c0_i32_0 : i32, i32, i32
  }
}

</mosaic_0001>

<llo_original>
// kernel: cnn_forward.1
$region0: #{cnn_forward.1}
  #allocation0 [shape = 'u32[]', space=smem, size = 0x4, offset = 0x4, fixed_abs, tag = 'smem constant byte address 0x4 - core index']
  #allocation1 [shape = 'u32[72,128]{1,0:T(1,128)}', space=vmem, size = 0x9000, scoped, tag = 'internal scratch']
  #allocation2 [shape = 'f32[16,896]{1,0:T(8,128)}', space=vmem, size = 0xe000, scoped, tag = 'scratch operand']
  #allocation3 [shape = 'bf16[288,224]{1,0:T(8,128)(2,1)}', space=vmem, size = 0x24000, scoped, tag = 'scratch operand']
  %s0 = inlined_call_operand.vmem [shape: f32[2,1,1024], index: 0, kind: input, shape index: {}]
  %s1 = inlined_call_operand.vmem [shape: f32[32,16], index: 1, kind: input, shape index: {}]
  %s2 = inlined_call_operand.vmem [shape: f32[32,1], index: 2, kind: input, shape index: {}]
  %s3 = inlined_call_operand.vmem [shape: bf16[863,272], index: 3, kind: input, shape index: {}]
  %s4 = inlined_call_operand.vmem [shape: bf16[64,288], index: 4, kind: input, shape index: {}]
  %s5 = inlined_call_operand.vmem [shape: f32[64,1], index: 5, kind: input, shape index: {}]
  %s6 = inlined_call_operand.vmem [shape: bf16[207,640], index: 6, kind: input, shape index: {}]
  %s7 = inlined_call_operand.vmem [shape: f32[64,640], index: 7, kind: input, shape index: {}]
  %s8 = inlined_call_operand.vmem [shape: f32[640,10], index: 8, kind: input, shape index: {}]
  %s9 = inlined_call_operand.vmem [shape: f32[1,10], index: 9, kind: input, shape index: {}]
  %s10 = inlined_call_operand.hbm [shape: f32[2,1,10], index: 10, kind: output, shape index: {}]
  %s11 = sld [smem:[#allocation0]]
  $region73: #{cnn_forward.1} parent=0
    _
  %s13 = ssub.s32 1, %s11
  %s14 = scalar_select 0, %s13, %s11
  $region1: #{cnn_forward.1} parent=0
    #allocation4 [shape = 'u8[1024]{0}', space=vmem, size = 0x400, scoped, tag = 'output window, operand 0']
    #allocation5 [shape = 's32[2]{0}', space=sflag, size = 0x8, scoped, tag = 'scoped memory for cnn_forward.1']
    %15 = vsyncpa [#allocation5], 0
    %s16 = scalar_lea.sflag [#allocation5], 1
    %17 = vsyncpa %s16, 0
    loop: start=0, step=1, limit=4
    $region2: #{cnn_forward.1} parent=1 // loop_pre_header
      _
    $region3: #{cnn_forward.1} parent=1 // loop_header
      %s19 = sphi 0, %s23
      %p20 = scmp.ge.s32.totalorder %s19, 4
      %s29 = sphi 0, %s31
      %s32 = sphi 0, %s29
      %s33 = sphi 0, %s32
      %s49 = sphi 0, %s33
      %s53 = sphi 0, %s53
      %s55 = sphi 0, %s53
      %s56 = sphi 0, %s55
      %s70 = sphi 0, %s56
      %s74 = sphi 0, %s74
      %s76 = sphi 0, %s74
      %s77 = sphi 0, %s76
      %s91 = sphi 0, %s77
      %s95 = sphi 0, %s95
      %s97 = sphi 0, %s95
      %s98 = sphi 0, %s97
      %s112 = sphi 0, %s98
      %s116 = sphi 0, %s116
      %s118 = sphi 0, %s116
      %s119 = sphi 0, %s118
      %s133 = sphi 0, %s119
      %s137 = sphi 0, %s137
      %s139 = sphi 0, %s137
      %s140 = sphi 0, %s139
      %s154 = sphi 0, %s140
      %s158 = sphi 0, %s158
      %s160 = sphi 0, %s158
      %s161 = sphi 0, %s160
      %s175 = sphi 0, %s161
      %s179 = sphi 0, %s179
      %s181 = sphi 0, %s179
      %s182 = sphi 0, %s181
      %s196 = sphi 0, %s182
      %s200 = sphi 0, %s200
      %s202 = sphi 0, %s200
      %s203 = sphi 0, %s202
      %s217 = sphi 0, %s203
      %s221 = sphi 0, %s221
      %s223 = sphi 0, %s221
      %s224 = sphi 0, %s223
      %s238 = sphi 0, %s224
      %s244 = sphi 0, %s246
      %s247 = sphi 0, %s244
      %s248 = sphi 0, %s247
      %s264 = sphi 0, %s248
    $region4: #{cnn_forward.1} parent=1 // loop_header_branch
      %22 = sbr.rel (%p20) target = $region8
    $region5: #{cnn_forward.1} parent=1 // loop_body
      %s24 = ssub.s32 %s19, 1
      %s25 = ssub.s32 %s19, 2
      %s26 = sadd.s32 %s19, 1
      %s27 = ssub.s32 %s19, %s26
      %p28 = scmp.eq.s32.totalorder %s27, 0
      %s30 = sadd.s32 %s29, 1
      %s31 = scalar_select %p28, %s29, %s30
      %p34 = pneg %p28
      %p35 = scmp.eq.s32.totalorder %s19, 1
      %p36 = por %p34, %p35
      %p37 = scmp.ne.s32.totalorder %s29, %s32
      %p38 = scmp.eq.s32.totalorder %s19, 0
      %p39 = por %p37, %p38
      %p40 = scmp.ne.s32.totalorder %s29, %s32
      %p41 = scmp.eq.s32.totalorder %s24, 1
      %p42 = por %p40, %p41
      %p43 = scmp.ne.s32.totalorder %s32, %s33
      %p44 = scmp.eq.s32.totalorder %s24, 0
      %p45 = por %p43, %p44
      %p46 = scmp.ne.s32.totalorder %s32, %s33
      %p47 = scmp.eq.s32.totalorder %s25, 1
      %p48 = por %p46, %p47
      %p50 = scmp.ne.s32.totalorder %s33, %s49
      %p51 = scmp.eq.s32.totalorder %s25, 0
      %p52 = por %p50, %p51
      %s54 = sadd.s32 %s53, 1
      %p57 = scmp.eq.s32.totalorder %s19, 1
      %p58 = scmp.ne.s32.totalorder %s53, %s55
      %p59 = scmp.eq.s32.totalorder %s19, 0
      %p60 = por %p58, %p59
      %p61 = scmp.ne.s32.totalorder %s53, %s55
      %p62 = scmp.eq.s32.totalorder %s24, 1
      %p63 = por %p61, %p62
      %p64 = scmp.ne.s32.totalorder %s55, %s56
      %p65 = scmp.eq.s32.totalorder %s24, 0
      %p66 = por %p64, %p65
      %p67 = scmp.ne.s32.totalorder %s55, %s56
      %p68 = scmp.eq.s32.totalorder %s25, 1
      %p69 = por %p67, %p68
      %p71 = scmp.ne.s32.totalorder %s56, %s70
      %p72 = scmp.eq.s32.totalorder %s25, 0
      %p73 = por %p71, %p72
      %s75 = sadd.s32 %s74, 1
      %p78 = scmp.eq.s32.totalorder %s19, 1
      %p79 = scmp.ne.s32.totalorder %s74, %s76
      %p80 = scmp.eq.s32.totalorder %s19, 0
      %p81 = por %p79, %p80
      %p82 = scmp.ne.s32.totalorder %s74, %s76
      %p83 = scmp.eq.s32.totalorder %s24, 1
      %p84 = por %p82, %p83
      %p85 = scmp.ne.s32.totalorder %s76, %s77
      %p86 = scmp.eq.s32.totalorder %s24, 0
      %p87 = por %p85, %p86
      %p88 = scmp.ne.s32.totalorder %s76, %s77
      %p89 = scmp.eq.s32.totalorder %s25, 1
      %p90 = por %p88, %p89
      %p92 = scmp.ne.s32.totalorder %s77, %s91
      %p93 = scmp.eq.s32.totalorder %s25, 0
      %p94 = por %p92, %p93
      %s96 = sadd.s32 %s95, 1
      %p99 = scmp.eq.s32.totalorder %s19, 1
      %p100 = scmp.ne.s32.totalorder %s95, %s97
      %p101 = scmp.eq.s32.totalorder %s19, 0
      %p102 = por %p100, %p101
      %p103 = scmp.ne.s32.totalorder %s95, %s97
      %p104 = scmp.eq.s32.totalorder %s24, 1
      %p105 = por %p103, %p104
      %p106 = scmp.ne.s32.totalorder %s97, %s98
      %p107 = scmp.eq.s32.totalorder %s24, 0
      %p108 = por %p106, %p107
      %p109 = scmp.ne.s32.totalorder %s97, %s98
      %p110 = scmp.eq.s32.totalorder %s25, 1
      %p111 = por %p109, %p110
      %p113 = scmp.ne.s32.totalorder %s98, %s112
      %p114 = scmp.eq.s32.totalorder %s25, 0
      %p115 = por %p113, %p114
      %s117 = sadd.s32 %s116, 1
      %p120 = scmp.eq.s32.totalorder %s19, 1
      %p121 = scmp.ne.s32.totalorder %s116, %s118
      %p122 = scmp.eq.s32.totalorder %s19, 0
      %p123 = por %p121, %p122
      %p124 = scmp.ne.s32.totalorder %s116, %s118
      %p125 = scmp.eq.s32.totalorder %s24, 1
      %p126 = por %p124, %p125
      %p127 = scmp.ne.s32.totalorder %s118, %s119
      %p128 = scmp.eq.s32.totalorder %s24, 0
      %p129 = por %p127, %p128
      %p130 = scmp.ne.s32.totalorder %s118, %s119
      %p131 = scmp.eq.s32.totalorder %s25, 1
      %p132 = por %p130, %p131
      %p134 = scmp.ne.s32.totalorder %s119, %s133
      %p135 = scmp.eq.s32.totalorder %s25, 0
      %p136 = por %p134, %p135
      %s138 = sadd.s32 %s137, 1
      %p141 = scmp.eq.s32.totalorder %s19, 1
      %p142 = scmp.ne.s32.totalorder %s137, %s139
      %p143 = scmp.eq.s32.totalorder %s19, 0
      %p144 = por %p142, %p143
      %p145 = scmp.ne.s32.totalorder %s137, %s139
      %p146 = scmp.eq.s32.totalorder %s24, 1
      %p147 = por %p145, %p146
      %p148 = scmp.ne.s32.totalorder %s139, %s140
      %p149 = scmp.eq.s32.totalorder %s24, 0
      %p150 = por %p148, %p149
      %p151 = scmp.ne.s32.totalorder %s139, %s140
      %p152 = scmp.eq.s32.totalorder %s25, 1
      %p153 = por %p151, %p152
      %p155 = scmp.ne.s32.totalorder %s140, %s154
      %p156 = scmp.eq.s32.totalorder %s25, 0
      %p157 = por %p155, %p156
      %s159 = sadd.s32 %s158, 1
      %p162 = scmp.eq.s32.totalorder %s19, 1
      %p163 = scmp.ne.s32.totalorder %s158, %s160
      %p164 = scmp.eq.s32.totalorder %s19, 0
      %p165 = por %p163, %p164
      %p166 = scmp.ne.s32.totalorder %s158, %s160
      %p167 = scmp.eq.s32.totalorder %s24, 1
      %p168 = por %p166, %p167
      %p169 = scmp.ne.s32.totalorder %s160, %s161
      %p170 = scmp.eq.s32.totalorder %s24, 0
      %p171 = por %p169, %p170
      %p172 = scmp.ne.s32.totalorder %s160, %s161
      %p173 = scmp.eq.s32.totalorder %s25, 1
      %p174 = por %p172, %p173
      %p176 = scmp.ne.s32.totalorder %s161, %s175
      %p177 = scmp.eq.s32.totalorder %s25, 0
      %p178 = por %p176, %p177
      %s180 = sadd.s32 %s179, 1
      %p183 = scmp.eq.s32.totalorder %s19, 1
      %p184 = scmp.ne.s32.totalorder %s179, %s181
      %p185 = scmp.eq.s32.totalorder %s19, 0
      %p186 = por %p184, %p185
      %p187 = scmp.ne.s32.totalorder %s179, %s181
      %p188 = scmp.eq.s32.totalorder %s24, 1
      %p189 = por %p187, %p188
      %p190 = scmp.ne.s32.totalorder %s181, %s182
      %p191 = scmp.eq.s32.totalorder %s24, 0
      %p192 = por %p190, %p191
      %p193 = scmp.ne.s32.totalorder %s181, %s182
      %p194 = scmp.eq.s32.totalorder %s25, 1
      %p195 = por %p193, %p194
      %p197 = scmp.ne.s32.totalorder %s182, %s196
      %p198 = scmp.eq.s32.totalorder %s25, 0
      %p199 = por %p197, %p198
      %s201 = sadd.s32 %s200, 1
      %p204 = scmp.eq.s32.totalorder %s19, 1
      %p205 = scmp.ne.s32.totalorder %s200, %s202
      %p206 = scmp.eq.s32.totalorder %s19, 0
      %p207 = por %p205, %p206
      %p208 = scmp.ne.s32.totalorder %s200, %s202
      %p209 = scmp.eq.s32.totalorder %s24, 1
      %p210 = por %p208, %p209
      %p211 = scmp.ne.s32.totalorder %s202, %s203
      %p212 = scmp.eq.s32.totalorder %s24, 0
      %p213 = por %p211, %p212
      %p214 = scmp.ne.s32.totalorder %s202, %s203
      %p215 = scmp.eq.s32.totalorder %s25, 1
      %p216 = por %p214, %p215
      %p218 = scmp.ne.s32.totalorder %s203, %s217
      %p219 = scmp.eq.s32.totalorder %s25, 0
      %p220 = por %p218, %p219
      %s222 = sadd.s32 %s221, 1
      %p225 = scmp.eq.s32.totalorder %s19, 1
      %p226 = scmp.ne.s32.totalorder %s221, %s223
      %p227 = scmp.eq.s32.totalorder %s19, 0
      %p228 = por %p226, %p227
      %p229 = scmp.ne.s32.totalorder %s221, %s223
      %p230 = scmp.eq.s32.totalorder %s24, 1
      %p231 = por %p229, %p230
      %p232 = scmp.ne.s32.totalorder %s223, %s224
      %p233 = scmp.eq.s32.totalorder %s24, 0
      %p234 = por %p232, %p233
      %p235 = scmp.ne.s32.totalorder %s223, %s224
      %p236 = scmp.eq.s32.totalorder %s25, 1
      %p237 = por %p235, %p236
      %p239 = scmp.ne.s32.totalorder %s224, %s238
      %p240 = scmp.eq.s32.totalorder %s25, 0
      %p241 = por %p239, %p240
      %s242 = ssub.s32 %s19, %s26
      %p243 = scmp.eq.s32.totalorder %s242, 0
      %s245 = sadd.s32 %s244, 1
      %s246 = scalar_select %p243, %s244, %s245
      %p249 = pneg %p243
      %p250 = scmp.eq.s32.totalorder %s19, 1
      %p251 = por %p249, %p250
      %p252 = scmp.ne.s32.totalorder %s244, %s247
      %p253 = scmp.eq.s32.totalorder %s19, 0
      %p254 = por %p252, %p253
      %p255 = scmp.ne.s32.totalorder %s244, %s247
      %p256 = scmp.eq.s32.totalorder %s24, 1
      %p257 = por %p255, %p256
      %p258 = scmp.ne.s32.totalorder %s247, %s248
      %p259 = scmp.eq.s32.totalorder %s24, 0
      %p260 = por %p258, %p259
      %p261 = scmp.ne.s32.totalorder %s247, %s248
      %p262 = scmp.eq.s32.totalorder %s25, 1
      %p263 = por %p261, %p262
      %p265 = scmp.ne.s32.totalorder %s248, %s264
      %p266 = scmp.eq.s32.totalorder %s25, 0
      %p267 = por %p265, %p266
      %p268 = scmp.le.s32.totalorder 1, %s19
      %p269 = scmp.lt.s32.totalorder %s19, 3
      %p270 = pnand %p268, %p269
      %p271 = pneg %p270
      // Predicated region
      $region9: #{cnn_forward.1} parent=5 // pred_check
        _
      $region10: #{cnn_forward.1} parent=5 // pred_check_branch
        %273 = sbr.rel (%p270) target = $region12
      $region11: #{cnn_forward.1} parent=5 // pred_region
        %s274 = ssub.s32 %s19, 1
        // Predicated region
        $region13: #{cnn_forward.1} parent=11 // pred_check
          %p275 = pneg %p66
        $region14: #{cnn_forward.1} parent=11 // pred_check_branch
          %277 = sbr.rel (%p275) target = $region16
        $region15: #{cnn_forward.1} parent=11 // pred_region
          _
        $region16: #{cnn_forward.1} parent=11 // pred_fallthru
          _
        // Predicated region
        $region17: #{cnn_forward.1} parent=11 // pred_check
          %p278 = pneg %p87
        $region18: #{cnn_forward.1} parent=11 // pred_check_branch
          %280 = sbr.rel (%p278) target = $region20
        $region19: #{cnn_forward.1} parent=11 // pred_region
          _
        $region20: #{cnn_forward.1} parent=11 // pred_fallthru
          _
        // Predicated region
        $region21: #{cnn_forward.1} parent=11 // pred_check
          %p281 = pneg %p108
        $region22: #{cnn_forward.1} parent=11 // pred_check_branch
          %283 = sbr.rel (%p281) target = $region24
        $region23: #{cnn_forward.1} parent=11 // pred_region
          _
        $region24: #{cnn_forward.1} parent=11 // pred_fallthru
          _
        // Predicated region
        $region25: #{cnn_forward.1} parent=11 // pred_check
          %p284 = pneg %p129
        $region26: #{cnn_forward.1} parent=11 // pred_check_branch
          %286 = sbr.rel (%p284) target = $region28
        $region27: #{cnn_forward.1} parent=11 // pred_region
          _
        $region28: #{cnn_forward.1} parent=11 // pred_fallthru
          _
        // Predicated region
        $region29: #{cnn_forward.1} parent=11 // pred_check
          %p287 = pneg %p150
        $region30: #{cnn_forward.1} parent=11 // pred_check_branch
          %289 = sbr.rel (%p287) target = $region32
        $region31: #{cnn_forward.1} parent=11 // pred_region
          _
        $region32: #{cnn_forward.1} parent=11 // pred_fallthru
          _
        // Predicated region
        $region33: #{cnn_forward.1} parent=11 // pred_check
          %p290 = pneg %p171
        $region34: #{cnn_forward.1} parent=11 // pred_check_branch
          %292 = sbr.rel (%p290) target = $region36
        $region35: #{cnn_forward.1} parent=11 // pred_region
          _
        $region36: #{cnn_forward.1} parent=11 // pred_fallthru
          _
        // Predicated region
        $region37: #{cnn_forward.1} parent=11 // pred_check
          %p293 = pneg %p192
        $region38: #{cnn_forward.1} parent=11 // pred_check_branch
          %295 = sbr.rel (%p293) target = $region40
        $region39: #{cnn_forward.1} parent=11 // pred_region
          _
        $region40: #{cnn_forward.1} parent=11 // pred_fallthru
          _
        // Predicated region
        $region41: #{cnn_forward.1} parent=11 // pred_check
          %p296 = pneg %p213
        $region42: #{cnn_forward.1} parent=11 // pred_check_branch
          %298 = sbr.rel (%p296) target = $region44
        $region43: #{cnn_forward.1} parent=11 // pred_region
          _
        $region44: #{cnn_forward.1} parent=11 // pred_fallthru
          _
        // Predicated region
        $region45: #{cnn_forward.1} parent=11 // pred_check
          %p299 = pneg %p234
        $region46: #{cnn_forward.1} parent=11 // pred_check_branch
          %301 = sbr.rel (%p299) target = $region48
        $region47: #{cnn_forward.1} parent=11 // pred_region
          _
        $region48: #{cnn_forward.1} parent=11 // pred_fallthru
          _
      $region12: #{cnn_forward.1} parent=5 // pred_fallthru
        _
      %p302 = scmp.lt.s32.totalorder %s19, 2
      // Predicated region
      $region49: #{cnn_forward.1} parent=5 // pred_check
        %p303 = pneg %p302
      $region50: #{cnn_forward.1} parent=5 // pred_check_branch
        %305 = sbr.rel (%p303) target = $region52
      $region51: #{cnn_forward.1} parent=5 // pred_region
        // Predicated region
        $region53: #{cnn_forward.1} parent=51 // pred_check
          %p306 = pneg %p39
        $region54: #{cnn_forward.1} parent=51 // pred_check_branch
          %308 = sbr.rel (%p306) target = $region56
        $region55: #{cnn_forward.1} parent=51 // pred_region
          %p309 = scmp.lt.s32.totalorder %s19, 1
          %s310 = scalar_select %p309, %s19, 1
          %s311 = smul.addr %s310, 8
          %s312 = scalar_lea.vmem %s0, %s311
        $region56: #{cnn_forward.1} parent=51 // pred_fallthru
          _
      $region52: #{cnn_forward.1} parent=5 // pred_fallthru
        _
      %p313 = scmp.le.s32.totalorder 1, %s19
      %p314 = scmp.lt.s32.totalorder %s19, 3
      %p315 = pnand %p313, %p314
      %p316 = pneg %p315
      // Predicated region
      $region57: #{cnn_forward.1} parent=5 // pred_check
        _
      $region58: #{cnn_forward.1} parent=5 // pred_check_branch
        %318 = sbr.rel (%p315) target = $region60
      $region59: #{cnn_forward.1} parent=5 // pred_region
        %s319 = ssub.s32 %s19, 1
        %p320 = scmp.lt.s32.totalorder %s24, 1
        %s321 = scalar_select %p320, %s24, 1
        %s322 = smul.addr %s321, 8
        %s323 = scalar_lea.vmem %s0, %s322
        %p324 = pneg %p45
        %p325 = pneg %p42
        %p326 = pneg %p66
        %p327 = pneg %p63
        %p328 = pneg %p87
        %p329 = pneg %p84
        %p330 = pneg %p108
        %p331 = pneg %p105
        %p332 = pneg %p129
        %p333 = pneg %p126
        %p334 = pneg %p150
        %p335 = pneg %p147
        %p336 = pneg %p171
        %p337 = pneg %p168
        %p338 = pneg %p192
        %p339 = pneg %p189
        %p340 = pneg %p213
        %p341 = pneg %p210
        %p342 = pneg %p234
        %p343 = pneg %p231
        %p344 = pneg %p260
        %p345 = pneg %p257
        %s346 = sand.u32 %s247, 1
        %s347 = scalar_lea.sflag [#allocation5], %s346
        %s348 = sand.u32 %s247, 1
        %s349 = scalar_lea.vmem [#allocation4], %s348
        %p350 = scmp.lt.s32.totalorder %s24, 1
        %s351 = scalar_select %p350, %s24, 1
        %s352 = smul.addr %s351, 8
        %s353 = scalar_lea.vmem %s0, %s352
        %v355 = vld [vmem:[%s353] sm:$0xff]
        %356 = vst [vmem:[#allocation2] sm:$0xff] 0.0
        %357 = vst [vmem:[#allocation2 + $0x8] sm:$0xff] 0.0
        %358 = vst [vmem:[#allocation2 + $0x10] sm:$0xff] 0.0
        %359 = vst [vmem:[#allocation2 + $0x18] sm:$0xff] 0.0
        %360 = vst [vmem:[#allocation2 + $0x20] sm:$0xff] 0.0
        %361 = vst [vmem:[#allocation2 + $0x28] sm:$0xff] 0.0
        %362 = vst [vmem:[#allocation2 + $0x30] sm:$0xff] 0.0
        %363 = vst [vmem:[#allocation2 + $0x38] sm:$0xff] 0.0
        %364 = vst [vmem:[#allocation2 + $0x40] sm:$0xff] 0.0
        %365 = vst [vmem:[#allocation2 + $0x48] sm:$0xff] 0.0
        %366 = vst [vmem:[#allocation2 + $0x50] sm:$0xff] 0.0
        %367 = vst [vmem:[#allocation2 + $0x58] sm:$0xff] 0.0
        %368 = vst [vmem:[#allocation2 + $0x60] sm:$0xff] 0.0
        %369 = vst [vmem:[#allocation2 + $0x68] sm:$0xff] 0.0
        %v370 = vlaneseq
        %vm371 = vcmp.ge.s32.totalorder %v370, 0
        %vm372 = vcmp.lt.s32.totalorder %v370, 896
        %vm373 = vmand %vm371, %vm372
        %374 = vst.msk [vmem:[#allocation2] ss:$8 sm:$0xf] %vm373, %v355
        %375 = vst.msk [vmem:[#allocation2] ss:$8 sm:$0x70] %vm373, %v355
        %377 = vrot.lane.b32.xlu0 %v355, 127
        %v378 = vpop.permute.xlu0 %377
        %v379 = vrot.slane %v378, 1
        %vm380 = vcmask 1039360
        %v381 = vsel %vm380, %v378, %v379
        %s383 = scalar_lea.vmem [#allocation2], 1
        %384 = vst.msk [vmem:[%s383] ss:$8 sm:$0xf] %vm373, %v381
        %385 = vst.msk [vmem:[%s383] ss:$8 sm:$0x70] %vm373, %v381
        %386 = vrot.lane.b32.xlu0 %v355, 126
        %v387 = vpop.permute.xlu0 %386
        %v388 = vrot.slane %v387, 1
        %vm389 = vcmask 1031168
        %v390 = vsel %vm389, %v387, %v388
        %s392 = scalar_lea.vmem [#allocation2], 2
        %393 = vst.msk [vmem:[%s392] ss:$8 sm:$0xf] %vm373, %v390
        %394 = vst.msk [vmem:[%s392] ss:$8 sm:$0x70] %vm373, %v390
        %395 = vrot.lane.b32.xlu0 %v355, 96
        %v396 = vpop.permute.xlu0 %395
        %v397 = vrot.slane %v396, 1
        %vm398 = vcmask 785408
        %v399 = vsel %vm398, %v396, %v397
        %s401 = scalar_lea.vmem [#allocation2], 3
        %402 = vst.msk [vmem:[%s401] ss:$8 sm:$0xf] %vm373, %v399
        %403 = vst.msk [vmem:[%s401] ss:$8 sm:$0x70] %vm373, %v399
        %404 = vrot.lane.b32.xlu0 %v355, 95
        %v405 = vpop.permute.xlu0 %404
        %v406 = vrot.slane %v405, 1
        %vm407 = vcmask 777216
        %v408 = vsel %vm407, %v405, %v406
        %s410 = scalar_lea.vmem [#allocation2], 4
        %411 = vst.msk [vmem:[%s410] ss:$8 sm:$0xf] %vm373, %v408
        %412 = vst.msk [vmem:[%s410] ss:$8 sm:$0x70] %vm373, %v408
        %413 = vrot.lane.b32.xlu0 %v355, 94
        %v414 = vpop.permute.xlu0 %413
        %v415 = vrot.slane %v414, 1
        %vm416 = vcmask 769024
        %v417 = vsel %vm416, %v414, %v415
        %s419 = scalar_lea.vmem [#allocation2], 5
        %420 = vst.msk [vmem:[%s419] ss:$8 sm:$0xf] %vm373, %v417
        %421 = vst.msk [vmem:[%s419] ss:$8 sm:$0x70] %vm373, %v417
        %422 = vrot.lane.b32.xlu0 %v355, 64
        %v423 = vpop.permute.xlu0 %422
        %v424 = vrot.slane %v423, 1
        %vm425 = vcmask 523264
        %v426 = vsel %vm425, %v423, %v424
        %s428 = scalar_lea.vmem [#allocation2], 6
        %429 = vst.msk [vmem:[%s428] ss:$8 sm:$0xf] %vm373, %v426
        %430 = vst.msk [vmem:[%s428] ss:$8 sm:$0x70] %vm373, %v426
        %431 = vrot.lane.b32.xlu0 %v355, 63
        %v432 = vpop.permute.xlu0 %431
        %v433 = vrot.slane %v432, 1
        %vm434 = vcmask 515072
        %v435 = vsel %vm434, %v432, %v433
        %s437 = scalar_lea.vmem [#allocation2], 7
        %438 = vst.msk [vmem:[%s437] ss:$8 sm:$0xf] %vm373, %v435
        %439 = vst.msk [vmem:[%s437] ss:$8 sm:$0x70] %vm373, %v435
        %440 = vrot.lane.b32.xlu0 %v355, 62
        %v441 = vpop.permute.xlu0 %440
        %v442 = vrot.slane %v441, 1
        %vm443 = vcmask 506880
        %v444 = vsel %vm443, %v441, %v442
        %s446 = scalar_lea.vmem [#allocation2], 56
        %447 = vst.msk [vmem:[%s446] ss:$8 sm:$0xf] %vm373, %v444
        %448 = vst.msk [vmem:[%s446] ss:$8 sm:$0x70] %vm373, %v444
        %v449 = vld [vmem:[%s1] sm:$0xff]
        %v450 = vld [vmem:[%s1 + $0x8] sm:$0xff]
        %v451 = vld [vmem:[%s1 + $0x10] sm:$0xff]
        %v452 = vld [vmem:[%s1 + $0x18] sm:$0xff]
        %v453 = vld [vmem:[#allocation2] sm:$0xff]
        %v454 = vld [vmem:[#allocation2 + $0x8] sm:$0xff]
        %v455 = vld [vmem:[#allocation2 + $0x10] sm:$0xff]
        %v456 = vld [vmem:[#allocation2 + $0x18] sm:$0xff]
        %v457 = vld [vmem:[#allocation2 + $0x20] sm:$0xff]
        %v458 = vld [vmem:[#allocation2 + $0x28] sm:$0xff]
        %v459 = vld [vmem:[#allocation2 + $0x30] sm:$0xff]
        %v460 = vld [vmem:[#allocation2 + $0x38] sm:$0xff]
        %v461 = vld [vmem:[#allocation2 + $0x40] sm:$0xff]
        %v462 = vld [vmem:[#allocation2 + $0x48] sm:$0xff]
        %v463 = vld [vmem:[#allocation2 + $0x50] sm:$0xff]
        %v464 = vld [vmem:[#allocation2 + $0x58] sm:$0xff]
        %v465 = vld [vmem:[#allocation2 + $0x60] sm:$0xff]
        %v466 = vld [vmem:[#allocation2 + $0x68] sm:$0xff]
        %v467 = vld [vmem:[%s2] sm:$0xff]
        %v468 = vld [vmem:[%s2 + $0x8] sm:$0xff]
        %v469 = vld [vmem:[%s2 + $0x10] sm:$0xff]
        %v470 = vld [vmem:[%s2 + $0x18] sm:$0xff]
        %472 = vset.pattern.permute.xlu0 0
        %473 = vperm.xlu0 %472, %v467
        %v474 = vpop.permute.xlu0 %473
        %477 = vset.pattern.permute.xlu0 0
        %478 = vperm.xlu0 %477, %v468
        %v479 = vpop.permute.xlu0 %478
        %482 = vset.pattern.permute.xlu0 0
        %483 = vperm.xlu0 %482, %v469
        %v484 = vpop.permute.xlu0 %483
        %487 = vset.pattern.permute.xlu0 0
        %488 = vperm.xlu0 %487, %v470
        %v489 = vpop.permute.xlu0 %488
        %vm491 = vcmask 130048
        %v493 = vsel %vm491, %v449, 0
        %v496 = vsel %vm491, %v450, 0
        %v499 = vsel %vm491, %v451, 0
        %v502 = vsel %vm491, %v452, 0
        %504 = vmatpush.msra.mxu0 0.0
        %505 = vmatpush.msra.mxu0 0.0
        %506 = vmatpush.msra.mxu0 0.0
        %507 = vmatpush.msra.mxu0 0.0
        %508 = vmatpush.msra.mxu0 0.0
        %509 = vmatpush.msra.mxu0 0.0
        %510 = vmatpush.msra.mxu0 0.0
        %511 = vmatpush.msra.mxu0 0.0
        %512 = vmatpush.msra.mxu0 0.0
        %513 = vmatpush.msra.mxu0 0.0
        %514 = vmatpush.msra.mxu0 0.0
        %515 = vmatpush.msra.mxu0 0.0
        %516 = vmatpush.msra.mxu0 0.0
        %517 = vmatpush.msra.mxu0 0.0
        %518 = vmatpush.msra.mxu0 %v460
        %519 = vmatpush.msra.mxu0 %v453
        %520 = vmatmul.f32.gmra.mxu0 %v493
        %v521 = vpop.f32.mrf.mxu0
        %v522 = vadd.f32 %v474, %v521
        %523 = vmatmul.f32.gmra.mxu0 %v496
        %v524 = vpop.f32.mrf.mxu0
        %v525 = vadd.f32 %v479, %v524
        %526 = vmatmul.f32.gmra.mxu0 %v499
        %v527 = vpop.f32.mrf.mxu0
        %v528 = vadd.f32 %v484, %v527
        %529 = vmatmul.f32.gmra.mxu0 %v502
        %v530 = vpop.f32.mrf.mxu0
        %v531 = vadd.f32 %v489, %v530
        %532 = vdwg.mxu0
        %533 = vmatpush.msra.mxu0 0.0
        %534 = vmatpush.msra.mxu0 0.0
        %535 = vmatpush.msra.mxu0 0.0
        %536 = vmatpush.msra.mxu0 0.0
        %537 = vmatpush.msra.mxu0 0.0
        %538 = vmatpush.msra.mxu0 0.0
        %539 = vmatpush.msra.mxu0 0.0
        %540 = vmatpush.msra.mxu0 0.0
        %541 = vmatpush.msra.mxu0 0.0
        %542 = vmatpush.msra.mxu0 0.0
        %543 = vmatpush.msra.mxu0 0.0
        %544 = vmatpush.msra.mxu0 0.0
        %545 = vmatpush.msra.mxu0 0.0
        %546 = vmatpush.msra.mxu0 0.0
        %547 = vmatpush.msra.mxu0 %v461
        %548 = vmatpush.msra.mxu0 %v454
        %549 = vmatmul.f32.gmra.mxu0 %v493
        %v550 = vpop.f32.mrf.mxu0
        %v551 = vadd.f32 %v474, %v550
        %552 = vmatmul.f32.gmra.mxu0 %v496
        %v553 = vpop.f32.mrf.mxu0
        %v554 = vadd.f32 %v479, %v553
        %555 = vmatmul.f32.gmra.mxu0 %v499
        %v556 = vpop.f32.mrf.mxu0
        %v557 = vadd.f32 %v484, %v556
        %558 = vmatmul.f32.gmra.mxu0 %v502
        %v559 = vpop.f32.mrf.mxu0
        %v560 = vadd.f32 %v489, %v559
        %561 = vdwg.mxu0
        %562 = vmatpush.msra.mxu0 0.0
        %563 = vmatpush.msra.mxu0 0.0
        %564 = vmatpush.msra.mxu0 0.0
        %565 = vmatpush.msra.mxu0 0.0
        %566 = vmatpush.msra.mxu0 0.0
        %567 = vmatpush.msra.mxu0 0.0
        %568 = vmatpush.msra.mxu0 0.0
        %569 = vmatpush.msra.mxu0 0.0
        %570 = vmatpush.msra.mxu0 0.0
        %571 = vmatpush.msra.mxu0 0.0
        %572 = vmatpush.msra.mxu0 0.0
        %573 = vmatpush.msra.mxu0 0.0
        %574 = vmatpush.msra.mxu0 0.0
        %575 = vmatpush.msra.mxu0 0.0
        %576 = vmatpush.msra.mxu0 %v462
        %577 = vmatpush.msra.mxu0 %v455
        %578 = vmatmul.f32.gmra.mxu0 %v493
        %v579 = vpop.f32.mrf.mxu0
        %v580 = vadd.f32 %v474, %v579
        %581 = vmatmul.f32.gmra.mxu0 %v496
        %v582 = vpop.f32.mrf.mxu0
        %v583 = vadd.f32 %v479, %v582
        %584 = vmatmul.f32.gmra.mxu0 %v499
        %v585 = vpop.f32.mrf.mxu0
        %v586 = vadd.f32 %v484, %v585
        %587 = vmatmul.f32.gmra.mxu0 %v502
        %v588 = vpop.f32.mrf.mxu0
        %v589 = vadd.f32 %v489, %v588
        %590 = vdwg.mxu0
        %591 = vmatpush.msra.mxu0 0.0
        %592 = vmatpush.msra.mxu0 0.0
        %593 = vmatpush.msra.mxu0 0.0
        %594 = vmatpush.msra.mxu0 0.0
        %595 = vmatpush.msra.mxu0 0.0
        %596 = vmatpush.msra.mxu0 0.0
        %597 = vmatpush.msra.mxu0 0.0
        %598 = vmatpush.msra.mxu0 0.0
        %599 = vmatpush.msra.mxu0 0.0
        %600 = vmatpush.msra.mxu0 0.0
        %601 = vmatpush.msra.mxu0 0.0
        %602 = vmatpush.msra.mxu0 0.0
        %603 = vmatpush.msra.mxu0 0.0
        %604 = vmatpush.msra.mxu0 0.0
        %605 = vmatpush.msra.mxu0 %v463
        %606 = vmatpush.msra.mxu0 %v456
        %607 = vmatmul.f32.gmra.mxu0 %v493
        %v608 = vpop.f32.mrf.mxu0
        %v609 = vadd.f32 %v474, %v608
        %610 = vmatmul.f32.gmra.mxu0 %v496
        %v611 = vpop.f32.mrf.mxu0
        %v612 = vadd.f32 %v479, %v611
        %613 = vmatmul.f32.gmra.mxu0 %v499
        %v614 = vpop.f32.mrf.mxu0
        %v615 = vadd.f32 %v484, %v614
        %616 = vmatmul.f32.gmra.mxu0 %v502
        %v617 = vpop.f32.mrf.mxu0
        %v618 = vadd.f32 %v489, %v617
        %619 = vdwg.mxu0
        %620 = vmatpush.msra.mxu0 0.0
        %621 = vmatpush.msra.mxu0 0.0
        %622 = vmatpush.msra.mxu0 0.0
        %623 = vmatpush.msra.mxu0 0.0
        %624 = vmatpush.msra.mxu0 0.0
        %625 = vmatpush.msra.mxu0 0.0
        %626 = vmatpush.msra.mxu0 0.0
        %627 = vmatpush.msra.mxu0 0.0
        %628 = vmatpush.msra.mxu0 0.0
        %629 = vmatpush.msra.mxu0 0.0
        %630 = vmatpush.msra.mxu0 0.0
        %631 = vmatpush.msra.mxu0 0.0
        %632 = vmatpush.msra.mxu0 0.0
        %633 = vmatpush.msra.mxu0 0.0
        %634 = vmatpush.msra.mxu0 %v464
        %635 = vmatpush.msra.mxu0 %v457
        %636 = vmatmul.f32.gmra.mxu0 %v493
        %v637 = vpop.f32.mrf.mxu0
        %v638 = vadd.f32 %v474, %v637
        %639 = vmatmul.f32.gmra.mxu0 %v496
        %v640 = vpop.f32.mrf.mxu0
        %v641 = vadd.f32 %v479, %v640
        %642 = vmatmul.f32.gmra.mxu0 %v499
        %v643 = vpop.f32.mrf.mxu0
        %v644 = vadd.f32 %v484, %v643
        %645 = vmatmul.f32.gmra.mxu0 %v502
        %v646 = vpop.f32.mrf.mxu0
        %v647 = vadd.f32 %v489, %v646
        %648 = vdwg.mxu0
        %649 = vmatpush.msra.mxu0 0.0
        %650 = vmatpush.msra.mxu0 0.0
        %651 = vmatpush.msra.mxu0 0.0
        %652 = vmatpush.msra.mxu0 0.0
        %653 = vmatpush.msra.mxu0 0.0
        %654 = vmatpush.msra.mxu0 0.0
        %655 = vmatpush.msra.mxu0 0.0
        %656 = vmatpush.msra.mxu0 0.0
        %657 = vmatpush.msra.mxu0 0.0
        %658 = vmatpush.msra.mxu0 0.0
        %659 = vmatpush.msra.mxu0 0.0
        %660 = vmatpush.msra.mxu0 0.0
        %661 = vmatpush.msra.mxu0 0.0
        %662 = vmatpush.msra.mxu0 0.0
        %663 = vmatpush.msra.mxu0 %v465
        %664 = vmatpush.msra.mxu0 %v458
        %665 = vmatmul.f32.gmra.mxu0 %v493
        %v666 = vpop.f32.mrf.mxu0
        %v667 = vadd.f32 %v474, %v666
        %668 = vmatmul.f32.gmra.mxu0 %v496
        %v669 = vpop.f32.mrf.mxu0
        %v670 = vadd.f32 %v479, %v669
        %671 = vmatmul.f32.gmra.mxu0 %v499
        %v672 = vpop.f32.mrf.mxu0
        %v673 = vadd.f32 %v484, %v672
        %674 = vmatmul.f32.gmra.mxu0 %v502
        %v675 = vpop.f32.mrf.mxu0
        %v676 = vadd.f32 %v489, %v675
        %677 = vdwg.mxu0
        %678 = vmatpush.msra.mxu0 0.0
        %679 = vmatpush.msra.mxu0 0.0
        %680 = vmatpush.msra.mxu0 0.0
        %681 = vmatpush.msra.mxu0 0.0
        %682 = vmatpush.msra.mxu0 0.0
        %683 = vmatpush.msra.mxu0 0.0
        %684 = vmatpush.msra.mxu0 0.0
        %685 = vmatpush.msra.mxu0 0.0
        %686 = vmatpush.msra.mxu0 0.0
        %687 = vmatpush.msra.mxu0 0.0
        %688 = vmatpush.msra.mxu0 0.0
        %689 = vmatpush.msra.mxu0 0.0
        %690 = vmatpush.msra.mxu0 0.0
        %691 = vmatpush.msra.mxu0 0.0
        %692 = vmatpush.msra.mxu0 %v466
        %693 = vmatpush.msra.mxu0 %v459
        %694 = vmatmul.f32.gmra.mxu0 %v493
        %v695 = vpop.f32.mrf.mxu0
        %v696 = vadd.f32 %v474, %v695
        %697 = vmatmul.f32.gmra.mxu0 %v496
        %v698 = vpop.f32.mrf.mxu0
        %v699 = vadd.f32 %v479, %v698
        %700 = vmatmul.f32.gmra.mxu0 %v499
        %v701 = vpop.f32.mrf.mxu0
        %v702 = vadd.f32 %v484, %v701
        %703 = vmatmul.f32.gmra.mxu0 %v502
        %v704 = vpop.f32.mrf.mxu0
        %v705 = vadd.f32 %v489, %v704
        %706 = vdwg.mxu0
        %v707 = vmax.f32 %v522, 0.0
        %v708 = vmax.f32 %v551, 0.0
        %v709 = vmax.f32 %v580, 0.0
        %v710 = vmax.f32 %v609, 0.0
        %v711 = vmax.f32 %v638, 0.0
        %v712 = vmax.f32 %v667, 0.0
        %v713 = vmax.f32 %v696, 0.0
        %v714 = vmax.f32 %v525, 0.0
        %v715 = vmax.f32 %v554, 0.0
        %v716 = vmax.f32 %v583, 0.0
        %v717 = vmax.f32 %v612, 0.0
        %v718 = vmax.f32 %v641, 0.0
        %v719 = vmax.f32 %v670, 0.0
        %v720 = vmax.f32 %v699, 0.0
        %v721 = vmax.f32 %v528, 0.0
        %v722 = vmax.f32 %v557, 0.0
        %v723 = vmax.f32 %v586, 0.0
        %v724 = vmax.f32 %v615, 0.0
        %v725 = vmax.f32 %v644, 0.0
        %v726 = vmax.f32 %v673, 0.0
        %v727 = vmax.f32 %v702, 0.0
        %v728 = vmax.f32 %v531, 0.0
        %v729 = vmax.f32 %v560, 0.0
        %v730 = vmax.f32 %v589, 0.0
        %v731 = vmax.f32 %v618, 0.0
        %v732 = vmax.f32 %v647, 0.0
        %v733 = vmax.f32 %v676, 0.0
        %v734 = vmax.f32 %v705, 0.0
        %763 = vrot.lane.b32.xlu0 %v707, 127
        %v764 = vpop.permute.xlu0 %763
        %765 = vrot.lane.b32.xlu0 %v708, 127
        %v766 = vpop.permute.xlu0 %765
        %767 = vrot.lane.b32.xlu0 %v709, 127
        %v768 = vpop.permute.xlu0 %767
        %769 = vrot.lane.b32.xlu0 %v710, 127
        %v770 = vpop.permute.xlu0 %769
        %771 = vrot.lane.b32.xlu0 %v711, 127
        %v772 = vpop.permute.xlu0 %771
        %773 = vrot.lane.b32.xlu0 %v712, 127
        %v774 = vpop.permute.xlu0 %773
        %775 = vrot.lane.b32.xlu0 %v713, 127
        %v776 = vpop.permute.xlu0 %775
        %777 = vrot.lane.b32.xlu0 %v714, 127
        %v778 = vpop.permute.xlu0 %777
        %779 = vrot.lane.b32.xlu0 %v715, 127
        %v780 = vpop.permute.xlu0 %779
        %781 = vrot.lane.b32.xlu0 %v716, 127
        %v782 = vpop.permute.xlu0 %781
        %783 = vrot.lane.b32.xlu0 %v717, 127
        %v784 = vpop.permute.xlu0 %783
        %785 = vrot.lane.b32.xlu0 %v718, 127
        %v786 = vpop.permute.xlu0 %785
        %787 = vrot.lane.b32.xlu0 %v719, 127
        %v788 = vpop.permute.xlu0 %787
        %789 = vrot.lane.b32.xlu0 %v720, 127
        %v790 = vpop.permute.xlu0 %789
        %791 = vrot.lane.b32.xlu0 %v721, 127
        %v792 = vpop.permute.xlu0 %791
        %793 = vrot.lane.b32.xlu0 %v722, 127
        %v794 = vpop.permute.xlu0 %793
        %795 = vrot.lane.b32.xlu0 %v723, 127
        %v796 = vpop.permute.xlu0 %795
        %797 = vrot.lane.b32.xlu0 %v724, 127
        %v798 = vpop.permute.xlu0 %797
        %799 = vrot.lane.b32.xlu0 %v725, 127
        %v800 = vpop.permute.xlu0 %799
        %801 = vrot.lane.b32.xlu0 %v726, 127
        %v802 = vpop.permute.xlu0 %801
        %803 = vrot.lane.b32.xlu0 %v727, 127
        %v804 = vpop.permute.xlu0 %803
        %805 = vrot.lane.b32.xlu0 %v728, 127
        %v806 = vpop.permute.xlu0 %805
        %807 = vrot.lane.b32.xlu0 %v729, 127
        %v808 = vpop.permute.xlu0 %807
        %809 = vrot.lane.b32.xlu0 %v730, 127
        %v810 = vpop.permute.xlu0 %809
        %811 = vrot.lane.b32.xlu0 %v731, 127
        %v812 = vpop.permute.xlu0 %811
        %813 = vrot.lane.b32.xlu0 %v732, 127
        %v814 = vpop.permute.xlu0 %813
        %815 = vrot.lane.b32.xlu0 %v733, 127
        %v816 = vpop.permute.xlu0 %815
        %817 = vrot.lane.b32.xlu0 %v734, 127
        %v818 = vpop.permute.xlu0 %817
        %v819 = vsel %vm380, %v764, %v766
        %v820 = vsel %vm380, %v766, %v768
        %v821 = vsel %vm380, %v768, %v770
        %v822 = vsel %vm380, %v770, %v772
        %v823 = vsel %vm380, %v772, %v774
        %v824 = vsel %vm380, %v774, %v776
        %v825 = vsel %vm380, %v778, %v780
        %v826 = vsel %vm380, %v780, %v782
        %v827 = vsel %vm380, %v782, %v784
        %v828 = vsel %vm380, %v784, %v786
        %v829 = vsel %vm380, %v786, %v788
        %v830 = vsel %vm380, %v788, %v790
        %v831 = vsel %vm380, %v792, %v794
        %v832 = vsel %vm380, %v794, %v796
        %v833 = vsel %vm380, %v796, %v798
        %v834 = vsel %vm380, %v798, %v800
        %v835 = vsel %vm380, %v800, %v802
        %v836 = vsel %vm380, %v802, %v804
        %v837 = vsel %vm380, %v806, %v808
        %v838 = vsel %vm380, %v808, %v810
        %v839 = vsel %vm380, %v810, %v812
        %v840 = vsel %vm380, %v812, %v814
        %v841 = vsel %vm380, %v814, %v816
        %v842 = vsel %vm380, %v816, %v818
        %v871 = vmax.f32 %v707, %v819
        %v872 = vmax.f32 %v708, %v820
        %v873 = vmax.f32 %v709, %v821
        %v874 = vmax.f32 %v710, %v822
        %v875 = vmax.f32 %v711, %v823
        %v876 = vmax.f32 %v712, %v824
        %v877 = vmax.f32 %v713, %v776
        %v878 = vmax.f32 %v714, %v825
        %v879 = vmax.f32 %v715, %v826
        %v880 = vmax.f32 %v716, %v827
        %v881 = vmax.f32 %v717, %v828
        %v882 = vmax.f32 %v718, %v829
        %v883 = vmax.f32 %v719, %v830
        %v884 = vmax.f32 %v720, %v790
        %v885 = vmax.f32 %v721, %v831
        %v886 = vmax.f32 %v722, %v832
        %v887 = vmax.f32 %v723, %v833
        %v888 = vmax.f32 %v724, %v834
        %v889 = vmax.f32 %v725, %v835
        %v890 = vmax.f32 %v726, %v836
        %v891 = vmax.f32 %v727, %v804
        %v892 = vmax.f32 %v728, %v837
        %v893 = vmax.f32 %v729, %v838
        %v894 = vmax.f32 %v730, %v839
        %v895 = vmax.f32 %v731, %v840
        %v896 = vmax.f32 %v732, %v841
        %v897 = vmax.f32 %v733, %v842
        %v898 = vmax.f32 %v734, %v818
        %927 = vrot.lane.b32.xlu0 %v871, 96
        %v928 = vpop.permute.xlu0 %927
        %929 = vrot.lane.b32.xlu0 %v872, 96
        %v930 = vpop.permute.xlu0 %929
        %931 = vrot.lane.b32.xlu0 %v873, 96
        %v932 = vpop.permute.xlu0 %931
        %933 = vrot.lane.b32.xlu0 %v874, 96
        %v934 = vpop.permute.xlu0 %933
        %935 = vrot.lane.b32.xlu0 %v875, 96
        %v936 = vpop.permute.xlu0 %935
        %937 = vrot.lane.b32.xlu0 %v876, 96
        %v938 = vpop.permute.xlu0 %937
        %939 = vrot.lane.b32.xlu0 %v877, 96
        %v940 = vpop.permute.xlu0 %939
        %941 = vrot.lane.b32.xlu0 %v878, 96
        %v942 = vpop.permute.xlu0 %941
        %943 = vrot.lane.b32.xlu0 %v879, 96
        %v944 = vpop.permute.xlu0 %943
        %945 = vrot.lane.b32.xlu0 %v880, 96
        %v946 = vpop.permute.xlu0 %945
        %947 = vrot.lane.b32.xlu0 %v881, 96
        %v948 = vpop.permute.xlu0 %947
        %949 = vrot.lane.b32.xlu0 %v882, 96
        %v950 = vpop.permute.xlu0 %949
        %951 = vrot.lane.b32.xlu0 %v883, 96
        %v952 = vpop.permute.xlu0 %951
        %953 = vrot.lane.b32.xlu0 %v884, 96
        %v954 = vpop.permute.xlu0 %953
        %955 = vrot.lane.b32.xlu0 %v885, 96
        %v956 = vpop.permute.xlu0 %955
        %957 = vrot.lane.b32.xlu0 %v886, 96
        %v958 = vpop.permute.xlu0 %957
        %959 = vrot.lane.b32.xlu0 %v887, 96
        %v960 = vpop.permute.xlu0 %959
        %961 = vrot.lane.b32.xlu0 %v888, 96
        %v962 = vpop.permute.xlu0 %961
        %963 = vrot.lane.b32.xlu0 %v889, 96
        %v964 = vpop.permute.xlu0 %963
        %965 = vrot.lane.b32.xlu0 %v890, 96
        %v966 = vpop.permute.xlu0 %965
        %967 = vrot.lane.b32.xlu0 %v891, 96
        %v968 = vpop.permute.xlu0 %967
        %969 = vrot.lane.b32.xlu0 %v892, 96
        %v970 = vpop.permute.xlu0 %969
        %971 = vrot.lane.b32.xlu0 %v893, 96
        %v972 = vpop.permute.xlu0 %971
        %973 = vrot.lane.b32.xlu0 %v894, 96
        %v974 = vpop.permute.xlu0 %973
        %975 = vrot.lane.b32.xlu0 %v895, 96
        %v976 = vpop.permute.xlu0 %975
        %977 = vrot.lane.b32.xlu0 %v896, 96
        %v978 = vpop.permute.xlu0 %977
        %979 = vrot.lane.b32.xlu0 %v897, 96
        %v980 = vpop.permute.xlu0 %979
        %981 = vrot.lane.b32.xlu0 %v898, 96
        %v982 = vpop.permute.xlu0 %981
        %v983 = vsel %vm398, %v928, %v930
        %v984 = vsel %vm398, %v930, %v932
        %v985 = vsel %vm398, %v932, %v934
        %v986 = vsel %vm398, %v934, %v936
        %v987 = vsel %vm398, %v936, %v938
        %v988 = vsel %vm398, %v938, %v940
        %v989 = vsel %vm398, %v942, %v944
        %v990 = vsel %vm398, %v944, %v946
        %v991 = vsel %vm398, %v946, %v948
        %v992 = vsel %vm398, %v948, %v950
        %v993 = vsel %vm398, %v950, %v952
        %v994 = vsel %vm398, %v952, %v954
        %v995 = vsel %vm398, %v956, %v958
        %v996 = vsel %vm398, %v958, %v960
        %v997 = vsel %vm398, %v960, %v962
        %v998 = vsel %vm398, %v962, %v964
        %v999 = vsel %vm398, %v964, %v966
        %v1000 = vsel %vm398, %v966, %v968
        %v1001 = vsel %vm398, %v970, %v972
        %v1002 = vsel %vm398, %v972, %v974
        %v1003 = vsel %vm398, %v974, %v976
        %v1004 = vsel %vm398, %v976, %v978
        %v1005 = vsel %vm398, %v978, %v980
        %v1006 = vsel %vm398, %v980, %v982
        %v1035 = vmax.f32 %v871, %v983
        %v1036 = vmax.f32 %v872, %v984
        %v1037 = vmax.f32 %v873, %v985
        %v1038 = vmax.f32 %v874, %v986
        %v1039 = vmax.f32 %v875, %v987
        %v1040 = vmax.f32 %v876, %v988
        %v1041 = vmax.f32 %v877, %v940
        %v1042 = vmax.f32 %v878, %v989
        %v1043 = vmax.f32 %v879, %v990
        %v1044 = vmax.f32 %v880, %v991
        %v1045 = vmax.f32 %v881, %v992
        %v1046 = vmax.f32 %v882, %v993
        %v1047 = vmax.f32 %v883, %v994
        %v1048 = vmax.f32 %v884, %v954
        %v1049 = vmax.f32 %v885, %v995
        %v1050 = vmax.f32 %v886, %v996
        %v1051 = vmax.f32 %v887, %v997
        %v1052 = vmax.f32 %v888, %v998
        %v1053 = vmax.f32 %v889, %v999
        %v1054 = vmax.f32 %v890, %v1000
        %v1055 = vmax.f32 %v891, %v968
        %v1056 = vmax.f32 %v892, %v1001
        %v1057 = vmax.f32 %v893, %v1002
        %v1058 = vmax.f32 %v894, %v1003
        %v1059 = vmax.f32 %v895, %v1004
        %v1060 = vmax.f32 %v896, %v1005
        %v1061 = vmax.f32 %v897, %v1006
        %v1062 = vmax.f32 %v898, %v982
        %v1063 = vpack.c.bf16 %v1042, %v1035
        %v1064 = vpack.c.bf16 %v1043, %v1036
        %v1065 = vpack.c.bf16 %v1044, %v1037
        %v1066 = vpack.c.bf16 %v1045, %v1038
        %v1067 = vpack.c.bf16 %v1046, %v1039
        %v1068 = vpack.c.bf16 %v1047, %v1040
        %v1069 = vpack.c.bf16 %v1048, %v1041
        %v1070 = vpack.c.bf16 %v1056, %v1049
        %v1071 = vpack.c.bf16 %v1057, %v1050
        %v1072 = vpack.c.bf16 %v1058, %v1051
        %v1073 = vpack.c.bf16 %v1059, %v1052
        %v1074 = vpack.c.bf16 %v1060, %v1053
        %v1075 = vpack.c.bf16 %v1061, %v1054
        %v1076 = vpack.c.bf16 %v1062, %v1055
        %v1077 = vld [vmem:[%s3] sm:$0xff]
        %v1078 = vld [vmem:[%s3 + $0x8] sm:$0xf]
        %v1079 = vld [vmem:[%s3 + $0xc] sm:$0xff]
        %v1080 = vld [vmem:[%s3 + $0x14] sm:$0xf]
        %v1081 = vld [vmem:[%s3 + $0x18] sm:$0xff]
        %v1082 = vld [vmem:[%s3 + $0x20] sm:$0xf]
        %v1083 = vld [vmem:[%s3 + $0x24] sm:$0xff]
        %v1084 = vld [vmem:[%s3 + $0x2c] sm:$0xf]
        %v1085 = vld [vmem:[%s3 + $0x30] sm:$0xff]
        %v1086 = vld [vmem:[%s3 + $0x38] sm:$0xf]
        %v1087 = vld [vmem:[%s3 + $0x3c] sm:$0xff]
        %v1088 = vld [vmem:[%s3 + $0x44] sm:$0xf]
        %v1089 = vld [vmem:[%s3 + $0x48] sm:$0xff]
        %v1090 = vld [vmem:[%s3 + $0x50] sm:$0xf]
        %v1091 = vld [vmem:[%s3 + $0x54] sm:$0xff]
        %v1092 = vld [vmem:[%s3 + $0x5c] sm:$0xf]
        %v1093 = vld [vmem:[%s3 + $0x60] sm:$0xff]
        %v1094 = vld [vmem:[%s3 + $0x68] sm:$0xf]
        %v1095 = vld [vmem:[%s3 + $0x6c] sm:$0xff]
        %v1096 = vld [vmem:[%s3 + $0x74] sm:$0xf]
        %v1097 = vld [vmem:[%s3 + $0x78] sm:$0xff]
        %v1098 = vld [vmem:[%s3 + $0x80] sm:$0xf]
        %v1099 = vld [vmem:[%s3 + $0x84] sm:$0xff]
        %v1100 = vld [vmem:[%s3 + $0x8c] sm:$0xf]
        %v1101 = vld [vmem:[%s3 + $0x90] sm:$0xff]
        %v1102 = vld [vmem:[%s3 + $0x98] sm:$0xf]
        %v1103 = vld [vmem:[%s3 + $0x9c] sm:$0xff]
        %v1104 = vld [vmem:[%s3 + $0xa4] sm:$0xf]
        %v1105 = vld [vmem:[%s3 + $0xa8] sm:$0xff]
        %v1106 = vld [vmem:[%s3 + $0xb0] sm:$0xf]
        %v1107 = vld [vmem:[%s3 + $0xb4] sm:$0xff]
        %v1108 = vld [vmem:[%s3 + $0xbc] sm:$0xf]
        %v1109 = vld [vmem:[%s3 + $0xc0] sm:$0xff]
        %v1110 = vld [vmem:[%s3 + $0xc8] sm:$0xf]
        %v1111 = vld [vmem:[%s3 + $0xcc] sm:$0xff]
        %v1112 = vld [vmem:[%s3 + $0xd4] sm:$0xf]
        %v1113 = vld [vmem:[%s3 + $0xd8] sm:$0xff]
        %v1114 = vld [vmem:[%s3 + $0xe0] sm:$0xf]
        %v1115 = vld [vmem:[%s3 + $0xe4] sm:$0xff]
        %v1116 = vld [vmem:[%s3 + $0xec] sm:$0xf]
        %v1117 = vld [vmem:[%s3 + $0xf0] sm:$0xff]
        %v1118 = vld [vmem:[%s3 + $0xf8] sm:$0xf]
        %v1119 = vld [vmem:[%s3 + $0xfc] sm:$0xff]
        %v1120 = vld [vmem:[%s3 + $0x104] sm:$0xf]
        %v1121 = vld [vmem:[%s3 + $0x108] sm:$0xff]
        %v1122 = vld [vmem:[%s3 + $0x110] sm:$0xf]
        %v1123 = vld [vmem:[%s3 + $0x114] sm:$0xff]
        %v1124 = vld [vmem:[%s3 + $0x11c] sm:$0xf]
        %v1125 = vld [vmem:[%s3 + $0x120] sm:$0xff]
        %v1126 = vld [vmem:[%s3 + $0x128] sm:$0xf]
        %v1127 = vld [vmem:[%s3 + $0x12c] sm:$0xff]
        %v1128 = vld [vmem:[%s3 + $0x134] sm:$0xf]
        %v1129 = vld [vmem:[%s3 + $0x138] sm:$0xff]
        %v1130 = vld [vmem:[%s3 + $0x140] sm:$0xf]
        %v1131 = vld [vmem:[%s3 + $0x144] sm:$0xff]
        %v1132 = vld [vmem:[%s3 + $0x14c] sm:$0xf]
        %v1133 = vld [vmem:[%s3 + $0x150] sm:$0xff]
        %v1134 = vld [vmem:[%s3 + $0x158] sm:$0xf]
        %v1135 = vld [vmem:[%s3 + $0x15c] sm:$0xff]
        %v1136 = vld [vmem:[%s3 + $0x164] sm:$0xf]
        %v1137 = vld [vmem:[%s3 + $0x168] sm:$0xff]
        %v1138 = vld [vmem:[%s3 + $0x170] sm:$0xf]
        %v1139 = vld [vmem:[%s3 + $0x174] sm:$0xff]
        %v1140 = vld [vmem:[%s3 + $0x17c] sm:$0xf]
        %v1141 = vld [vmem:[%s3 + $0x180] sm:$0xff]
        %v1142 = vld [vmem:[%s3 + $0x188] sm:$0xf]
        %v1143 = vld [vmem:[%s3 + $0x18c] sm:$0xff]
        %v1144 = vld [vmem:[%s3 + $0x194] sm:$0xf]
        %v1145 = vld [vmem:[%s3 + $0x198] sm:$0xff]
        %v1146 = vld [vmem:[%s3 + $0x1a0] sm:$0xf]
        %v1147 = vld [vmem:[%s3 + $0x1a4] sm:$0xff]
        %v1148 = vld [vmem:[%s3 + $0x1ac] sm:$0xf]
        %v1149 = vld [vmem:[%s3 + $0x1b0] sm:$0xff]
        %v1150 = vld [vmem:[%s3 + $0x1b8] sm:$0xf]
        %v1151 = vld [vmem:[%s3 + $0x1bc] sm:$0xff]
        %v1152 = vld [vmem:[%s3 + $0x1c4] sm:$0xf]
        %v1153 = vld [vmem:[%s3 + $0x1c8] sm:$0xff]
        %v1154 = vld [vmem:[%s3 + $0x1d0] sm:$0xf]
        %v1155 = vld [vmem:[%s3 + $0x1d4] sm:$0xff]
        %v1156 = vld [vmem:[%s3 + $0x1dc] sm:$0xf]
        %v1157 = vld [vmem:[%s3 + $0x1e0] sm:$0xff]
        %v1158 = vld [vmem:[%s3 + $0x1e8] sm:$0xf]
        %v1159 = vld [vmem:[%s3 + $0x1ec] sm:$0xff]
        %v1160 = vld [vmem:[%s3 + $0x1f4] sm:$0xf]
        %v1161 = vld [vmem:[%s3 + $0x1f8] sm:$0xff]
        %v1162 = vld [vmem:[%s3 + $0x200] sm:$0xf]
        %v1163 = vld [vmem:[%s3 + $0x204] sm:$0xff]
        %v1164 = vld [vmem:[%s3 + $0x20c] sm:$0xf]
        %v1165 = vld [vmem:[%s3 + $0x210] sm:$0xff]
        %v1166 = vld [vmem:[%s3 + $0x218] sm:$0xf]
        %v1167 = vld [vmem:[%s3 + $0x21c] sm:$0xff]
        %v1168 = vld [vmem:[%s3 + $0x224] sm:$0xf]
        %v1169 = vld [vmem:[%s3 + $0x228] sm:$0xff]
        %v1170 = vld [vmem:[%s3 + $0x230] sm:$0xf]
        %v1171 = vld [vmem:[%s3 + $0x234] sm:$0xff]
        %v1172 = vld [vmem:[%s3 + $0x23c] sm:$0xf]
        %v1173 = vld [vmem:[%s3 + $0x240] sm:$0xff]
        %v1174 = vld [vmem:[%s3 + $0x248] sm:$0xf]
        %v1175 = vld [vmem:[%s3 + $0x24c] sm:$0xff]
        %v1176 = vld [vmem:[%s3 + $0x254] sm:$0xf]
        %v1177 = vld [vmem:[%s3 + $0x258] sm:$0xff]
        %v1178 = vld [vmem:[%s3 + $0x260] sm:$0xf]
        %v1179 = vld [vmem:[%s3 + $0x264] sm:$0xff]
        %v1180 = vld [vmem:[%s3 + $0x26c] sm:$0xf]
        %v1181 = vld [vmem:[%s3 + $0x270] sm:$0xff]
        %v1182 = vld [vmem:[%s3 + $0x278] sm:$0xf]
        %v1183 = vld [vmem:[%s3 + $0x27c] sm:$0xff]
        %v1184 = vld [vmem:[%s3 + $0x284] sm:$0xf]
        %v1185 = vld [vmem:[%s3 + $0x288] sm:$0xff]
        %v1186 = vld [vmem:[%s3 + $0x290] sm:$0xf]
        %v1187 = vld [vmem:[%s3 + $0x294] sm:$0xff]
        %v1188 = vld [vmem:[%s3 + $0x29c] sm:$0xf]
        %v1189 = vld [vmem:[%s3 + $0x2a0] sm:$0xff]
        %v1190 = vld [vmem:[%s3 + $0x2a8] sm:$0xf]
        %v1191 = vld [vmem:[%s3 + $0x2ac] sm:$0xff]
        %v1192 = vld [vmem:[%s3 + $0x2b4] sm:$0xf]
        %v1193 = vld [vmem:[%s3 + $0x2b8] sm:$0xff]
        %v1194 = vld [vmem:[%s3 + $0x2c0] sm:$0xf]
        %v1195 = vld [vmem:[%s3 + $0x2c4] sm:$0xff]
        %v1196 = vld [vmem:[%s3 + $0x2cc] sm:$0xf]
        %v1197 = vld [vmem:[%s3 + $0x2d0] sm:$0xff]
        %v1198 = vld [vmem:[%s3 + $0x2d8] sm:$0xf]
        %v1199 = vld [vmem:[%s3 + $0x2dc] sm:$0xff]
        %v1200 = vld [vmem:[%s3 + $0x2e4] sm:$0xf]
        %v1201 = vld [vmem:[%s3 + $0x2e8] sm:$0xff]
        %v1202 = vld [vmem:[%s3 + $0x2f0] sm:$0xf]
        %v1203 = vld [vmem:[%s3 + $0x2f4] sm:$0xff]
        %v1204 = vld [vmem:[%s3 + $0x2fc] sm:$0xf]
        %v1205 = vld [vmem:[%s3 + $0x300] sm:$0xff]
        %v1206 = vld [vmem:[%s3 + $0x308] sm:$0xf]
        %v1207 = vld [vmem:[%s3 + $0x30c] sm:$0xff]
        %v1208 = vld [vmem:[%s3 + $0x314] sm:$0xf]
        %v1209 = vld [vmem:[%s3 + $0x318] sm:$0xff]
        %v1210 = vld [vmem:[%s3 + $0x320] sm:$0xf]
        %v1211 = vld [vmem:[%s3 + $0x324] sm:$0xff]
        %v1212 = vld [vmem:[%s3 + $0x32c] sm:$0xf]
        %v1213 = vld [vmem:[%s3 + $0x330] sm:$0xff]
        %v1214 = vld [vmem:[%s3 + $0x338] sm:$0xf]
        %v1215 = vld [vmem:[%s3 + $0x33c] sm:$0xff]
        %v1216 = vld [vmem:[%s3 + $0x344] sm:$0xf]
        %v1217 = vld [vmem:[%s3 + $0x348] sm:$0xff]
        %v1218 = vld [vmem:[%s3 + $0x350] sm:$0xf]
        %v1219 = vld [vmem:[%s3 + $0x354] sm:$0xff]
        %v1220 = vld [vmem:[%s3 + $0x35c] sm:$0xf]
        %v1221 = vld [vmem:[%s3 + $0x360] sm:$0xff]
        %v1222 = vld [vmem:[%s3 + $0x368] sm:$0xf]
        %v1223 = vld [vmem:[%s3 + $0x36c] sm:$0xff]
        %v1224 = vld [vmem:[%s3 + $0x374] sm:$0xf]
        %v1225 = vld [vmem:[%s3 + $0x378] sm:$0xff]
        %v1226 = vld [vmem:[%s3 + $0x380] sm:$0xf]
        %v1227 = vld [vmem:[%s3 + $0x384] sm:$0xff]
        %v1228 = vld [vmem:[%s3 + $0x38c] sm:$0xf]
        %v1229 = vld [vmem:[%s3 + $0x390] sm:$0xff]
        %v1230 = vld [vmem:[%s3 + $0x398] sm:$0xf]
        %v1231 = vld [vmem:[%s3 + $0x39c] sm:$0xff]
        %v1232 = vld [vmem:[%s3 + $0x3a4] sm:$0xf]
        %v1233 = vld [vmem:[%s3 + $0x3a8] sm:$0xff]
        %v1234 = vld [vmem:[%s3 + $0x3b0] sm:$0xf]
        %v1235 = vld [vmem:[%s3 + $0x3b4] sm:$0xff]
        %v1236 = vld [vmem:[%s3 + $0x3bc] sm:$0xf]
        %v1237 = vld [vmem:[%s3 + $0x3c0] sm:$0xff]
        %v1238 = vld [vmem:[%s3 + $0x3c8] sm:$0xf]
        %v1239 = vld [vmem:[%s3 + $0x3cc] sm:$0xff]
        %v1240 = vld [vmem:[%s3 + $0x3d4] sm:$0xf]
        %v1241 = vld [vmem:[%s3 + $0x3d8] sm:$0xff]
        %v1242 = vld [vmem:[%s3 + $0x3e0] sm:$0xf]
        %v1243 = vld [vmem:[%s3 + $0x3e4] sm:$0xff]
        %v1244 = vld [vmem:[%s3 + $0x3ec] sm:$0xf]
        %v1245 = vld [vmem:[%s3 + $0x3f0] sm:$0xff]
        %v1246 = vld [vmem:[%s3 + $0x3f8] sm:$0xf]
        %v1247 = vld [vmem:[%s3 + $0x3fc] sm:$0xff]
        %v1248 = vld [vmem:[%s3 + $0x404] sm:$0xf]
        %v1249 = vld [vmem:[%s3 + $0x408] sm:$0xff]
        %v1250 = vld [vmem:[%s3 + $0x410] sm:$0xf]
        %v1251 = vld [vmem:[%s3 + $0x414] sm:$0xff]
        %v1252 = vld [vmem:[%s3 + $0x41c] sm:$0xf]
        %v1253 = vld [vmem:[%s3 + $0x420] sm:$0xff]
        %v1254 = vld [vmem:[%s3 + $0x428] sm:$0xf]
        %v1255 = vld [vmem:[%s3 + $0x42c] sm:$0xff]
        %v1256 = vld [vmem:[%s3 + $0x434] sm:$0xf]
        %v1257 = vld [vmem:[%s3 + $0x438] sm:$0xff]
        %v1258 = vld [vmem:[%s3 + $0x440] sm:$0xf]
        %v1259 = vld [vmem:[%s3 + $0x444] sm:$0xff]
        %v1260 = vld [vmem:[%s3 + $0x44c] sm:$0xf]
        %v1261 = vld [vmem:[%s3 + $0x450] sm:$0xff]
        %v1262 = vld [vmem:[%s3 + $0x458] sm:$0xf]
        %v1263 = vld [vmem:[%s3 + $0x45c] sm:$0xff]
        %v1264 = vld [vmem:[%s3 + $0x464] sm:$0xf]
        %v1265 = vld [vmem:[%s3 + $0x468] sm:$0xff]
        %v1266 = vld [vmem:[%s3 + $0x470] sm:$0xf]
        %v1267 = vld [vmem:[%s3 + $0x474] sm:$0xff]
        %v1268 = vld [vmem:[%s3 + $0x47c] sm:$0xf]
        %v1269 = vld [vmem:[%s3 + $0x480] sm:$0xff]
        %v1270 = vld [vmem:[%s3 + $0x488] sm:$0xf]
        %v1271 = vld [vmem:[%s3 + $0x48c] sm:$0xff]
        %v1272 = vld [vmem:[%s3 + $0x494] sm:$0xf]
        %v1273 = vld [vmem:[%s3 + $0x498] sm:$0xff]
        %v1274 = vld [vmem:[%s3 + $0x4a0] sm:$0xf]
        %v1275 = vld [vmem:[%s3 + $0x4a4] sm:$0xff]
        %v1276 = vld [vmem:[%s3 + $0x4ac] sm:$0xf]
        %v1277 = vld [vmem:[%s3 + $0x4b0] sm:$0xff]
        %v1278 = vld [vmem:[%s3 + $0x4b8] sm:$0xf]
        %v1279 = vld [vmem:[%s3 + $0x4bc] sm:$0xff]
        %v1280 = vld [vmem:[%s3 + $0x4c4] sm:$0xf]
        %v1281 = vld [vmem:[%s3 + $0x4c8] sm:$0xff]
        %v1282 = vld [vmem:[%s3 + $0x4d0] sm:$0xf]
        %v1283 = vld [vmem:[%s3 + $0x4d4] sm:$0xff]
        %v1284 = vld [vmem:[%s3 + $0x4dc] sm:$0xf]
        %v1285 = vld [vmem:[%s3 + $0x4e0] sm:$0xff]
        %v1286 = vld [vmem:[%s3 + $0x4e8] sm:$0xf]
        %v1287 = vld [vmem:[%s3 + $0x4ec] sm:$0xff]
        %v1288 = vld [vmem:[%s3 + $0x4f4] sm:$0xf]
        %v1289 = vld [vmem:[%s3 + $0x4f8] sm:$0xff]
        %v1290 = vld [vmem:[%s3 + $0x500] sm:$0xf]
        %v1291 = vld [vmem:[%s3 + $0x504] sm:$0xff]
        %v1292 = vld [vmem:[%s3 + $0x50c] sm:$0xf]
        %v1509 = vunpack.c.l.b16 %v1077
        %v1510 = vunpack.c.h.b16 %v1077
        %v1511 = vunpack.c.l.b16 %v1078
        %v1512 = vunpack.c.l.b16 %v1079
        %v1513 = vunpack.c.h.b16 %v1079
        %v1514 = vunpack.c.l.b16 %v1080
        %v1515 = vunpack.c.l.b16 %v1081
        %v1516 = vunpack.c.h.b16 %v1081
        %v1517 = vunpack.c.l.b16 %v1082
        %v1518 = vunpack.c.l.b16 %v1083
        %v1519 = vunpack.c.h.b16 %v1083
        %v1520 = vunpack.c.l.b16 %v1084
        %v1521 = vunpack.c.l.b16 %v1085
        %v1522 = vunpack.c.h.b16 %v1085
        %v1523 = vunpack.c.l.b16 %v1086
        %v1524 = vunpack.c.l.b16 %v1087
        %v1525 = vunpack.c.h.b16 %v1087
        %v1526 = vunpack.c.l.b16 %v1088
        %v1527 = vunpack.c.l.b16 %v1089
        %v1528 = vunpack.c.h.b16 %v1089
        %v1529 = vunpack.c.l.b16 %v1090
        %v1530 = vunpack.c.l.b16 %v1091
        %v1531 = vunpack.c.h.b16 %v1091
        %v1532 = vunpack.c.l.b16 %v1092
        %v1533 = vunpack.c.l.b16 %v1093
        %v1534 = vunpack.c.h.b16 %v1093
        %v1535 = vunpack.c.l.b16 %v1094
        %v1536 = vunpack.c.l.b16 %v1095
        %v1537 = vunpack.c.h.b16 %v1095
        %v1538 = vunpack.c.l.b16 %v1096
        %v1539 = vunpack.c.l.b16 %v1097
        %v1540 = vunpack.c.h.b16 %v1097
        %v1541 = vunpack.c.l.b16 %v1098
        %v1542 = vunpack.c.l.b16 %v1099
        %v1543 = vunpack.c.h.b16 %v1099
        %v1544 = vunpack.c.l.b16 %v1100
        %v1545 = vunpack.c.l.b16 %v1101
        %v1546 = vunpack.c.h.b16 %v1101
        %v1547 = vunpack.c.l.b16 %v1102
        %v1548 = vunpack.c.l.b16 %v1103
        %v1549 = vunpack.c.h.b16 %v1103
        %v1550 = vunpack.c.l.b16 %v1104
        %v1551 = vunpack.c.l.b16 %v1105
        %v1552 = vunpack.c.h.b16 %v1105
        %v1553 = vunpack.c.l.b16 %v1106
        %v1554 = vunpack.c.l.b16 %v1107
        %v1555 = vunpack.c.h.b16 %v1107
        %v1556 = vunpack.c.l.b16 %v1108
        %v1557 = vunpack.c.l.b16 %v1109
        %v1558 = vunpack.c.h.b16 %v1109
        %v1559 = vunpack.c.l.b16 %v1110
        %v1560 = vunpack.c.l.b16 %v1111
        %v1561 = vunpack.c.h.b16 %v1111
        %v1562 = vunpack.c.l.b16 %v1112
        %v1563 = vunpack.c.l.b16 %v1113
        %v1564 = vunpack.c.h.b16 %v1113
        %v1565 = vunpack.c.l.b16 %v1114
        %v1566 = vunpack.c.l.b16 %v1115
        %v1567 = vunpack.c.h.b16 %v1115
        %v1568 = vunpack.c.l.b16 %v1116
        %v1569 = vunpack.c.l.b16 %v1117
        %v1570 = vunpack.c.h.b16 %v1117
        %v1571 = vunpack.c.l.b16 %v1118
        %v1572 = vunpack.c.l.b16 %v1119
        %v1573 = vunpack.c.h.b16 %v1119
        %v1574 = vunpack.c.l.b16 %v1120
        %v1575 = vunpack.c.l.b16 %v1121
        %v1576 = vunpack.c.h.b16 %v1121
        %v1577 = vunpack.c.l.b16 %v1122
        %v1578 = vunpack.c.l.b16 %v1123
        %v1579 = vunpack.c.h.b16 %v1123
        %v1580 = vunpack.c.l.b16 %v1124
        %v1581 = vunpack.c.l.b16 %v1125
        %v1582 = vunpack.c.h.b16 %v1125
        %v1583 = vunpack.c.l.b16 %v1126
        %v1584 = vunpack.c.l.b16 %v1127
        %v1585 = vunpack.c.h.b16 %v1127
        %v1586 = vunpack.c.l.b16 %v1128
        %v1587 = vunpack.c.l.b16 %v1129
        %v1588 = vunpack.c.h.b16 %v1129
        %v1589 = vunpack.c.l.b16 %v1130
        %v1590 = vunpack.c.l.b16 %v1131
        %v1591 = vunpack.c.h.b16 %v1131
        %v1592 = vunpack.c.l.b16 %v1132
        %v1593 = vunpack.c.l.b16 %v1133
        %v1594 = vunpack.c.h.b16 %v1133
        %v1595 = vunpack.c.l.b16 %v1134
        %v1596 = vunpack.c.l.b16 %v1135
        %v1597 = vunpack.c.h.b16 %v1135
        %v1598 = vunpack.c.l.b16 %v1136
        %v1599 = vunpack.c.l.b16 %v1137
        %v1600 = vunpack.c.h.b16 %v1137
        %v1601 = vunpack.c.l.b16 %v1138
        %v1602 = vunpack.c.l.b16 %v1139
        %v1603 = vunpack.c.h.b16 %v1139
        %v1604 = vunpack.c.l.b16 %v1140
        %v1605 = vunpack.c.l.b16 %v1141
        %v1606 = vunpack.c.h.b16 %v1141
        %v1607 = vunpack.c.l.b16 %v1142
        %v1608 = vunpack.c.l.b16 %v1143
        %v1609 = vunpack.c.h.b16 %v1143
        %v1610 = vunpack.c.l.b16 %v1144
        %v1611 = vunpack.c.l.b16 %v1145
        %v1612 = vunpack.c.h.b16 %v1145
        %v1613 = vunpack.c.l.b16 %v1146
        %v1614 = vunpack.c.l.b16 %v1147
        %v1615 = vunpack.c.h.b16 %v1147
        %v1616 = vunpack.c.l.b16 %v1148
        %v1617 = vunpack.c.l.b16 %v1149
        %v1618 = vunpack.c.h.b16 %v1149
        %v1619 = vunpack.c.l.b16 %v1150
        %v1620 = vunpack.c.l.b16 %v1151
        %v1621 = vunpack.c.h.b16 %v1151
        %v1622 = vunpack.c.l.b16 %v1152
        %v1623 = vunpack.c.l.b16 %v1153
        %v1624 = vunpack.c.h.b16 %v1153
        %v1625 = vunpack.c.l.b16 %v1154
        %v1626 = vunpack.c.l.b16 %v1155
        %v1627 = vunpack.c.h.b16 %v1155
        %v1628 = vunpack.c.l.b16 %v1156
        %v1629 = vunpack.c.l.b16 %v1157
        %v1630 = vunpack.c.h.b16 %v1157
        %v1631 = vunpack.c.l.b16 %v1158
        %v1632 = vunpack.c.l.b16 %v1159
        %v1633 = vunpack.c.h.b16 %v1159
        %v1634 = vunpack.c.l.b16 %v1160
        %v1635 = vunpack.c.l.b16 %v1161
        %v1636 = vunpack.c.h.b16 %v1161
        %v1637 = vunpack.c.l.b16 %v1162
        %v1638 = vunpack.c.l.b16 %v1163
        %v1639 = vunpack.c.h.b16 %v1163
        %v1640 = vunpack.c.l.b16 %v1164
        %v1641 = vunpack.c.l.b16 %v1165
        %v1642 = vunpack.c.h.b16 %v1165
        %v1643 = vunpack.c.l.b16 %v1166
        %v1644 = vunpack.c.l.b16 %v1167
        %v1645 = vunpack.c.h.b16 %v1167
        %v1646 = vunpack.c.l.b16 %v1168
        %v1647 = vunpack.c.l.b16 %v1169
        %v1648 = vunpack.c.h.b16 %v1169
        %v1649 = vunpack.c.l.b16 %v1170
        %v1650 = vunpack.c.l.b16 %v1171
        %v1651 = vunpack.c.h.b16 %v1171
        %v1652 = vunpack.c.l.b16 %v1172
        %v1653 = vunpack.c.l.b16 %v1173
        %v1654 = vunpack.c.h.b16 %v1173
        %v1655 = vunpack.c.l.b16 %v1174
        %v1656 = vunpack.c.l.b16 %v1175
        %v1657 = vunpack.c.h.b16 %v1175
        %v1658 = vunpack.c.l.b16 %v1176
        %v1659 = vunpack.c.l.b16 %v1177
        %v1660 = vunpack.c.h.b16 %v1177
        %v1661 = vunpack.c.l.b16 %v1178
        %v1662 = vunpack.c.l.b16 %v1179
        %v1663 = vunpack.c.h.b16 %v1179
        %v1664 = vunpack.c.l.b16 %v1180
        %v1665 = vunpack.c.l.b16 %v1181
        %v1666 = vunpack.c.h.b16 %v1181
        %v1667 = vunpack.c.l.b16 %v1182
        %v1668 = vunpack.c.l.b16 %v1183
        %v1669 = vunpack.c.h.b16 %v1183
        %v1670 = vunpack.c.l.b16 %v1184
        %v1671 = vunpack.c.l.b16 %v1185
        %v1672 = vunpack.c.h.b16 %v1185
        %v1673 = vunpack.c.l.b16 %v1186
        %v1674 = vunpack.c.l.b16 %v1187
        %v1675 = vunpack.c.h.b16 %v1187
        %v1676 = vunpack.c.l.b16 %v1188
        %v1677 = vunpack.c.l.b16 %v1189
        %v1678 = vunpack.c.h.b16 %v1189
        %v1679 = vunpack.c.l.b16 %v1190
        %v1680 = vunpack.c.l.b16 %v1191
        %v1681 = vunpack.c.h.b16 %v1191
        %v1682 = vunpack.c.l.b16 %v1192
        %v1683 = vunpack.c.l.b16 %v1193
        %v1684 = vunpack.c.h.b16 %v1193
        %v1685 = vunpack.c.l.b16 %v1194
        %v1686 = vunpack.c.l.b16 %v1195
        %v1687 = vunpack.c.h.b16 %v1195
        %v1688 = vunpack.c.l.b16 %v1196
        %v1689 = vunpack.c.l.b16 %v1197
        %v1690 = vunpack.c.h.b16 %v1197
        %v1691 = vunpack.c.l.b16 %v1198
        %v1692 = vunpack.c.l.b16 %v1199
        %v1693 = vunpack.c.h.b16 %v1199
        %v1694 = vunpack.c.l.b16 %v1200
        %v1695 = vunpack.c.l.b16 %v1201
        %v1696 = vunpack.c.h.b16 %v1201
        %v1697 = vunpack.c.l.b16 %v1202
        %v1698 = vunpack.c.l.b16 %v1203
        %v1699 = vunpack.c.h.b16 %v1203
        %v1700 = vunpack.c.l.b16 %v1204
        %v1701 = vunpack.c.l.b16 %v1205
        %v1702 = vunpack.c.h.b16 %v1205
        %v1703 = vunpack.c.l.b16 %v1206
        %v1704 = vunpack.c.l.b16 %v1207
        %v1705 = vunpack.c.h.b16 %v1207
        %v1706 = vunpack.c.l.b16 %v1208
        %v1707 = vunpack.c.l.b16 %v1209
        %v1708 = vunpack.c.h.b16 %v1209
        %v1709 = vunpack.c.l.b16 %v1210
        %v1710 = vunpack.c.l.b16 %v1211
        %v1711 = vunpack.c.h.b16 %v1211
        %v1712 = vunpack.c.l.b16 %v1212
        %v1713 = vunpack.c.l.b16 %v1213
        %v1714 = vunpack.c.h.b16 %v1213
        %v1715 = vunpack.c.l.b16 %v1214
        %v1716 = vunpack.c.l.b16 %v1215
        %v1717 = vunpack.c.h.b16 %v1215
        %v1718 = vunpack.c.l.b16 %v1216
        %v1719 = vunpack.c.l.b16 %v1217
        %v1720 = vunpack.c.h.b16 %v1217
        %v1721 = vunpack.c.l.b16 %v1218
        %v1722 = vunpack.c.l.b16 %v1219
        %v1723 = vunpack.c.h.b16 %v1219
        %v1724 = vunpack.c.l.b16 %v1220
        %v1725 = vunpack.c.l.b16 %v1221
        %v1726 = vunpack.c.h.b16 %v1221
        %v1727 = vunpack.c.l.b16 %v1222
        %v1728 = vunpack.c.l.b16 %v1223
        %v1729 = vunpack.c.h.b16 %v1223
        %v1730 = vunpack.c.l.b16 %v1224
        %v1731 = vunpack.c.l.b16 %v1225
        %v1732 = vunpack.c.h.b16 %v1225
        %v1733 = vunpack.c.l.b16 %v1226
        %v1734 = vunpack.c.l.b16 %v1227
        %v1735 = vunpack.c.h.b16 %v1227
        %v1736 = vunpack.c.l.b16 %v1228
        %v1737 = vunpack.c.l.b16 %v1229
        %v1738 = vunpack.c.h.b16 %v1229
        %v1739 = vunpack.c.l.b16 %v1230
        %v1740 = vunpack.c.l.b16 %v1231
        %v1741 = vunpack.c.h.b16 %v1231
        %v1742 = vunpack.c.l.b16 %v1232
        %v1743 = vunpack.c.l.b16 %v1233
        %v1744 = vunpack.c.h.b16 %v1233
        %v1745 = vunpack.c.l.b16 %v1234
        %v1746 = vunpack.c.l.b16 %v1235
        %v1747 = vunpack.c.h.b16 %v1235
        %v1748 = vunpack.c.l.b16 %v1236
        %v1749 = vunpack.c.l.b16 %v1237
        %v1750 = vunpack.c.h.b16 %v1237
        %v1751 = vunpack.c.l.b16 %v1238
        %v1752 = vunpack.c.l.b16 %v1239
        %v1753 = vunpack.c.h.b16 %v1239
        %v1754 = vunpack.c.l.b16 %v1240
        %v1755 = vunpack.c.l.b16 %v1241
        %v1756 = vunpack.c.h.b16 %v1241
        %v1757 = vunpack.c.l.b16 %v1242
        %v1758 = vunpack.c.l.b16 %v1243
        %v1759 = vunpack.c.h.b16 %v1243
        %v1760 = vunpack.c.l.b16 %v1244
        %v1761 = vunpack.c.l.b16 %v1245
        %v1762 = vunpack.c.h.b16 %v1245
        %v1763 = vunpack.c.l.b16 %v1246
        %v1764 = vunpack.c.l.b16 %v1247
        %v1765 = vunpack.c.h.b16 %v1247
        %v1766 = vunpack.c.l.b16 %v1248
        %v1767 = vunpack.c.l.b16 %v1249
        %v1768 = vunpack.c.h.b16 %v1249
        %v1769 = vunpack.c.l.b16 %v1250
        %v1770 = vunpack.c.l.b16 %v1251
        %v1771 = vunpack.c.h.b16 %v1251
        %v1772 = vunpack.c.l.b16 %v1252
        %v1773 = vunpack.c.l.b16 %v1253
        %v1774 = vunpack.c.h.b16 %v1253
        %v1775 = vunpack.c.l.b16 %v1254
        %v1776 = vunpack.c.l.b16 %v1255
        %v1777 = vunpack.c.h.b16 %v1255
        %v1778 = vunpack.c.l.b16 %v1256
        %v1779 = vunpack.c.l.b16 %v1257
        %v1780 = vunpack.c.h.b16 %v1257
        %v1781 = vunpack.c.l.b16 %v1258
        %v1782 = vunpack.c.l.b16 %v1259
        %v1783 = vunpack.c.h.b16 %v1259
        %v1784 = vunpack.c.l.b16 %v1260
        %v1785 = vunpack.c.l.b16 %v1261
        %v1786 = vunpack.c.h.b16 %v1261
        %v1787 = vunpack.c.l.b16 %v1262
        %v1788 = vunpack.c.l.b16 %v1263
        %v1789 = vunpack.c.h.b16 %v1263
        %v1790 = vunpack.c.l.b16 %v1264
        %v1791 = vunpack.c.l.b16 %v1265
        %v1792 = vunpack.c.h.b16 %v1265
        %v1793 = vunpack.c.l.b16 %v1266
        %v1794 = vunpack.c.l.b16 %v1267
        %v1795 = vunpack.c.h.b16 %v1267
        %v1796 = vunpack.c.l.b16 %v1268
        %v1797 = vunpack.c.l.b16 %v1269
        %v1798 = vunpack.c.h.b16 %v1269
        %v1799 = vunpack.c.l.b16 %v1270
        %v1800 = vunpack.c.l.b16 %v1271
        %v1801 = vunpack.c.h.b16 %v1271
        %v1802 = vunpack.c.l.b16 %v1272
        %v1803 = vunpack.c.l.b16 %v1273
        %v1804 = vunpack.c.h.b16 %v1273
        %v1805 = vunpack.c.l.b16 %v1274
        %v1806 = vunpack.c.l.b16 %v1275
        %v1807 = vunpack.c.h.b16 %v1275
        %v1808 = vunpack.c.l.b16 %v1276
        %v1809 = vunpack.c.l.b16 %v1277
        %v1810 = vunpack.c.h.b16 %v1277
        %v1811 = vunpack.c.l.b16 %v1278
        %v1812 = vunpack.c.l.b16 %v1279
        %v1813 = vunpack.c.h.b16 %v1279
        %v1814 = vunpack.c.l.b16 %v1280
        %v1815 = vunpack.c.l.b16 %v1281
        %v1816 = vunpack.c.h.b16 %v1281
        %v1817 = vunpack.c.l.b16 %v1282
        %v1818 = vunpack.c.l.b16 %v1283
        %v1819 = vunpack.c.h.b16 %v1283
        %v1820 = vunpack.c.l.b16 %v1284
        %v1821 = vunpack.c.l.b16 %v1285
        %v1822 = vunpack.c.h.b16 %v1285
        %v1823 = vunpack.c.l.b16 %v1286
        %v1824 = vunpack.c.l.b16 %v1287
        %v1825 = vunpack.c.h.b16 %v1287
        %v1826 = vunpack.c.l.b16 %v1288
        %v1827 = vunpack.c.l.b16 %v1289
        %v1828 = vunpack.c.h.b16 %v1289
        %v1829 = vunpack.c.l.b16 %v1290
        %v1830 = vunpack.c.l.b16 %v1291
        %v1831 = vunpack.c.h.b16 %v1291
        %v1832 = vunpack.c.l.b16 %v1292
        %v1833 = vpack.c.b16 %v1512, %v1509
        %v1834 = vpack.c.b16 %v1513, %v1510
        %v1835 = vpack.c.b16 %v1514, %v1511
        %v1836 = vpack.c.b16 %v1518, %v1515
        %v1837 = vpack.c.b16 %v1519, %v1516
        %v1838 = vpack.c.b16 %v1520, %v1517
        %v1839 = vpack.c.b16 %v1524, %v1521
        %v1840 = vpack.c.b16 %v1525, %v1522
        %v1841 = vpack.c.b16 %v1526, %v1523
        %v1842 = vpack.c.b16 %v1530, %v1527
        %v1843 = vpack.c.b16 %v1531, %v1528
        %v1844 = vpack.c.b16 %v1532, %v1529
        %v1845 = vpack.c.b16 %v1536, %v1533
        %v1846 = vpack.c.b16 %v1537, %v1534
        %v1847 = vpack.c.b16 %v1538, %v1535
        %v1848 = vpack.c.b16 %v1542, %v1539
        %v1849 = vpack.c.b16 %v1543, %v1540
        %v1850 = vpack.c.b16 %v1544, %v1541
        %v1851 = vpack.c.b16 %v1548, %v1545
        %v1852 = vpack.c.b16 %v1549, %v1546
        %v1853 = vpack.c.b16 %v1550, %v1547
        %v1854 = vpack.c.b16 %v1554, %v1551
        %v1855 = vpack.c.b16 %v1555, %v1552
        %v1856 = vpack.c.b16 %v1556, %v1553
        %v1857 = vpack.c.b16 %v1560, %v1557
        %v1858 = vpack.c.b16 %v1561, %v1558
        %v1859 = vpack.c.b16 %v1562, %v1559
        %v1860 = vpack.c.b16 %v1566, %v1563
        %v1861 = vpack.c.b16 %v1567, %v1564
        %v1862 = vpack.c.b16 %v1568, %v1565
        %v1863 = vpack.c.b16 %v1572, %v1569
        %v1864 = vpack.c.b16 %v1573, %v1570
        %v1865 = vpack.c.b16 %v1574, %v1571
        %v1866 = vpack.c.b16 %v1578, %v1575
        %v1867 = vpack.c.b16 %v1579, %v1576
        %v1868 = vpack.c.b16 %v1580, %v1577
        %v1869 = vpack.c.b16 %v1584, %v1581
        %v1870 = vpack.c.b16 %v1585, %v1582
        %v1871 = vpack.c.b16 %v1586, %v1583
        %v1872 = vpack.c.b16 %v1590, %v1587
        %v1873 = vpack.c.b16 %v1591, %v1588
        %v1874 = vpack.c.b16 %v1592, %v1589
        %v1875 = vpack.c.b16 %v1596, %v1593
        %v1876 = vpack.c.b16 %v1597, %v1594
        %v1877 = vpack.c.b16 %v1598, %v1595
        %v1878 = vpack.c.b16 %v1602, %v1599
        %v1879 = vpack.c.b16 %v1603, %v1600
        %v1880 = vpack.c.b16 %v1604, %v1601
        %v1881 = vpack.c.b16 %v1608, %v1605
        %v1882 = vpack.c.b16 %v1609, %v1606
        %v1883 = vpack.c.b16 %v1610, %v1607
        %v1884 = vpack.c.b16 %v1614, %v1611
        %v1885 = vpack.c.b16 %v1615, %v1612
        %v1886 = vpack.c.b16 %v1616, %v1613
        %v1887 = vpack.c.b16 %v1620, %v1617
        %v1888 = vpack.c.b16 %v1621, %v1618
        %v1889 = vpack.c.b16 %v1622, %v1619
        %v1890 = vpack.c.b16 %v1626, %v1623
        %v1891 = vpack.c.b16 %v1627, %v1624
        %v1892 = vpack.c.b16 %v1628, %v1625
        %v1893 = vpack.c.b16 %v1632, %v1629
        %v1894 = vpack.c.b16 %v1633, %v1630
        %v1895 = vpack.c.b16 %v1634, %v1631
        %v1896 = vpack.c.b16 %v1638, %v1635
        %v1897 = vpack.c.b16 %v1639, %v1636
        %v1898 = vpack.c.b16 %v1640, %v1637
        %v1899 = vpack.c.b16 %v1644, %v1641
        %v1900 = vpack.c.b16 %v1645, %v1642
        %v1901 = vpack.c.b16 %v1646, %v1643
        %v1902 = vpack.c.b16 %v1650, %v1647
        %v1903 = vpack.c.b16 %v1651, %v1648
        %v1904 = vpack.c.b16 %v1652, %v1649
        %v1905 = vpack.c.b16 %v1656, %v1653
        %v1906 = vpack.c.b16 %v1657, %v1654
        %v1907 = vpack.c.b16 %v1658, %v1655
        %v1908 = vpack.c.b16 %v1662, %v1659
        %v1909 = vpack.c.b16 %v1663, %v1660
        %v1910 = vpack.c.b16 %v1664, %v1661
        %v1911 = vpack.c.b16 %v1668, %v1665
        %v1912 = vpack.c.b16 %v1669, %v1666
        %v1913 = vpack.c.b16 %v1670, %v1667
        %v1914 = vpack.c.b16 %v1674, %v1671
        %v1915 = vpack.c.b16 %v1675, %v1672
        %v1916 = vpack.c.b16 %v1676, %v1673
        %v1917 = vpack.c.b16 %v1680, %v1677
        %v1918 = vpack.c.b16 %v1681, %v1678
        %v1919 = vpack.c.b16 %v1682, %v1679
        %v1920 = vpack.c.b16 %v1686, %v1683
        %v1921 = vpack.c.b16 %v1687, %v1684
        %v1922 = vpack.c.b16 %v1688, %v1685
        %v1923 = vpack.c.b16 %v1692, %v1689
        %v1924 = vpack.c.b16 %v1693, %v1690
        %v1925 = vpack.c.b16 %v1694, %v1691
        %v1926 = vpack.c.b16 %v1698, %v1695
        %v1927 = vpack.c.b16 %v1699, %v1696
        %v1928 = vpack.c.b16 %v1700, %v1697
        %v1929 = vpack.c.b16 %v1704, %v1701
        %v1930 = vpack.c.b16 %v1705, %v1702
        %v1931 = vpack.c.b16 %v1706, %v1703
        %v1932 = vpack.c.b16 %v1710, %v1707
        %v1933 = vpack.c.b16 %v1711, %v1708
        %v1934 = vpack.c.b16 %v1712, %v1709
        %v1935 = vpack.c.b16 %v1716, %v1713
        %v1936 = vpack.c.b16 %v1717, %v1714
        %v1937 = vpack.c.b16 %v1718, %v1715
        %v1938 = vpack.c.b16 %v1722, %v1719
        %v1939 = vpack.c.b16 %v1723, %v1720
        %v1940 = vpack.c.b16 %v1724, %v1721
        %v1941 = vpack.c.b16 %v1728, %v1725
        %v1942 = vpack.c.b16 %v1729, %v1726
        %v1943 = vpack.c.b16 %v1730, %v1727
        %v1944 = vpack.c.b16 %v1734, %v1731
        %v1945 = vpack.c.b16 %v1735, %v1732
        %v1946 = vpack.c.b16 %v1736, %v1733
        %v1947 = vpack.c.b16 %v1740, %v1737
        %v1948 = vpack.c.b16 %v1741, %v1738
        %v1949 = vpack.c.b16 %v1742, %v1739
        %v1950 = vpack.c.b16 %v1746, %v1743
        %v1951 = vpack.c.b16 %v1747, %v1744
        %v1952 = vpack.c.b16 %v1748, %v1745
        %v1953 = vpack.c.b16 %v1752, %v1749
        %v1954 = vpack.c.b16 %v1753, %v1750
        %v1955 = vpack.c.b16 %v1754, %v1751
        %v1956 = vpack.c.b16 %v1758, %v1755
        %v1957 = vpack.c.b16 %v1759, %v1756
        %v1958 = vpack.c.b16 %v1760, %v1757
        %v1959 = vpack.c.b16 %v1764, %v1761
        %v1960 = vpack.c.b16 %v1765, %v1762
        %v1961 = vpack.c.b16 %v1766, %v1763
        %v1962 = vpack.c.b16 %v1770, %v1767
        %v1963 = vpack.c.b16 %v1771, %v1768
        %v1964 = vpack.c.b16 %v1772, %v1769
        %v1965 = vpack.c.b16 %v1776, %v1773
        %v1966 = vpack.c.b16 %v1777, %v1774
        %v1967 = vpack.c.b16 %v1778, %v1775
        %v1968 = vpack.c.b16 %v1782, %v1779
        %v1969 = vpack.c.b16 %v1783, %v1780
        %v1970 = vpack.c.b16 %v1784, %v1781
        %v1971 = vpack.c.b16 %v1788, %v1785
        %v1972 = vpack.c.b16 %v1789, %v1786
        %v1973 = vpack.c.b16 %v1790, %v1787
        %v1974 = vpack.c.b16 %v1794, %v1791
        %v1975 = vpack.c.b16 %v1795, %v1792
        %v1976 = vpack.c.b16 %v1796, %v1793
        %v1977 = vpack.c.b16 %v1800, %v1797
        %v1978 = vpack.c.b16 %v1801, %v1798
        %v1979 = vpack.c.b16 %v1802, %v1799
        %v1980 = vpack.c.b16 %v1806, %v1803
        %v1981 = vpack.c.b16 %v1807, %v1804
        %v1982 = vpack.c.b16 %v1808, %v1805
        %v1983 = vpack.c.b16 %v1812, %v1809
        %v1984 = vpack.c.b16 %v1813, %v1810
        %v1985 = vpack.c.b16 %v1814, %v1811
        %v1986 = vpack.c.b16 %v1818, %v1815
        %v1987 = vpack.c.b16 %v1819, %v1816
        %v1988 = vpack.c.b16 %v1820, %v1817
        %v1989 = vpack.c.b16 %v1824, %v1821
        %v1990 = vpack.c.b16 %v1825, %v1822
        %v1991 = vpack.c.b16 %v1826, %v1823
        %v1992 = vpack.c.b16 %v1830, %v1827
        %v1993 = vpack.c.b16 %v1831, %v1828
        %v1994 = vpack.c.b16 %v1832, %v1829
        %v2155 = vsel %vm407, %v1069, 0
        %v2158 = vsel %vm407, %v1076, 0
        %vm2160 = vcmask 1046528
        %vm2161 = vcmask 1047552
        %v2162 = vsel %vm2160, 4294967295, 65535
        %v2163 = vsel %vm2161, %v2162, 0
        %v2165 = vand.u32 %v1992, %v2163
        %v2168 = vand.u32 %v1993, %v2163
        %v2171 = vand.u32 %v1994, %v2163
        %2173 = vmatpush.bf16.msra.mxu0 %v1854
        %2174 = vmatpush.bf16.msra.mxu0 %v1851
        %2175 = vmatpush.bf16.msra.mxu0 %v1848
        %2176 = vmatpush.bf16.msra.mxu0 %v1845
        %2177 = vmatpush.bf16.msra.mxu0 %v1842
        %2178 = vmatpush.bf16.msra.mxu0 %v1839
        %2179 = vmatpush.bf16.msra.mxu0 %v1836
        %2180 = vmatpush.bf16.msra.mxu0 %v1833
        %2181 = vmatmul.bf16.gmra.mxu0 %v1063
        %v2182 = vpop.f32.mrf.mxu0
        %v2183 = vadd.f32 0.0, %v2182
        %v2184 = vpop.f32.mrf.mxu0
        %v2185 = vadd.f32 0.0, %v2184
        %2186 = vmatmul.bf16.gmra.mxu0 %v1070
        %v2187 = vpop.f32.mrf.mxu0
        %v2188 = vadd.f32 0.0, %v2187
        %v2189 = vpop.f32.mrf.mxu0
        %v2190 = vadd.f32 0.0, %v2189
        %2191 = vdwg.mxu0
        %2192 = vmatpush.bf16.msra.mxu0 %v1878
        %2193 = vmatpush.bf16.msra.mxu0 %v1875
        %2194 = vmatpush.bf16.msra.mxu0 %v1872
        %2195 = vmatpush.bf16.msra.mxu0 %v1869
        %2196 = vmatpush.bf16.msra.mxu0 %v1866
        %2197 = vmatpush.bf16.msra.mxu0 %v1863
        %2198 = vmatpush.bf16.msra.mxu0 %v1860
        %2199 = vmatpush.bf16.msra.mxu0 %v1857
        %2200 = vmatmul.bf16.gmra.mxu0 %v1064
        %v2201 = vpop.f32.mrf.mxu0
        %v2202 = vadd.f32 %v2183, %v2201
        %v2203 = vpop.f32.mrf.mxu0
        %v2204 = vadd.f32 %v2185, %v2203
        %2205 = vmatmul.bf16.gmra.mxu0 %v1071
        %v2206 = vpop.f32.mrf.mxu0
        %v2207 = vadd.f32 %v2188, %v2206
        %v2208 = vpop.f32.mrf.mxu0
        %v2209 = vadd.f32 %v2190, %v2208
        %2210 = vdwg.mxu0
        %2211 = vmatpush.bf16.msra.mxu0 %v1902
        %2212 = vmatpush.bf16.msra.mxu0 %v1899
        %2213 = vmatpush.bf16.msra.mxu0 %v1896
        %2214 = vmatpush.bf16.msra.mxu0 %v1893
        %2215 = vmatpush.bf16.msra.mxu0 %v1890
        %2216 = vmatpush.bf16.msra.mxu0 %v1887
        %2217 = vmatpush.bf16.msra.mxu0 %v1884
        %2218 = vmatpush.bf16.msra.mxu0 %v1881
        %2219 = vmatmul.bf16.gmra.mxu0 %v1065
        %v2220 = vpop.f32.mrf.mxu0
        %v2221 = vadd.f32 %v2202, %v2220
        %v2222 = vpop.f32.mrf.mxu0
        %v2223 = vadd.f32 %v2204, %v2222
        %2224 = vmatmul.bf16.gmra.mxu0 %v1072
        %v2225 = vpop.f32.mrf.mxu0
        %v2226 = vadd.f32 %v2207, %v2225
        %v2227 = vpop.f32.mrf.mxu0
        %v2228 = vadd.f32 %v2209, %v2227
        %2229 = vdwg.mxu0
        %2230 = vmatpush.bf16.msra.mxu0 %v1926
        %2231 = vmatpush.bf16.msra.mxu0 %v1923
        %2232 = vmatpush.bf16.msra.mxu0 %v1920
        %2233 = vmatpush.bf16.msra.mxu0 %v1917
        %2234 = vmatpush.bf16.msra.mxu0 %v1914
        %2235 = vmatpush.bf16.msra.mxu0 %v1911
        %2236 = vmatpush.bf16.msra.mxu0 %v1908
        %2237 = vmatpush.bf16.msra.mxu0 %v1905
        %2238 = vmatmul.bf16.gmra.mxu0 %v1066
        %v2239 = vpop.f32.mrf.mxu0
        %v2240 = vadd.f32 %v2221, %v2239
        %v2241 = vpop.f32.mrf.mxu0
        %v2242 = vadd.f32 %v2223, %v2241
        %2243 = vmatmul.bf16.gmra.mxu0 %v1073
        %v2244 = vpop.f32.mrf.mxu0
        %v2245 = vadd.f32 %v2226, %v2244
        %v2246 = vpop.f32.mrf.mxu0
        %v2247 = vadd.f32 %v2228, %v2246
        %2248 = vdwg.mxu0
        %2249 = vmatpush.bf16.msra.mxu0 %v1950
        %2250 = vmatpush.bf16.msra.mxu0 %v1947
        %2251 = vmatpush.bf16.msra.mxu0 %v1944
        %2252 = vmatpush.bf16.msra.mxu0 %v1941
        %2253 = vmatpush.bf16.msra.mxu0 %v1938
        %2254 = vmatpush.bf16.msra.mxu0 %v1935
        %2255 = vmatpush.bf16.msra.mxu0 %v1932
        %2256 = vmatpush.bf16.msra.mxu0 %v1929
        %2257 = vmatmul.bf16.gmra.mxu0 %v1067
        %v2258 = vpop.f32.mrf.mxu0
        %v2259 = vadd.f32 %v2240, %v2258
        %v2260 = vpop.f32.mrf.mxu0
        %v2261 = vadd.f32 %v2242, %v2260
        %2262 = vmatmul.bf16.gmra.mxu0 %v1074
        %v2263 = vpop.f32.mrf.mxu0
        %v2264 = vadd.f32 %v2245, %v2263
        %v2265 = vpop.f32.mrf.mxu0
        %v2266 = vadd.f32 %v2247, %v2265
        %2267 = vdwg.mxu0
        %2268 = vmatpush.bf16.msra.mxu0 %v1974
        %2269 = vmatpush.bf16.msra.mxu0 %v1971
        %2270 = vmatpush.bf16.msra.mxu0 %v1968
        %2271 = vmatpush.bf16.msra.mxu0 %v1965
        %2272 = vmatpush.bf16.msra.mxu0 %v1962
        %2273 = vmatpush.bf16.msra.mxu0 %v1959
        %2274 = vmatpush.bf16.msra.mxu0 %v1956
        %2275 = vmatpush.bf16.msra.mxu0 %v1953
        %2276 = vmatmul.bf16.gmra.mxu0 %v1068
        %v2277 = vpop.f32.mrf.mxu0
        %v2278 = vadd.f32 %v2259, %v2277
        %v2279 = vpop.f32.mrf.mxu0
        %v2280 = vadd.f32 %v2261, %v2279
        %2281 = vmatmul.bf16.gmra.mxu0 %v1075
        %v2282 = vpop.f32.mrf.mxu0
        %v2283 = vadd.f32 %v2264, %v2282
        %v2284 = vpop.f32.mrf.mxu0
        %v2285 = vadd.f32 %v2266, %v2284
        %2286 = vdwg.mxu0
        %2287 = vmatpush.bf16.msra.mxu0 0
        %2288 = vmatpush.bf16.msra.mxu0 0
        %2289 = vmatpush.bf16.msra.mxu0 %v2165
        %2290 = vmatpush.bf16.msra.mxu0 %v1989
        %2291 = vmatpush.bf16.msra.mxu0 %v1986
        %2292 = vmatpush.bf16.msra.mxu0 %v1983
        %2293 = vmatpush.bf16.msra.mxu0 %v1980
        %2294 = vmatpush.bf16.msra.mxu0 %v1977
        %2295 = vmatmul.bf16.gmra.mxu0 %v2155
        %v2296 = vpop.f32.mrf.mxu0
        %v2297 = vadd.f32 %v2278, %v2296
        %v2298 = vpop.f32.mrf.mxu0
        %v2299 = vadd.f32 %v2280, %v2298
        %2300 = vmatmul.bf16.gmra.mxu0 %v2158
        %v2301 = vpop.f32.mrf.mxu0
        %v2302 = vadd.f32 %v2283, %v2301
        %v2303 = vpop.f32.mrf.mxu0
        %v2304 = vadd.f32 %v2285, %v2303
        %2305 = vdwg.mxu0
        %2306 = vmatpush.bf16.msra.mxu0 %v1855
        %2307 = vmatpush.bf16.msra.mxu0 %v1852
        %2308 = vmatpush.bf16.msra.mxu0 %v1849
        %2309 = vmatpush.bf16.msra.mxu0 %v1846
        %2310 = vmatpush.bf16.msra.mxu0 %v1843
        %2311 = vmatpush.bf16.msra.mxu0 %v1840
        %2312 = vmatpush.bf16.msra.mxu0 %v1837
        %2313 = vmatpush.bf16.msra.mxu0 %v1834
        %2314 = vmatmul.bf16.gmra.mxu0 %v1063
        %v2315 = vpop.f32.mrf.mxu0
        %v2316 = vadd.f32 0.0, %v2315
        %v2317 = vpop.f32.mrf.mxu0
        %v2318 = vadd.f32 0.0, %v2317
        %2319 = vmatmul.bf16.gmra.mxu0 %v1070
        %v2320 = vpop.f32.mrf.mxu0
        %v2321 = vadd.f32 0.0, %v2320
        %v2322 = vpop.f32.mrf.mxu0
        %v2323 = vadd.f32 0.0, %v2322
        %2324 = vdwg.mxu0
        %2325 = vmatpush.bf16.msra.mxu0 %v1879
        %2326 = vmatpush.bf16.msra.mxu0 %v1876
        %2327 = vmatpush.bf16.msra.mxu0 %v1873
        %2328 = vmatpush.bf16.msra.mxu0 %v1870
        %2329 = vmatpush.bf16.msra.mxu0 %v1867
        %2330 = vmatpush.bf16.msra.mxu0 %v1864
        %2331 = vmatpush.bf16.msra.mxu0 %v1861
        %2332 = vmatpush.bf16.msra.mxu0 %v1858
        %2333 = vmatmul.bf16.gmra.mxu0 %v1064
        %v2334 = vpop.f32.mrf.mxu0
        %v2335 = vadd.f32 %v2316, %v2334
        %v2336 = vpop.f32.mrf.mxu0
        %v2337 = vadd.f32 %v2318, %v2336
        %2338 = vmatmul.bf16.gmra.mxu0 %v1071
        %v2339 = vpop.f32.mrf.mxu0
        %v2340 = vadd.f32 %v2321, %v2339
        %v2341 = vpop.f32.mrf.mxu0
        %v2342 = vadd.f32 %v2323, %v2341
        %2343 = vdwg.mxu0
        %2344 = vmatpush.bf16.msra.mxu0 %v1903
        %2345 = vmatpush.bf16.msra.mxu0 %v1900
        %2346 = vmatpush.bf16.msra.mxu0 %v1897
        %2347 = vmatpush.bf16.msra.mxu0 %v1894
        %2348 = vmatpush.bf16.msra.mxu0 %v1891
        %2349 = vmatpush.bf16.msra.mxu0 %v1888
        %2350 = vmatpush.bf16.msra.mxu0 %v1885
        %2351 = vmatpush.bf16.msra.mxu0 %v1882
        %2352 = vmatmul.bf16.gmra.mxu0 %v1065
        %v2353 = vpop.f32.mrf.mxu0
        %v2354 = vadd.f32 %v2335, %v2353
        %v2355 = vpop.f32.mrf.mxu0
        %v2356 = vadd.f32 %v2337, %v2355
        %2357 = vmatmul.bf16.gmra.mxu0 %v1072
        %v2358 = vpop.f32.mrf.mxu0
        %v2359 = vadd.f32 %v2340, %v2358
        %v2360 = vpop.f32.mrf.mxu0
        %v2361 = vadd.f32 %v2342, %v2360
        %2362 = vdwg.mxu0
        %2363 = vmatpush.bf16.msra.mxu0 %v1927
        %2364 = vmatpush.bf16.msra.mxu0 %v1924
        %2365 = vmatpush.bf16.msra.mxu0 %v1921
        %2366 = vmatpush.bf16.msra.mxu0 %v1918
        %2367 = vmatpush.bf16.msra.mxu0 %v1915
        %2368 = vmatpush.bf16.msra.mxu0 %v1912
        %2369 = vmatpush.bf16.msra.mxu0 %v1909
        %2370 = vmatpush.bf16.msra.mxu0 %v1906
        %2371 = vmatmul.bf16.gmra.mxu0 %v1066
        %v2372 = vpop.f32.mrf.mxu0
        %v2373 = vadd.f32 %v2354, %v2372
        %v2374 = vpop.f32.mrf.mxu0
        %v2375 = vadd.f32 %v2356, %v2374
        %2376 = vmatmul.bf16.gmra.mxu0 %v1073
        %v2377 = vpop.f32.mrf.mxu0
        %v2378 = vadd.f32 %v2359, %v2377
        %v2379 = vpop.f32.mrf.mxu0
        %v2380 = vadd.f32 %v2361, %v2379
        %2381 = vdwg.mxu0
        %2382 = vmatpush.bf16.msra.mxu0 %v1951
        %2383 = vmatpush.bf16.msra.mxu0 %v1948
        %2384 = vmatpush.bf16.msra.mxu0 %v1945
        %2385 = vmatpush.bf16.msra.mxu0 %v1942
        %2386 = vmatpush.bf16.msra.mxu0 %v1939
        %2387 = vmatpush.bf16.msra.mxu0 %v1936
        %2388 = vmatpush.bf16.msra.mxu0 %v1933
        %2389 = vmatpush.bf16.msra.mxu0 %v1930
        %2390 = vmatmul.bf16.gmra.mxu0 %v1067
        %v2391 = vpop.f32.mrf.mxu0
        %v2392 = vadd.f32 %v2373, %v2391
        %v2393 = vpop.f32.mrf.mxu0
        %v2394 = vadd.f32 %v2375, %v2393
        %2395 = vmatmul.bf16.gmra.mxu0 %v1074
        %v2396 = vpop.f32.mrf.mxu0
        %v2397 = vadd.f32 %v2378, %v2396
        %v2398 = vpop.f32.mrf.mxu0
        %v2399 = vadd.f32 %v2380, %v2398
        %2400 = vdwg.mxu0
        %2401 = vmatpush.bf16.msra.mxu0 %v1975
        %2402 = vmatpush.bf16.msra.mxu0 %v1972
        %2403 = vmatpush.bf16.msra.mxu0 %v1969
        %2404 = vmatpush.bf16.msra.mxu0 %v1966
        %2405 = vmatpush.bf16.msra.mxu0 %v1963
        %2406 = vmatpush.bf16.msra.mxu0 %v1960
        %2407 = vmatpush.bf16.msra.mxu0 %v1957
        %2408 = vmatpush.bf16.msra.mxu0 %v1954
        %2409 = vmatmul.bf16.gmra.mxu0 %v1068
        %v2410 = vpop.f32.mrf.mxu0
        %v2411 = vadd.f32 %v2392, %v2410
        %v2412 = vpop.f32.mrf.mxu0
        %v2413 = vadd.f32 %v2394, %v2412
        %2414 = vmatmul.bf16.gmra.mxu0 %v1075
        %v2415 = vpop.f32.mrf.mxu0
        %v2416 = vadd.f32 %v2397, %v2415
        %v2417 = vpop.f32.mrf.mxu0
        %v2418 = vadd.f32 %v2399, %v2417
        %2419 = vdwg.mxu0
        %2420 = vmatpush.bf16.msra.mxu0 0
        %2421 = vmatpush.bf16.msra.mxu0 0
        %2422 = vmatpush.bf16.msra.mxu0 %v2168
        %2423 = vmatpush.bf16.msra.mxu0 %v1990
        %2424 = vmatpush.bf16.msra.mxu0 %v1987
        %2425 = vmatpush.bf16.msra.mxu0 %v1984
        %2426 = vmatpush.bf16.msra.mxu0 %v1981
        %2427 = vmatpush.bf16.msra.mxu0 %v1978
        %2428 = vmatmul.bf16.gmra.mxu0 %v2155
        %v2429 = vpop.f32.mrf.mxu0
        %v2430 = vadd.f32 %v2411, %v2429
        %v2431 = vpop.f32.mrf.mxu0
        %v2432 = vadd.f32 %v2413, %v2431
        %2433 = vmatmul.bf16.gmra.mxu0 %v2158
        %v2434 = vpop.f32.mrf.mxu0
        %v2435 = vadd.f32 %v2416, %v2434
        %v2436 = vpop.f32.mrf.mxu0
        %v2437 = vadd.f32 %v2418, %v2436
        %2438 = vdwg.mxu0
        %2439 = vmatpush.bf16.msra.mxu0 %v1856
        %2440 = vmatpush.bf16.msra.mxu0 %v1853
        %2441 = vmatpush.bf16.msra.mxu0 %v1850
        %2442 = vmatpush.bf16.msra.mxu0 %v1847
        %2443 = vmatpush.bf16.msra.mxu0 %v1844
        %2444 = vmatpush.bf16.msra.mxu0 %v1841
        %2445 = vmatpush.bf16.msra.mxu0 %v1838
        %2446 = vmatpush.bf16.msra.mxu0 %v1835
        %2447 = vmatmul.bf16.gmra.mxu0 %v1063
        %v2448 = vpop.f32.mrf.mxu0
        %v2449 = vadd.f32 0.0, %v2448
        %v2450 = vpop.f32.mrf.mxu0
        %v2451 = vadd.f32 0.0, %v2450
        %2452 = vmatmul.bf16.gmra.mxu0 %v1070
        %v2453 = vpop.f32.mrf.mxu0
        %v2454 = vadd.f32 0.0, %v2453
        %v2455 = vpop.f32.mrf.mxu0
        %v2456 = vadd.f32 0.0, %v2455
        %2457 = vdwg.mxu0
        %2458 = vmatpush.bf16.msra.mxu0 %v1880
        %2459 = vmatpush.bf16.msra.mxu0 %v1877
        %2460 = vmatpush.bf16.msra.mxu0 %v1874
        %2461 = vmatpush.bf16.msra.mxu0 %v1871
        %2462 = vmatpush.bf16.msra.mxu0 %v1868
        %2463 = vmatpush.bf16.msra.mxu0 %v1865
        %2464 = vmatpush.bf16.msra.mxu0 %v1862
        %2465 = vmatpush.bf16.msra.mxu0 %v1859
        %2466 = vmatmul.bf16.gmra.mxu0 %v1064
        %v2467 = vpop.f32.mrf.mxu0
        %v2468 = vadd.f32 %v2449, %v2467
        %v2469 = vpop.f32.mrf.mxu0
        %v2470 = vadd.f32 %v2451, %v2469
        %2471 = vmatmul.bf16.gmra.mxu0 %v1071
        %v2472 = vpop.f32.mrf.mxu0
        %v2473 = vadd.f32 %v2454, %v2472
        %v2474 = vpop.f32.mrf.mxu0
        %v2475 = vadd.f32 %v2456, %v2474
        %2476 = vdwg.mxu0
        %2477 = vmatpush.bf16.msra.mxu0 %v1904
        %2478 = vmatpush.bf16.msra.mxu0 %v1901
        %2479 = vmatpush.bf16.msra.mxu0 %v1898
        %2480 = vmatpush.bf16.msra.mxu0 %v1895
        %2481 = vmatpush.bf16.msra.mxu0 %v1892
        %2482 = vmatpush.bf16.msra.mxu0 %v1889
        %2483 = vmatpush.bf16.msra.mxu0 %v1886
        %2484 = vmatpush.bf16.msra.mxu0 %v1883
        %2485 = vmatmul.bf16.gmra.mxu0 %v1065
        %v2486 = vpop.f32.mrf.mxu0
        %v2487 = vadd.f32 %v2468, %v2486
        %v2488 = vpop.f32.mrf.mxu0
        %v2489 = vadd.f32 %v2470, %v2488
        %2490 = vmatmul.bf16.gmra.mxu0 %v1072
        %v2491 = vpop.f32.mrf.mxu0
        %v2492 = vadd.f32 %v2473, %v2491
        %v2493 = vpop.f32.mrf.mxu0
        %v2494 = vadd.f32 %v2475, %v2493
        %2495 = vdwg.mxu0
        %2496 = vmatpush.bf16.msra.mxu0 %v1928
        %2497 = vmatpush.bf16.msra.mxu0 %v1925
        %2498 = vmatpush.bf16.msra.mxu0 %v1922
        %2499 = vmatpush.bf16.msra.mxu0 %v1919
        %2500 = vmatpush.bf16.msra.mxu0 %v1916
        %2501 = vmatpush.bf16.msra.mxu0 %v1913
        %2502 = vmatpush.bf16.msra.mxu0 %v1910
        %2503 = vmatpush.bf16.msra.mxu0 %v1907
        %2504 = vmatmul.bf16.gmra.mxu0 %v1066
        %v2505 = vpop.f32.mrf.mxu0
        %v2506 = vadd.f32 %v2487, %v2505
        %v2507 = vpop.f32.mrf.mxu0
        %v2508 = vadd.f32 %v2489, %v2507
        %2509 = vmatmul.bf16.gmra.mxu0 %v1073
        %v2510 = vpop.f32.mrf.mxu0
        %v2511 = vadd.f32 %v2492, %v2510
        %v2512 = vpop.f32.mrf.mxu0
        %v2513 = vadd.f32 %v2494, %v2512
        %2514 = vdwg.mxu0
        %2515 = vmatpush.bf16.msra.mxu0 %v1952
        %2516 = vmatpush.bf16.msra.mxu0 %v1949
        %2517 = vmatpush.bf16.msra.mxu0 %v1946
        %2518 = vmatpush.bf16.msra.mxu0 %v1943
        %2519 = vmatpush.bf16.msra.mxu0 %v1940
        %2520 = vmatpush.bf16.msra.mxu0 %v1937
        %2521 = vmatpush.bf16.msra.mxu0 %v1934
        %2522 = vmatpush.bf16.msra.mxu0 %v1931
        %2523 = vmatmul.bf16.gmra.mxu0 %v1067
        %v2524 = vpop.f32.mrf.mxu0
        %v2525 = vadd.f32 %v2506, %v2524
        %v2526 = vpop.f32.mrf.mxu0
        %v2527 = vadd.f32 %v2508, %v2526
        %2528 = vmatmul.bf16.gmra.mxu0 %v1074
        %v2529 = vpop.f32.mrf.mxu0
        %v2530 = vadd.f32 %v2511, %v2529
        %v2531 = vpop.f32.mrf.mxu0
        %v2532 = vadd.f32 %v2513, %v2531
        %2533 = vdwg.mxu0
        %2534 = vmatpush.bf16.msra.mxu0 %v1976
        %2535 = vmatpush.bf16.msra.mxu0 %v1973
        %2536 = vmatpush.bf16.msra.mxu0 %v1970
        %2537 = vmatpush.bf16.msra.mxu0 %v1967
        %2538 = vmatpush.bf16.msra.mxu0 %v1964
        %2539 = vmatpush.bf16.msra.mxu0 %v1961
        %2540 = vmatpush.bf16.msra.mxu0 %v1958
        %2541 = vmatpush.bf16.msra.mxu0 %v1955
        %2542 = vmatmul.bf16.gmra.mxu0 %v1068
        %v2543 = vpop.f32.mrf.mxu0
        %v2544 = vadd.f32 %v2525, %v2543
        %v2545 = vpop.f32.mrf.mxu0
        %v2546 = vadd.f32 %v2527, %v2545
        %2547 = vmatmul.bf16.gmra.mxu0 %v1075
        %v2548 = vpop.f32.mrf.mxu0
        %v2549 = vadd.f32 %v2530, %v2548
        %v2550 = vpop.f32.mrf.mxu0
        %v2551 = vadd.f32 %v2532, %v2550
        %2552 = vdwg.mxu0
        %2553 = vmatpush.bf16.msra.mxu0 0
        %2554 = vmatpush.bf16.msra.mxu0 0
        %2555 = vmatpush.bf16.msra.mxu0 %v2171
        %2556 = vmatpush.bf16.msra.mxu0 %v1991
        %2557 = vmatpush.bf16.msra.mxu0 %v1988
        %2558 = vmatpush.bf16.msra.mxu0 %v1985
        %2559 = vmatpush.bf16.msra.mxu0 %v1982
        %2560 = vmatpush.bf16.msra.mxu0 %v1979
        %2561 = vmatmul.bf16.gmra.mxu0 %v2155
        %v2562 = vpop.f32.mrf.mxu0
        %v2563 = vadd.f32 %v2544, %v2562
        %v2564 = vpop.f32.mrf.mxu0
        %v2565 = vadd.f32 %v2546, %v2564
        %2566 = vmatmul.bf16.gmra.mxu0 %v2158
        %v2567 = vpop.f32.mrf.mxu0
        %v2568 = vadd.f32 %v2549, %v2567
        %v2569 = vpop.f32.mrf.mxu0
        %v2570 = vadd.f32 %v2551, %v2569
        %2571 = vdwg.mxu0
        %v2572 = vpack.c.bf16 %v2430, %v2297
        %v2573 = vpack.c.bf16 %v2563, %v2563
        %v2574 = vpack.c.bf16 %v2432, %v2299
        %v2575 = vpack.c.bf16 %v2565, %v2565
        %v2576 = vpack.c.bf16 %v2435, %v2302
        %v2577 = vpack.c.bf16 %v2568, %v2568
        %v2578 = vpack.c.bf16 %v2437, %v2304
        %v2579 = vpack.c.bf16 %v2570, %v2570
        %vm2580 = vcmask 1043456
        %vm2581 = vcmask 785412
        %vm2582 = vmor %vm2581, %vm2580
        %2583 = vst.msk [vmem:[#allocation3] sm:$0xff] %vm2582, %v2572
        %2584 = vst.msk [vmem:[#allocation3 + $0x8] sm:$0xff] %vm2582, %v2574
        %2585 = vst.msk [vmem:[#allocation3 + $0x10] sm:$0xff] %vm2582, %v2576
        %2586 = vst.msk [vmem:[#allocation3 + $0x18] sm:$0xff] %vm2582, %v2578
        %2591 = vrot.lane.b32.xlu0 %v2572, 127
        %v2592 = vpop.permute.xlu0 %2591
        %2593 = vrot.lane.b32.xlu0 %v2574, 127
        %v2594 = vpop.permute.xlu0 %2593
        %2595 = vrot.lane.b32.xlu0 %v2576, 127
        %v2596 = vpop.permute.xlu0 %2595
        %2597 = vrot.lane.b32.xlu0 %v2578, 127
        %v2598 = vpop.permute.xlu0 %2597
        %v2599 = vrot.slane %v2592, 4
        %v2600 = vrot.slane %v2594, 4
        %v2601 = vrot.slane %v2596, 4
        %v2602 = vrot.slane %v2598, 4
        %vm2603 = vcmask 1039360
        %v2604 = vsel %vm2603, %v2592, %v2599
        %v2605 = vsel %vm2603, %v2594, %v2600
        %v2606 = vsel %vm2603, %v2596, %v2601
        %v2607 = vsel %vm2603, %v2598, %v2602
        %2612 = vst.msk [vmem:[#allocation3 + $0x20] sm:$0xff] %vm2582, %v2604
        %2613 = vst.msk [vmem:[#allocation3 + $0x28] sm:$0xff] %vm2582, %v2605
        %2614 = vst.msk [vmem:[#allocation3 + $0x30] sm:$0xff] %vm2582, %v2606
        %2615 = vst.msk [vmem:[#allocation3 + $0x38] sm:$0xff] %vm2582, %v2607
        %2616 = vrot.lane.b32.xlu0 %v2572, 126
        %v2617 = vpop.permute.xlu0 %2616
        %2618 = vrot.lane.b32.xlu0 %v2574, 126
        %v2619 = vpop.permute.xlu0 %2618
        %2620 = vrot.lane.b32.xlu0 %v2576, 126
        %v2621 = vpop.permute.xlu0 %2620
        %2622 = vrot.lane.b32.xlu0 %v2578, 126
        %v2623 = vpop.permute.xlu0 %2622
        %v2624 = vrot.slane %v2617, 4
        %v2625 = vrot.slane %v2619, 4
        %v2626 = vrot.slane %v2621, 4
        %v2627 = vrot.slane %v2623, 4
        %vm2628 = vcmask 1031168
        %v2629 = vsel %vm2628, %v2617, %v2624
        %v2630 = vsel %vm2628, %v2619, %v2625
        %v2631 = vsel %vm2628, %v2621, %v2626
        %v2632 = vsel %vm2628, %v2623, %v2627
        %2637 = vst.msk [vmem:[#allocation3 + $0x40] sm:$0xff] %vm2582, %v2629
        %2638 = vst.msk [vmem:[#allocation3 + $0x48] sm:$0xff] %vm2582, %v2630
        %2639 = vst.msk [vmem:[#allocation3 + $0x50] sm:$0xff] %vm2582, %v2631
        %2640 = vst.msk [vmem:[#allocation3 + $0x58] sm:$0xff] %vm2582, %v2632
        %2641 = vrot.lane.b32.xlu0 %v2572, 112
        %v2642 = vpop.permute.xlu0 %2641
        %2643 = vrot.lane.b32.xlu0 %v2574, 112
        %v2644 = vpop.permute.xlu0 %2643
        %2645 = vrot.lane.b32.xlu0 %v2576, 112
        %v2646 = vpop.permute.xlu0 %2645
        %2647 = vrot.lane.b32.xlu0 %v2578, 112
        %v2648 = vpop.permute.xlu0 %2647
        %v2649 = vrot.slane %v2642, 4
        %v2650 = vrot.slane %v2644, 4
        %v2651 = vrot.slane %v2646, 4
        %v2652 = vrot.slane %v2648, 4
        %vm2653 = vcmask 916480
        %v2654 = vsel %vm2653, %v2642, %v2649
        %v2655 = vsel %vm2653, %v2644, %v2650
        %v2656 = vsel %vm2653, %v2646, %v2651
        %v2657 = vsel %vm2653, %v2648, %v2652
        %2662 = vst.msk [vmem:[#allocation3 + $0x60] sm:$0xff] %vm2582, %v2654
        %2663 = vst.msk [vmem:[#allocation3 + $0x68] sm:$0xff] %vm2582, %v2655
        %2664 = vst.msk [vmem:[#allocation3 + $0x70] sm:$0xff] %vm2582, %v2656
        %2665 = vst.msk [vmem:[#allocation3 + $0x78] sm:$0xff] %vm2582, %v2657
        %2666 = vrot.lane.b32.xlu0 %v2572, 111
        %v2667 = vpop.permute.xlu0 %2666
        %2668 = vrot.lane.b32.xlu0 %v2574, 111
        %v2669 = vpop.permute.xlu0 %2668
        %2670 = vrot.lane.b32.xlu0 %v2576, 111
        %v2671 = vpop.permute.xlu0 %2670
        %2672 = vrot.lane.b32.xlu0 %v2578, 111
        %v2673 = vpop.permute.xlu0 %2672
        %v2674 = vrot.slane %v2667, 4
        %v2675 = vrot.slane %v2669, 4
        %v2676 = vrot.slane %v2671, 4
        %v2677 = vrot.slane %v2673, 4
        %vm2678 = vcmask 908288
        %v2679 = vsel %vm2678, %v2667, %v2674
        %v2680 = vsel %vm2678, %v2669, %v2675
        %v2681 = vsel %vm2678, %v2671, %v2676
        %v2682 = vsel %vm2678, %v2673, %v2677
        %2687 = vst.msk [vmem:[#allocation3 + $0x80] sm:$0xff] %vm2582, %v2679
        %2688 = vst.msk [vmem:[#allocation3 + $0x88] sm:$0xff] %vm2582, %v2680
        %2689 = vst.msk [vmem:[#allocation3 + $0x90] sm:$0xff] %vm2582, %v2681
        %2690 = vst.msk [vmem:[#allocation3 + $0x98] sm:$0xff] %vm2582, %v2682
        %2691 = vrot.lane.b32.xlu0 %v2572, 110
        %v2692 = vpop.permute.xlu0 %2691
        %2693 = vrot.lane.b32.xlu0 %v2574, 110
        %v2694 = vpop.permute.xlu0 %2693
        %2695 = vrot.lane.b32.xlu0 %v2576, 110
        %v2696 = vpop.permute.xlu0 %2695
        %2697 = vrot.lane.b32.xlu0 %v2578, 110
        %v2698 = vpop.permute.xlu0 %2697
        %v2699 = vrot.slane %v2692, 4
        %v2700 = vrot.slane %v2694, 4
        %v2701 = vrot.slane %v2696, 4
        %v2702 = vrot.slane %v2698, 4
        %vm2703 = vcmask 900096
        %v2704 = vsel %vm2703, %v2692, %v2699
        %v2705 = vsel %vm2703, %v2694, %v2700
        %v2706 = vsel %vm2703, %v2696, %v2701
        %v2707 = vsel %vm2703, %v2698, %v2702
        %2712 = vst.msk [vmem:[#allocation3 + $0xa0] sm:$0xff] %vm2582, %v2704
        %2713 = vst.msk [vmem:[#allocation3 + $0xa8] sm:$0xff] %vm2582, %v2705
        %2714 = vst.msk [vmem:[#allocation3 + $0xb0] sm:$0xff] %vm2582, %v2706
        %2715 = vst.msk [vmem:[#allocation3 + $0xb8] sm:$0xff] %vm2582, %v2707
        %2716 = vrot.lane.b32.xlu0 %v2572, 96
        %v2717 = vpop.permute.xlu0 %2716
        %2718 = vrot.lane.b32.xlu0 %v2574, 96
        %v2719 = vpop.permute.xlu0 %2718
        %2720 = vrot.lane.b32.xlu0 %v2576, 96
        %v2721 = vpop.permute.xlu0 %2720
        %2722 = vrot.lane.b32.xlu0 %v2578, 96
        %v2723 = vpop.permute.xlu0 %2722
        %v2724 = vrot.slane %v2717, 4
        %v2725 = vrot.slane %v2719, 4
        %v2726 = vrot.slane %v2721, 4
        %v2727 = vrot.slane %v2723, 4
        %vm2728 = vcmask 785408
        %v2729 = vsel %vm2728, %v2717, %v2724
        %v2730 = vsel %vm2728, %v2719, %v2725
        %v2731 = vsel %vm2728, %v2721, %v2726
        %v2732 = vsel %vm2728, %v2723, %v2727
        %2737 = vst.msk [vmem:[#allocation3 + $0xc0] sm:$0xff] %vm2582, %v2729
        %2738 = vst.msk [vmem:[#allocation3 + $0xc8] sm:$0xff] %vm2582, %v2730
        %2739 = vst.msk [vmem:[#allocation3 + $0xd0] sm:$0xff] %vm2582, %v2731
        %2740 = vst.msk [vmem:[#allocation3 + $0xd8] sm:$0xff] %vm2582, %v2732
        %2745 = vrot.lane.b32.xlu0 %v2572, 95
        %v2746 = vpop.permute.xlu0 %2745
        %2747 = vrot.lane.b32.xlu0 %v2573, 95
        %v2748 = vpop.permute.xlu0 %2747
        %2749 = vrot.lane.b32.xlu0 %v2574, 95
        %v2750 = vpop.permute.xlu0 %2749
        %2751 = vrot.lane.b32.xlu0 %v2575, 95
        %v2752 = vpop.permute.xlu0 %2751
        %2753 = vrot.lane.b32.xlu0 %v2576, 95
        %v2754 = vpop.permute.xlu0 %2753
        %2755 = vrot.lane.b32.xlu0 %v2577, 95
        %v2756 = vpop.permute.xlu0 %2755
        %2757 = vrot.lane.b32.xlu0 %v2578, 95
        %v2758 = vpop.permute.xlu0 %2757
        %2759 = vrot.lane.b32.xlu0 %v2579, 95
        %v2760 = vpop.permute.xlu0 %2759
        %v2761 = vrot.slane %v2746, 4
        %v2762 = vrot.slane %v2748, 4
        %v2763 = vrot.slane %v2750, 4
        %v2764 = vrot.slane %v2752, 4
        %v2765 = vrot.slane %v2754, 4
        %v2766 = vrot.slane %v2756, 4
        %v2767 = vrot.slane %v2758, 4
        %v2768 = vrot.slane %v2760, 4
        %vm2769 = vcmask 1043456
        %v2770 = vsel %vm2769, %v2761, %v2762
        %vm2771 = vcmask 777216
        %v2772 = vsel %vm2771, %v2746, %v2770
        %v2773 = vsel %vm2769, %v2763, %v2764
        %v2774 = vsel %vm2771, %v2750, %v2773
        %v2775 = vsel %vm2769, %v2765, %v2766
        %v2776 = vsel %vm2771, %v2754, %v2775
        %v2777 = vsel %vm2769, %v2767, %v2768
        %v2778 = vsel %vm2771, %v2758, %v2777
        %2783 = vst.msk [vmem:[#allocation3 + $0xe0] sm:$0xff] %vm2582, %v2772
        %2784 = vst.msk [vmem:[#allocation3 + $0xe8] sm:$0xff] %vm2582, %v2774
        %2785 = vst.msk [vmem:[#allocation3 + $0xf0] sm:$0xff] %vm2582, %v2776
        %2786 = vst.msk [vmem:[#allocation3 + $0xf8] sm:$0xff] %vm2582, %v2778
        %2787 = vrot.lane.b32.xlu0 %v2572, 94
        %v2788 = vpop.permute.xlu0 %2787
        %2789 = vrot.lane.b32.xlu0 %v2573, 94
        %v2790 = vpop.permute.xlu0 %2789
        %2791 = vrot.lane.b32.xlu0 %v2574, 94
        %v2792 = vpop.permute.xlu0 %2791
        %2793 = vrot.lane.b32.xlu0 %v2575, 94
        %v2794 = vpop.permute.xlu0 %2793
        %2795 = vrot.lane.b32.xlu0 %v2576, 94
        %v2796 = vpop.permute.xlu0 %2795
        %2797 = vrot.lane.b32.xlu0 %v2577, 94
        %v2798 = vpop.permute.xlu0 %2797
        %2799 = vrot.lane.b32.xlu0 %v2578, 94
        %v2800 = vpop.permute.xlu0 %2799
        %2801 = vrot.lane.b32.xlu0 %v2579, 94
        %v2802 = vpop.permute.xlu0 %2801
        %v2803 = vrot.slane %v2788, 4
        %v2804 = vrot.slane %v2790, 4
        %v2805 = vrot.slane %v2792, 4
        %v2806 = vrot.slane %v2794, 4
        %v2807 = vrot.slane %v2796, 4
        %v2808 = vrot.slane %v2798, 4
        %v2809 = vrot.slane %v2800, 4
        %v2810 = vrot.slane %v2802, 4
        %v2811 = vsel %vm2769, %v2803, %v2804
        %vm2812 = vcmask 769024
        %v2813 = vsel %vm2812, %v2788, %v2811
        %v2814 = vsel %vm2769, %v2805, %v2806
        %v2815 = vsel %vm2812, %v2792, %v2814
        %v2816 = vsel %vm2769, %v2807, %v2808
        %v2817 = vsel %vm2812, %v2796, %v2816
        %v2818 = vsel %vm2769, %v2809, %v2810
        %v2819 = vsel %vm2812, %v2800, %v2818
        %2824 = vst.msk [vmem:[#allocation3 + $0x100] sm:$0xff] %vm2582, %v2813
        %2825 = vst.msk [vmem:[#allocation3 + $0x108] sm:$0xff] %vm2582, %v2815
        %2826 = vst.msk [vmem:[#allocation3 + $0x110] sm:$0xff] %vm2582, %v2817
        %2827 = vst.msk [vmem:[#allocation3 + $0x118] sm:$0xff] %vm2582, %v2819
        %v2828 = vld [vmem:[%s4] sm:$0xff]
        %v2829 = vld [vmem:[%s4 + $0x8] sm:$0xf]
        %v2830 = vld [vmem:[%s4 + $0xc] sm:$0xff]
        %v2831 = vld [vmem:[%s4 + $0x14] sm:$0xf]
        %v2832 = vld [vmem:[%s4 + $0x18] sm:$0xff]
        %v2833 = vld [vmem:[%s4 + $0x20] sm:$0xf]
        %v2834 = vld [vmem:[%s4 + $0x24] sm:$0xff]
        %v2835 = vld [vmem:[%s4 + $0x2c] sm:$0xf]
        %v2836 = vld [vmem:[%s4 + $0x30] sm:$0xff]
        %v2837 = vld [vmem:[%s4 + $0x38] sm:$0xf]
        %v2838 = vld [vmem:[%s4 + $0x3c] sm:$0xff]
        %v2839 = vld [vmem:[%s4 + $0x44] sm:$0xf]
        %v2840 = vld [vmem:[%s4 + $0x48] sm:$0xff]
        %v2841 = vld [vmem:[%s4 + $0x50] sm:$0xf]
        %v2842 = vld [vmem:[%s4 + $0x54] sm:$0xff]
        %v2843 = vld [vmem:[%s4 + $0x5c] sm:$0xf]
        %v2844 = vld [vmem:[#allocation3] sm:$0xff]
        %v2845 = vld [vmem:[#allocation3 + $0x8] sm:$0xff]
        %v2846 = vld [vmem:[#allocation3 + $0x10] sm:$0xff]
        %v2847 = vld [vmem:[#allocation3 + $0x18] sm:$0xff]
        %v2848 = vld [vmem:[#allocation3 + $0x20] sm:$0xff]
        %v2849 = vld [vmem:[#allocation3 + $0x28] sm:$0xff]
        %v2850 = vld [vmem:[#allocation3 + $0x30] sm:$0xff]
        %v2851 = vld [vmem:[#allocation3 + $0x38] sm:$0xff]
        %v2852 = vld [vmem:[#allocation3 + $0x40] sm:$0xff]
        %v2853 = vld [vmem:[#allocation3 + $0x48] sm:$0xff]
        %v2854 = vld [vmem:[#allocation3 + $0x50] sm:$0xff]
        %v2855 = vld [vmem:[#allocation3 + $0x58] sm:$0xff]
        %v2856 = vld [vmem:[#allocation3 + $0x60] sm:$0xff]
        %v2857 = vld [vmem:[#allocation3 + $0x68] sm:$0xff]
        %v2858 = vld [vmem:[#allocation3 + $0x70] sm:$0xff]
        %v2859 = vld [vmem:[#allocation3 + $0x78] sm:$0xff]
        %v2860 = vld [vmem:[#allocation3 + $0x80] sm:$0xff]
        %v2861 = vld [vmem:[#allocation3 + $0x88] sm:$0xff]
        %v2862 = vld [vmem:[#allocation3 + $0x90] sm:$0xff]
        %v2863 = vld [vmem:[#allocation3 + $0x98] sm:$0xff]
        %v2864 = vld [vmem:[#allocation3 + $0xa0] sm:$0xff]
        %v2865 = vld [vmem:[#allocation3 + $0xa8] sm:$0xff]
        %v2866 = vld [vmem:[#allocation3 + $0xb0] sm:$0xff]
        %v2867 = vld [vmem:[#allocation3 + $0xb8] sm:$0xff]
        %v2868 = vld [vmem:[#allocation3 + $0xc0] sm:$0xff]
        %v2869 = vld [vmem:[#allocation3 + $0xc8] sm:$0xff]
        %v2870 = vld [vmem:[#allocation3 + $0xd0] sm:$0xff]
        %v2871 = vld [vmem:[#allocation3 + $0xd8] sm:$0xff]
        %v2872 = vld [vmem:[#allocation3 + $0xe0] sm:$0xff]
        %v2873 = vld [vmem:[#allocation3 + $0xe8] sm:$0xff]
        %v2874 = vld [vmem:[#allocation3 + $0xf0] sm:$0xff]
        %v2875 = vld [vmem:[#allocation3 + $0xf8] sm:$0xff]
        %v2876 = vld [vmem:[#allocation3 + $0x100] sm:$0xff]
        %v2877 = vld [vmem:[#allocation3 + $0x108] sm:$0xff]
        %v2878 = vld [vmem:[#allocation3 + $0x110] sm:$0xff]
        %v2879 = vld [vmem:[#allocation3 + $0x118] sm:$0xff]
        %v2880 = vld [vmem:[%s5] sm:$0xff]
        %v2881 = vld [vmem:[%s5 + $0x8] sm:$0xff]
        %v2882 = vld [vmem:[%s5 + $0x10] sm:$0xff]
        %v2883 = vld [vmem:[%s5 + $0x18] sm:$0xff]
        %v2884 = vld [vmem:[%s5 + $0x20] sm:$0xff]
        %v2885 = vld [vmem:[%s5 + $0x28] sm:$0xff]
        %v2886 = vld [vmem:[%s5 + $0x30] sm:$0xff]
        %v2887 = vld [vmem:[%s5 + $0x38] sm:$0xff]
        %2889 = vset.pattern.permute.xlu0 0
        %2890 = vperm.xlu0 %2889, %v2880
        %v2891 = vpop.permute.xlu0 %2890
        %2894 = vset.pattern.permute.xlu0 0
        %2895 = vperm.xlu0 %2894, %v2881
        %v2896 = vpop.permute.xlu0 %2895
        %2899 = vset.pattern.permute.xlu0 0
        %2900 = vperm.xlu0 %2899, %v2882
        %v2901 = vpop.permute.xlu0 %2900
        %2904 = vset.pattern.permute.xlu0 0
        %2905 = vperm.xlu0 %2904, %v2883
        %v2906 = vpop.permute.xlu0 %2905
        %2909 = vset.pattern.permute.xlu0 0
        %2910 = vperm.xlu0 %2909, %v2884
        %v2911 = vpop.permute.xlu0 %2910
        %2914 = vset.pattern.permute.xlu0 0
        %2915 = vperm.xlu0 %2914, %v2885
        %v2916 = vpop.permute.xlu0 %2915
        %2919 = vset.pattern.permute.xlu0 0
        %2920 = vperm.xlu0 %2919, %v2886
        %v2921 = vpop.permute.xlu0 %2920
        %2924 = vset.pattern.permute.xlu0 0
        %2925 = vperm.xlu0 %2924, %v2887
        %v2926 = vpop.permute.xlu0 %2925
        %v2944 = vunpack.c.l.b16 %v2828
        %v2945 = vunpack.c.h.b16 %v2828
        %v2946 = vunpack.c.l.b16 %v2829
        %v2947 = vunpack.c.l.b16 %v2830
        %v2948 = vunpack.c.h.b16 %v2830
        %v2949 = vunpack.c.l.b16 %v2831
        %v2950 = vunpack.c.l.b16 %v2832
        %v2951 = vunpack.c.h.b16 %v2832
        %v2952 = vunpack.c.l.b16 %v2833
        %v2953 = vunpack.c.l.b16 %v2834
        %v2954 = vunpack.c.h.b16 %v2834
        %v2955 = vunpack.c.l.b16 %v2835
        %v2956 = vunpack.c.l.b16 %v2836
        %v2957 = vunpack.c.h.b16 %v2836
        %v2958 = vunpack.c.l.b16 %v2837
        %v2959 = vunpack.c.l.b16 %v2838
        %v2960 = vunpack.c.h.b16 %v2838
        %v2961 = vunpack.c.l.b16 %v2839
        %v2962 = vunpack.c.l.b16 %v2840
        %v2963 = vunpack.c.h.b16 %v2840
        %v2964 = vunpack.c.l.b16 %v2841
        %v2965 = vunpack.c.l.b16 %v2842
        %v2966 = vunpack.c.h.b16 %v2842
        %v2967 = vunpack.c.l.b16 %v2843
        %v2968 = vpack.c.b16 %v2947, %v2944
        %v2969 = vpack.c.b16 %v2948, %v2945
        %v2970 = vpack.c.b16 %v2949, %v2946
        %v2971 = vpack.c.b16 %v2953, %v2950
        %v2972 = vpack.c.b16 %v2954, %v2951
        %v2973 = vpack.c.b16 %v2955, %v2952
        %v2974 = vpack.c.b16 %v2959, %v2956
        %v2975 = vpack.c.b16 %v2960, %v2957
        %v2976 = vpack.c.b16 %v2961, %v2958
        %v2977 = vpack.c.b16 %v2965, %v2962
        %v2978 = vpack.c.b16 %v2966, %v2963
        %v2979 = vpack.c.b16 %v2967, %v2964
        %v3024 = vunpack.c.l.b16 %v2844
        %v3025 = vunpack.c.h.b16 %v2844
        %v3026 = vunpack.c.l.b16 %v2845
        %v3027 = vunpack.c.h.b16 %v2845
        %v3028 = vunpack.c.l.b16 %v2846
        %v3029 = vunpack.c.h.b16 %v2846
        %v3030 = vunpack.c.l.b16 %v2847
        %v3031 = vunpack.c.h.b16 %v2847
        %v3032 = vunpack.c.l.b16 %v2848
        %v3033 = vunpack.c.h.b16 %v2848
        %v3034 = vunpack.c.l.b16 %v2849
        %v3035 = vunpack.c.h.b16 %v2849
        %v3036 = vunpack.c.l.b16 %v2850
        %v3037 = vunpack.c.h.b16 %v2850
        %v3038 = vunpack.c.l.b16 %v2851
        %v3039 = vunpack.c.h.b16 %v2851
        %v3040 = vunpack.c.l.b16 %v2852
        %v3041 = vunpack.c.h.b16 %v2852
        %v3042 = vunpack.c.l.b16 %v2853
        %v3043 = vunpack.c.h.b16 %v2853
        %v3044 = vunpack.c.l.b16 %v2854
        %v3045 = vunpack.c.h.b16 %v2854
        %v3046 = vunpack.c.l.b16 %v2855
        %v3047 = vunpack.c.h.b16 %v2855
        %v3048 = vunpack.c.l.b16 %v2856
        %v3049 = vunpack.c.h.b16 %v2856
        %v3050 = vunpack.c.l.b16 %v2857
        %v3051 = vunpack.c.h.b16 %v2857
        %v3052 = vunpack.c.l.b16 %v2858
        %v3053 = vunpack.c.h.b16 %v2858
        %v3054 = vunpack.c.l.b16 %v2859
        %v3055 = vunpack.c.h.b16 %v2859
        %v3056 = vunpack.c.l.b16 %v2860
        %v3057 = vunpack.c.h.b16 %v2860
        %v3058 = vunpack.c.l.b16 %v2861
        %v3059 = vunpack.c.h.b16 %v2861
        %v3060 = vunpack.c.l.b16 %v2862
        %v3061 = vunpack.c.h.b16 %v2862
        %v3062 = vunpack.c.l.b16 %v2863
        %v3063 = vunpack.c.h.b16 %v2863
        %v3064 = vunpack.c.l.b16 %v2864
        %v3065 = vunpack.c.h.b16 %v2864
        %v3066 = vunpack.c.l.b16 %v2865
        %v3067 = vunpack.c.h.b16 %v2865
        %v3068 = vunpack.c.l.b16 %v2866
        %v3069 = vunpack.c.h.b16 %v2866
        %v3070 = vunpack.c.l.b16 %v2867
        %v3071 = vunpack.c.h.b16 %v2867
        %v3072 = vunpack.c.l.b16 %v2868
        %v3073 = vunpack.c.h.b16 %v2868
        %v3074 = vunpack.c.l.b16 %v2869
        %v3075 = vunpack.c.h.b16 %v2869
        %v3076 = vunpack.c.l.b16 %v2870
        %v3077 = vunpack.c.h.b16 %v2870
        %v3078 = vunpack.c.l.b16 %v2871
        %v3079 = vunpack.c.h.b16 %v2871
        %v3080 = vunpack.c.l.b16 %v2872
        %v3081 = vunpack.c.h.b16 %v2872
        %v3082 = vunpack.c.l.b16 %v2873
        %v3083 = vunpack.c.h.b16 %v2873
        %v3084 = vunpack.c.l.b16 %v2874
        %v3085 = vunpack.c.h.b16 %v2874
        %v3086 = vunpack.c.l.b16 %v2875
        %v3087 = vunpack.c.h.b16 %v2875
        %v3088 = vunpack.c.l.b16 %v2876
        %v3089 = vunpack.c.h.b16 %v2876
        %v3090 = vunpack.c.l.b16 %v2877
        %v3091 = vunpack.c.h.b16 %v2877
        %v3092 = vunpack.c.l.b16 %v2878
        %v3093 = vunpack.c.h.b16 %v2878
        %v3094 = vunpack.c.l.b16 %v2879
        %v3095 = vunpack.c.h.b16 %v2879
        %v3096 = vpack.c.b16 %v3026, %v3024
        %v3097 = vpack.c.b16 %v3027, %v3025
        %v3098 = vpack.c.b16 %v3030, %v3028
        %v3099 = vpack.c.b16 %v3031, %v3029
        %v3100 = vpack.c.b16 %v3034, %v3032
        %v3101 = vpack.c.b16 %v3035, %v3033
        %v3102 = vpack.c.b16 %v3038, %v3036
        %v3103 = vpack.c.b16 %v3039, %v3037
        %v3104 = vpack.c.b16 %v3042, %v3040
        %v3105 = vpack.c.b16 %v3043, %v3041
        %v3106 = vpack.c.b16 %v3046, %v3044
        %v3107 = vpack.c.b16 %v3047, %v3045
        %v3108 = vpack.c.b16 %v3050, %v3048
        %v3109 = vpack.c.b16 %v3051, %v3049
        %v3110 = vpack.c.b16 %v3054, %v3052
        %v3111 = vpack.c.b16 %v3055, %v3053
        %v3112 = vpack.c.b16 %v3058, %v3056
        %v3113 = vpack.c.b16 %v3059, %v3057
        %v3114 = vpack.c.b16 %v3062, %v3060
        %v3115 = vpack.c.b16 %v3063, %v3061
        %v3116 = vpack.c.b16 %v3066, %v3064
        %v3117 = vpack.c.b16 %v3067, %v3065
        %v3118 = vpack.c.b16 %v3070, %v3068
        %v3119 = vpack.c.b16 %v3071, %v3069
        %v3120 = vpack.c.b16 %v3074, %v3072
        %v3121 = vpack.c.b16 %v3075, %v3073
        %v3122 = vpack.c.b16 %v3078, %v3076
        %v3123 = vpack.c.b16 %v3079, %v3077
        %v3124 = vpack.c.b16 %v3082, %v3080
        %v3125 = vpack.c.b16 %v3083, %v3081
        %v3126 = vpack.c.b16 %v3086, %v3084
        %v3127 = vpack.c.b16 %v3087, %v3085
        %v3128 = vpack.c.b16 %v3090, %v3088
        %v3129 = vpack.c.b16 %v3091, %v3089
        %v3130 = vpack.c.b16 %v3094, %v3092
        %v3131 = vpack.c.b16 %v3095, %v3093
        %vm3168 = vcmask 261120
        %v3170 = vsel %vm3168, %v2970, 0
        %v3173 = vsel %vm3168, %v2973, 0
        %v3176 = vsel %vm3168, %v2976, 0
        %v3179 = vsel %vm3168, %v2979, 0
        %3181 = vmatpush.bf16.msra.mxu0 %v3110
        %3182 = vmatpush.bf16.msra.mxu0 %v3108
        %3183 = vmatpush.bf16.msra.mxu0 %v3106
        %3184 = vmatpush.bf16.msra.mxu0 %v3104
        %3185 = vmatpush.bf16.msra.mxu0 %v3102
        %3186 = vmatpush.bf16.msra.mxu0 %v3100
        %3187 = vmatpush.bf16.msra.mxu0 %v3098
        %3188 = vmatpush.bf16.msra.mxu0 %v3096
        %3189 = vmatmul.bf16.gmra.mxu0 %v2968
        %v3190 = vpop.f32.mrf.mxu0
        %v3191 = vadd.f32 %v2891, %v3190
        %v3192 = vpop.f32.mrf.mxu0
        %v3193 = vadd.f32 %v2896, %v3192
        %3194 = vmatmul.bf16.gmra.mxu0 %v2971
        %v3195 = vpop.f32.mrf.mxu0
        %v3196 = vadd.f32 %v2901, %v3195
        %v3197 = vpop.f32.mrf.mxu0
        %v3198 = vadd.f32 %v2906, %v3197
        %3199 = vmatmul.bf16.gmra.mxu0 %v2974
        %v3200 = vpop.f32.mrf.mxu0
        %v3201 = vadd.f32 %v2911, %v3200
        %v3202 = vpop.f32.mrf.mxu0
        %v3203 = vadd.f32 %v2916, %v3202
        %3204 = vmatmul.bf16.gmra.mxu0 %v2977
        %v3205 = vpop.f32.mrf.mxu0
        %v3206 = vadd.f32 %v2921, %v3205
        %v3207 = vpop.f32.mrf.mxu0
        %v3208 = vadd.f32 %v2926, %v3207
        %3209 = vdwg.mxu0
        %3210 = vmatpush.bf16.msra.mxu0 %v3126
        %3211 = vmatpush.bf16.msra.mxu0 %v3124
        %3212 = vmatpush.bf16.msra.mxu0 %v3122
        %3213 = vmatpush.bf16.msra.mxu0 %v3120
        %3214 = vmatpush.bf16.msra.mxu0 %v3118
        %3215 = vmatpush.bf16.msra.mxu0 %v3116
        %3216 = vmatpush.bf16.msra.mxu0 %v3114
        %3217 = vmatpush.bf16.msra.mxu0 %v3112
        %3218 = vmatmul.bf16.gmra.mxu0 %v2969
        %v3219 = vpop.f32.mrf.mxu0
        %v3220 = vadd.f32 %v3191, %v3219
        %v3221 = vpop.f32.mrf.mxu0
        %v3222 = vadd.f32 %v3193, %v3221
        %3223 = vmatmul.bf16.gmra.mxu0 %v2972
        %v3224 = vpop.f32.mrf.mxu0
        %v3225 = vadd.f32 %v3196, %v3224
        %v3226 = vpop.f32.mrf.mxu0
        %v3227 = vadd.f32 %v3198, %v3226
        %3228 = vmatmul.bf16.gmra.mxu0 %v2975
        %v3229 = vpop.f32.mrf.mxu0
        %v3230 = vadd.f32 %v3201, %v3229
        %v3231 = vpop.f32.mrf.mxu0
        %v3232 = vadd.f32 %v3203, %v3231
        %3233 = vmatmul.bf16.gmra.mxu0 %v2978
        %v3234 = vpop.f32.mrf.mxu0
        %v3235 = vadd.f32 %v3206, %v3234
        %v3236 = vpop.f32.mrf.mxu0
        %v3237 = vadd.f32 %v3208, %v3236
        %3238 = vdwg.mxu0
        %3239 = vmatpush.bf16.msra.mxu0 0
        %3240 = vmatpush.bf16.msra.mxu0 0
        %3241 = vmatpush.bf16.msra.mxu0 0
        %3242 = vmatpush.bf16.msra.mxu0 0
        %3243 = vmatpush.bf16.msra.mxu0 0
        %3244 = vmatpush.bf16.msra.mxu0 0
        %3245 = vmatpush.bf16.msra.mxu0 %v3130
        %3246 = vmatpush.bf16.msra.mxu0 %v3128
        %3247 = vmatmul.bf16.gmra.mxu0 %v3170
        %v3248 = vpop.f32.mrf.mxu0
        %v3249 = vadd.f32 %v3220, %v3248
        %v3250 = vpop.f32.mrf.mxu0
        %v3251 = vadd.f32 %v3222, %v3250
        %3252 = vmatmul.bf16.gmra.mxu0 %v3173
        %v3253 = vpop.f32.mrf.mxu0
        %v3254 = vadd.f32 %v3225, %v3253
        %v3255 = vpop.f32.mrf.mxu0
        %v3256 = vadd.f32 %v3227, %v3255
        %3257 = vmatmul.bf16.gmra.mxu0 %v3176
        %v3258 = vpop.f32.mrf.mxu0
        %v3259 = vadd.f32 %v3230, %v3258
        %v3260 = vpop.f32.mrf.mxu0
        %v3261 = vadd.f32 %v3232, %v3260
        %3262 = vmatmul.bf16.gmra.mxu0 %v3179
        %v3263 = vpop.f32.mrf.mxu0
        %v3264 = vadd.f32 %v3235, %v3263
        %v3265 = vpop.f32.mrf.mxu0
        %v3266 = vadd.f32 %v3237, %v3265
        %3267 = vdwg.mxu0
        %3268 = vmatpush.bf16.msra.mxu0 %v3111
        %3269 = vmatpush.bf16.msra.mxu0 %v3109
        %3270 = vmatpush.bf16.msra.mxu0 %v3107
        %3271 = vmatpush.bf16.msra.mxu0 %v3105
        %3272 = vmatpush.bf16.msra.mxu0 %v3103
        %3273 = vmatpush.bf16.msra.mxu0 %v3101
        %3274 = vmatpush.bf16.msra.mxu0 %v3099
        %3275 = vmatpush.bf16.msra.mxu0 %v3097
        %3276 = vmatmul.bf16.gmra.mxu0 %v2968
        %v3277 = vpop.f32.mrf.mxu0
        %v3278 = vadd.f32 %v2891, %v3277
        %v3279 = vpop.f32.mrf.mxu0
        %v3280 = vadd.f32 %v2896, %v3279
        %3281 = vmatmul.bf16.gmra.mxu0 %v2971
        %v3282 = vpop.f32.mrf.mxu0
        %v3283 = vadd.f32 %v2901, %v3282
        %v3284 = vpop.f32.mrf.mxu0
        %v3285 = vadd.f32 %v2906, %v3284
        %3286 = vmatmul.bf16.gmra.mxu0 %v2974
        %v3287 = vpop.f32.mrf.mxu0
        %v3288 = vadd.f32 %v2911, %v3287
        %v3289 = vpop.f32.mrf.mxu0
        %v3290 = vadd.f32 %v2916, %v3289
        %3291 = vmatmul.bf16.gmra.mxu0 %v2977
        %v3292 = vpop.f32.mrf.mxu0
        %v3293 = vadd.f32 %v2921, %v3292
        %v3294 = vpop.f32.mrf.mxu0
        %v3295 = vadd.f32 %v2926, %v3294
        %3296 = vdwg.mxu0
        %3297 = vmatpush.bf16.msra.mxu0 %v3127
        %3298 = vmatpush.bf16.msra.mxu0 %v3125
        %3299 = vmatpush.bf16.msra.mxu0 %v3123
        %3300 = vmatpush.bf16.msra.mxu0 %v3121
        %3301 = vmatpush.bf16.msra.mxu0 %v3119
        %3302 = vmatpush.bf16.msra.mxu0 %v3117
        %3303 = vmatpush.bf16.msra.mxu0 %v3115
        %3304 = vmatpush.bf16.msra.mxu0 %v3113
        %3305 = vmatmul.bf16.gmra.mxu0 %v2969
        %v3306 = vpop.f32.mrf.mxu0
        %v3307 = vadd.f32 %v3278, %v3306
        %v3308 = vpop.f32.mrf.mxu0
        %v3309 = vadd.f32 %v3280, %v3308
        %3310 = vmatmul.bf16.gmra.mxu0 %v2972
        %v3311 = vpop.f32.mrf.mxu0
        %v3312 = vadd.f32 %v3283, %v3311
        %v3313 = vpop.f32.mrf.mxu0
        %v3314 = vadd.f32 %v3285, %v3313
        %3315 = vmatmul.bf16.gmra.mxu0 %v2975
        %v3316 = vpop.f32.mrf.mxu0
        %v3317 = vadd.f32 %v3288, %v3316
        %v3318 = vpop.f32.mrf.mxu0
        %v3319 = vadd.f32 %v3290, %v3318
        %3320 = vmatmul.bf16.gmra.mxu0 %v2978
        %v3321 = vpop.f32.mrf.mxu0
        %v3322 = vadd.f32 %v3293, %v3321
        %v3323 = vpop.f32.mrf.mxu0
        %v3324 = vadd.f32 %v3295, %v3323
        %3325 = vdwg.mxu0
        %3326 = vmatpush.bf16.msra.mxu0 0
        %3327 = vmatpush.bf16.msra.mxu0 0
        %3328 = vmatpush.bf16.msra.mxu0 0
        %3329 = vmatpush.bf16.msra.mxu0 0
        %3330 = vmatpush.bf16.msra.mxu0 0
        %3331 = vmatpush.bf16.msra.mxu0 0
        %3332 = vmatpush.bf16.msra.mxu0 %v3131
        %3333 = vmatpush.bf16.msra.mxu0 %v3129
        %3334 = vmatmul.bf16.gmra.mxu0 %v3170
        %v3335 = vpop.f32.mrf.mxu0
        %v3336 = vadd.f32 %v3307, %v3335
        %v3337 = vpop.f32.mrf.mxu0
        %v3338 = vadd.f32 %v3309, %v3337
        %3339 = vmatmul.bf16.gmra.mxu0 %v3173
        %v3340 = vpop.f32.mrf.mxu0
        %v3341 = vadd.f32 %v3312, %v3340
        %v3342 = vpop.f32.mrf.mxu0
        %v3343 = vadd.f32 %v3314, %v3342
        %3344 = vmatmul.bf16.gmra.mxu0 %v3176
        %v3345 = vpop.f32.mrf.mxu0
        %v3346 = vadd.f32 %v3317, %v3345
        %v3347 = vpop.f32.mrf.mxu0
        %v3348 = vadd.f32 %v3319, %v3347
        %3349 = vmatmul.bf16.gmra.mxu0 %v3179
        %v3350 = vpop.f32.mrf.mxu0
        %v3351 = vadd.f32 %v3322, %v3350
        %v3352 = vpop.f32.mrf.mxu0
        %v3353 = vadd.f32 %v3324, %v3352
        %3354 = vdwg.mxu0
        %v3355 = vmax.f32 %v3249, 0.0
        %v3356 = vmax.f32 %v3336, 0.0
        %v3357 = vmax.f32 %v3251, 0.0
        %v3358 = vmax.f32 %v3338, 0.0
        %v3359 = vmax.f32 %v3254, 0.0
        %v3360 = vmax.f32 %v3341, 0.0
        %v3361 = vmax.f32 %v3256, 0.0
        %v3362 = vmax.f32 %v3343, 0.0
        %v3363 = vmax.f32 %v3259, 0.0
        %v3364 = vmax.f32 %v3346, 0.0
        %v3365 = vmax.f32 %v3261, 0.0
        %v3366 = vmax.f32 %v3348, 0.0
        %v3367 = vmax.f32 %v3264, 0.0
        %v3368 = vmax.f32 %v3351, 0.0
        %v3369 = vmax.f32 %v3266, 0.0
        %v3370 = vmax.f32 %v3353, 0.0
        %3387 = vrot.lane.b32.xlu0 %v3355, 127
        %v3388 = vpop.permute.xlu0 %3387
        %3389 = vrot.lane.b32.xlu0 %v3356, 127
        %v3390 = vpop.permute.xlu0 %3389
        %3391 = vrot.lane.b32.xlu0 %v3357, 127
        %v3392 = vpop.permute.xlu0 %3391
        %3393 = vrot.lane.b32.xlu0 %v3358, 127
        %v3394 = vpop.permute.xlu0 %3393
        %3395 = vrot.lane.b32.xlu0 %v3359, 127
        %v3396 = vpop.permute.xlu0 %3395
        %3397 = vrot.lane.b32.xlu0 %v3360, 127
        %v3398 = vpop.permute.xlu0 %3397
        %3399 = vrot.lane.b32.xlu0 %v3361, 127
        %v3400 = vpop.permute.xlu0 %3399
        %3401 = vrot.lane.b32.xlu0 %v3362, 127
        %v3402 = vpop.permute.xlu0 %3401
        %3403 = vrot.lane.b32.xlu0 %v3363, 127
        %v3404 = vpop.permute.xlu0 %3403
        %3405 = vrot.lane.b32.xlu0 %v3364, 127
        %v3406 = vpop.permute.xlu0 %3405
        %3407 = vrot.lane.b32.xlu0 %v3365, 127
        %v3408 = vpop.permute.xlu0 %3407
        %3409 = vrot.lane.b32.xlu0 %v3366, 127
        %v3410 = vpop.permute.xlu0 %3409
        %3411 = vrot.lane.b32.xlu0 %v3367, 127
        %v3412 = vpop.permute.xlu0 %3411
        %3413 = vrot.lane.b32.xlu0 %v3368, 127
        %v3414 = vpop.permute.xlu0 %3413
        %3415 = vrot.lane.b32.xlu0 %v3369, 127
        %v3416 = vpop.permute.xlu0 %3415
        %3417 = vrot.lane.b32.xlu0 %v3370, 127
        %v3418 = vpop.permute.xlu0 %3417
        %v3419 = vsel %vm380, %v3388, %v3390
        %v3420 = vsel %vm380, %v3392, %v3394
        %v3421 = vsel %vm380, %v3396, %v3398
        %v3422 = vsel %vm380, %v3400, %v3402
        %v3423 = vsel %vm380, %v3404, %v3406
        %v3424 = vsel %vm380, %v3408, %v3410
        %v3425 = vsel %vm380, %v3412, %v3414
        %v3426 = vsel %vm380, %v3416, %v3418
        %v3443 = vmax.f32 %v3355, %v3419
        %v3444 = vmax.f32 %v3356, %v3390
        %v3445 = vmax.f32 %v3357, %v3420
        %v3446 = vmax.f32 %v3358, %v3394
        %v3447 = vmax.f32 %v3359, %v3421
        %v3448 = vmax.f32 %v3360, %v3398
        %v3449 = vmax.f32 %v3361, %v3422
        %v3450 = vmax.f32 %v3362, %v3402
        %v3451 = vmax.f32 %v3363, %v3423
        %v3452 = vmax.f32 %v3364, %v3406
        %v3453 = vmax.f32 %v3365, %v3424
        %v3454 = vmax.f32 %v3366, %v3410
        %v3455 = vmax.f32 %v3367, %v3425
        %v3456 = vmax.f32 %v3368, %v3414
        %v3457 = vmax.f32 %v3369, %v3426
        %v3458 = vmax.f32 %v3370, %v3418
        %3475 = vrot.lane.b32.xlu0 %v3443, 112
        %v3476 = vpop.permute.xlu0 %3475
        %3477 = vrot.lane.b32.xlu0 %v3444, 112
        %v3478 = vpop.permute.xlu0 %3477
        %3479 = vrot.lane.b32.xlu0 %v3445, 112
        %v3480 = vpop.permute.xlu0 %3479
        %3481 = vrot.lane.b32.xlu0 %v3446, 112
        %v3482 = vpop.permute.xlu0 %3481
        %3483 = vrot.lane.b32.xlu0 %v3447, 112
        %v3484 = vpop.permute.xlu0 %3483
        %3485 = vrot.lane.b32.xlu0 %v3448, 112
        %v3486 = vpop.permute.xlu0 %3485
        %3487 = vrot.lane.b32.xlu0 %v3449, 112
        %v3488 = vpop.permute.xlu0 %3487
        %3489 = vrot.lane.b32.xlu0 %v3450, 112
        %v3490 = vpop.permute.xlu0 %3489
        %3491 = vrot.lane.b32.xlu0 %v3451, 112
        %v3492 = vpop.permute.xlu0 %3491
        %3493 = vrot.lane.b32.xlu0 %v3452, 112
        %v3494 = vpop.permute.xlu0 %3493
        %3495 = vrot.lane.b32.xlu0 %v3453, 112
        %v3496 = vpop.permute.xlu0 %3495
        %3497 = vrot.lane.b32.xlu0 %v3454, 112
        %v3498 = vpop.permute.xlu0 %3497
        %3499 = vrot.lane.b32.xlu0 %v3455, 112
        %v3500 = vpop.permute.xlu0 %3499
        %3501 = vrot.lane.b32.xlu0 %v3456, 112
        %v3502 = vpop.permute.xlu0 %3501
        %3503 = vrot.lane.b32.xlu0 %v3457, 112
        %v3504 = vpop.permute.xlu0 %3503
        %3505 = vrot.lane.b32.xlu0 %v3458, 112
        %v3506 = vpop.permute.xlu0 %3505
        %vm3507 = vcmask 916480
        %v3508 = vsel %vm3507, %v3476, %v3478
        %v3509 = vsel %vm3507, %v3480, %v3482
        %v3510 = vsel %vm3507, %v3484, %v3486
        %v3511 = vsel %vm3507, %v3488, %v3490
        %v3512 = vsel %vm3507, %v3492, %v3494
        %v3513 = vsel %vm3507, %v3496, %v3498
        %v3514 = vsel %vm3507, %v3500, %v3502
        %v3515 = vsel %vm3507, %v3504, %v3506
        %v3532 = vmax.f32 %v3443, %v3508
        %v3533 = vmax.f32 %v3444, %v3478
        %v3534 = vmax.f32 %v3445, %v3509
        %v3535 = vmax.f32 %v3446, %v3482
        %v3536 = vmax.f32 %v3447, %v3510
        %v3537 = vmax.f32 %v3448, %v3486
        %v3538 = vmax.f32 %v3449, %v3511
        %v3539 = vmax.f32 %v3450, %v3490
        %v3540 = vmax.f32 %v3451, %v3512
        %v3541 = vmax.f32 %v3452, %v3494
        %v3542 = vmax.f32 %v3453, %v3513
        %v3543 = vmax.f32 %v3454, %v3498
        %v3544 = vmax.f32 %v3455, %v3514
        %v3545 = vmax.f32 %v3456, %v3502
        %v3546 = vmax.f32 %v3457, %v3515
        %v3547 = vmax.f32 %v3458, %v3506
        %v3548 = vpack.c.bf16 %v3534, %v3532
        %v3549 = vpack.c.bf16 %v3535, %v3533
        %v3550 = vpack.c.bf16 %v3538, %v3536
        %v3551 = vpack.c.bf16 %v3539, %v3537
        %v3552 = vpack.c.bf16 %v3542, %v3540
        %v3553 = vpack.c.bf16 %v3543, %v3541
        %v3554 = vpack.c.bf16 %v3546, %v3544
        %v3555 = vpack.c.bf16 %v3547, %v3545
        %v3556 = vld [vmem:[%s6] sm:$0xff]
        %v3557 = vld [vmem:[%s6 + $0x8] sm:$0xff]
        %v3558 = vld [vmem:[%s6 + $0x10] sm:$0xf]
        %v3559 = vld [vmem:[%s6 + $0x14] sm:$0xff]
        %v3560 = vld [vmem:[%s6 + $0x1c] sm:$0xff]
        %v3561 = vld [vmem:[%s6 + $0x24] sm:$0xf]
        %v3562 = vld [vmem:[%s6 + $0x28] sm:$0xff]
        %v3563 = vld [vmem:[%s6 + $0x30] sm:$0xff]
        %v3564 = vld [vmem:[%s6 + $0x38] sm:$0xf]
        %v3565 = vld [vmem:[%s6 + $0x3c] sm:$0xff]
        %v3566 = vld [vmem:[%s6 + $0x44] sm:$0xff]
        %v3567 = vld [vmem:[%s6 + $0x4c] sm:$0xf]
        %v3568 = vld [vmem:[%s6 + $0x50] sm:$0xff]
        %v3569 = vld [vmem:[%s6 + $0x58] sm:$0xff]
        %v3570 = vld [vmem:[%s6 + $0x60] sm:$0xf]
        %v3571 = vld [vmem:[%s6 + $0x64] sm:$0xff]
        %v3572 = vld [vmem:[%s6 + $0x6c] sm:$0xff]
        %v3573 = vld [vmem:[%s6 + $0x74] sm:$0xf]
        %v3574 = vld [vmem:[%s6 + $0x78] sm:$0xff]
        %v3575 = vld [vmem:[%s6 + $0x80] sm:$0xff]
        %v3576 = vld [vmem:[%s6 + $0x88] sm:$0xf]
        %v3577 = vld [vmem:[%s6 + $0x8c] sm:$0xff]
        %v3578 = vld [vmem:[%s6 + $0x94] sm:$0xff]
        %v3579 = vld [vmem:[%s6 + $0x9c] sm:$0xf]
        %v3580 = vld [vmem:[%s6 + $0xa0] sm:$0xff]
        %v3581 = vld [vmem:[%s6 + $0xa8] sm:$0xff]
        %v3582 = vld [vmem:[%s6 + $0xb0] sm:$0xf]
        %v3583 = vld [vmem:[%s6 + $0xb4] sm:$0xff]
        %v3584 = vld [vmem:[%s6 + $0xbc] sm:$0xff]
        %v3585 = vld [vmem:[%s6 + $0xc4] sm:$0xf]
        %v3586 = vld [vmem:[%s6 + $0xc8] sm:$0xff]
        %v3587 = vld [vmem:[%s6 + $0xd0] sm:$0xff]
        %v3588 = vld [vmem:[%s6 + $0xd8] sm:$0xf]
        %v3589 = vld [vmem:[%s6 + $0xdc] sm:$0xff]
        %v3590 = vld [vmem:[%s6 + $0xe4] sm:$0xff]
        %v3591 = vld [vmem:[%s6 + $0xec] sm:$0xf]
        %v3592 = vld [vmem:[%s6 + $0xf0] sm:$0xff]
        %v3593 = vld [vmem:[%s6 + $0xf8] sm:$0xff]
        %v3594 = vld [vmem:[%s6 + $0x100] sm:$0xf]
        %v3595 = vld [vmem:[%s6 + $0x104] sm:$0xff]
        %v3596 = vld [vmem:[%s6 + $0x10c] sm:$0xff]
        %v3597 = vld [vmem:[%s6 + $0x114] sm:$0xf]
        %v3598 = vld [vmem:[%s6 + $0x118] sm:$0xff]
        %v3599 = vld [vmem:[%s6 + $0x120] sm:$0xff]
        %v3600 = vld [vmem:[%s6 + $0x128] sm:$0xf]
        %v3601 = vld [vmem:[%s6 + $0x12c] sm:$0xff]
        %v3602 = vld [vmem:[%s6 + $0x134] sm:$0xff]
        %v3603 = vld [vmem:[%s6 + $0x13c] sm:$0xf]
        %v3604 = vld [vmem:[%s6 + $0x140] sm:$0xff]
        %v3605 = vld [vmem:[%s6 + $0x148] sm:$0xff]
        %v3606 = vld [vmem:[%s6 + $0x150] sm:$0xf]
        %v3607 = vld [vmem:[%s6 + $0x154] sm:$0xff]
        %v3608 = vld [vmem:[%s6 + $0x15c] sm:$0xff]
        %v3609 = vld [vmem:[%s6 + $0x164] sm:$0xf]
        %v3610 = vld [vmem:[%s6 + $0x168] sm:$0xff]
        %v3611 = vld [vmem:[%s6 + $0x170] sm:$0xff]
        %v3612 = vld [vmem:[%s6 + $0x178] sm:$0xf]
        %v3613 = vld [vmem:[%s6 + $0x17c] sm:$0xff]
        %v3614 = vld [vmem:[%s6 + $0x184] sm:$0xff]
        %v3615 = vld [vmem:[%s6 + $0x18c] sm:$0xf]
        %v3616 = vld [vmem:[%s6 + $0x190] sm:$0xff]
        %v3617 = vld [vmem:[%s6 + $0x198] sm:$0xff]
        %v3618 = vld [vmem:[%s6 + $0x1a0] sm:$0xf]
        %v3619 = vld [vmem:[%s6 + $0x1a4] sm:$0xff]
        %v3620 = vld [vmem:[%s6 + $0x1ac] sm:$0xff]
        %v3621 = vld [vmem:[%s6 + $0x1b4] sm:$0xf]
        %v3622 = vld [vmem:[%s6 + $0x1b8] sm:$0xff]
        %v3623 = vld [vmem:[%s6 + $0x1c0] sm:$0xff]
        %v3624 = vld [vmem:[%s6 + $0x1c8] sm:$0xf]
        %v3625 = vld [vmem:[%s6 + $0x1cc] sm:$0xff]
        %v3626 = vld [vmem:[%s6 + $0x1d4] sm:$0xff]
        %v3627 = vld [vmem:[%s6 + $0x1dc] sm:$0xf]
        %v3628 = vld [vmem:[%s6 + $0x1e0] sm:$0xff]
        %v3629 = vld [vmem:[%s6 + $0x1e8] sm:$0xff]
        %v3630 = vld [vmem:[%s6 + $0x1f0] sm:$0xf]
        %v3631 = vld [vmem:[%s6 + $0x1f4] sm:$0xff]
        %v3632 = vld [vmem:[%s6 + $0x1fc] sm:$0xff]
        %v3633 = vld [vmem:[%s6 + $0x204] sm:$0xf]
        %v3712 = vunpack.c.l.b16 %v3556
        %v3713 = vunpack.c.h.b16 %v3556
        %v3714 = vunpack.c.l.b16 %v3557
        %v3715 = vunpack.c.h.b16 %v3557
        %v3716 = vunpack.c.l.b16 %v3558
        %v3717 = vunpack.c.l.b16 %v3559
        %v3718 = vunpack.c.h.b16 %v3559
        %v3719 = vunpack.c.l.b16 %v3560
        %v3720 = vunpack.c.h.b16 %v3560
        %v3721 = vunpack.c.l.b16 %v3561
        %v3722 = vunpack.c.l.b16 %v3562
        %v3723 = vunpack.c.h.b16 %v3562
        %v3724 = vunpack.c.l.b16 %v3563
        %v3725 = vunpack.c.h.b16 %v3563
        %v3726 = vunpack.c.l.b16 %v3564
        %v3727 = vunpack.c.l.b16 %v3565
        %v3728 = vunpack.c.h.b16 %v3565
        %v3729 = vunpack.c.l.b16 %v3566
        %v3730 = vunpack.c.h.b16 %v3566
        %v3731 = vunpack.c.l.b16 %v3567
        %v3732 = vunpack.c.l.b16 %v3568
        %v3733 = vunpack.c.h.b16 %v3568
        %v3734 = vunpack.c.l.b16 %v3569
        %v3735 = vunpack.c.h.b16 %v3569
        %v3736 = vunpack.c.l.b16 %v3570
        %v3737 = vunpack.c.l.b16 %v3571
        %v3738 = vunpack.c.h.b16 %v3571
        %v3739 = vunpack.c.l.b16 %v3572
        %v3740 = vunpack.c.h.b16 %v3572
        %v3741 = vunpack.c.l.b16 %v3573
        %v3742 = vunpack.c.l.b16 %v3574
        %v3743 = vunpack.c.h.b16 %v3574
        %v3744 = vunpack.c.l.b16 %v3575
        %v3745 = vunpack.c.h.b16 %v3575
        %v3746 = vunpack.c.l.b16 %v3576
        %v3747 = vunpack.c.l.b16 %v3577
        %v3748 = vunpack.c.h.b16 %v3577
        %v3749 = vunpack.c.l.b16 %v3578
        %v3750 = vunpack.c.h.b16 %v3578
        %v3751 = vunpack.c.l.b16 %v3579
        %v3752 = vunpack.c.l.b16 %v3580
        %v3753 = vunpack.c.h.b16 %v3580
        %v3754 = vunpack.c.l.b16 %v3581
        %v3755 = vunpack.c.h.b16 %v3581
        %v3756 = vunpack.c.l.b16 %v3582
        %v3757 = vunpack.c.l.b16 %v3583
        %v3758 = vunpack.c.h.b16 %v3583
        %v3759 = vunpack.c.l.b16 %v3584
        %v3760 = vunpack.c.h.b16 %v3584
        %v3761 = vunpack.c.l.b16 %v3585
        %v3762 = vunpack.c.l.b16 %v3586
        %v3763 = vunpack.c.h.b16 %v3586
        %v3764 = vunpack.c.l.b16 %v3587
        %v3765 = vunpack.c.h.b16 %v3587
        %v3766 = vunpack.c.l.b16 %v3588
        %v3767 = vunpack.c.l.b16 %v3589
        %v3768 = vunpack.c.h.b16 %v3589
        %v3769 = vunpack.c.l.b16 %v3590
        %v3770 = vunpack.c.h.b16 %v3590
        %v3771 = vunpack.c.l.b16 %v3591
        %v3772 = vunpack.c.l.b16 %v3592
        %v3773 = vunpack.c.h.b16 %v3592
        %v3774 = vunpack.c.l.b16 %v3593
        %v3775 = vunpack.c.h.b16 %v3593
        %v3776 = vunpack.c.l.b16 %v3594
        %v3777 = vunpack.c.l.b16 %v3595
        %v3778 = vunpack.c.h.b16 %v3595
        %v3779 = vunpack.c.l.b16 %v3596
        %v3780 = vunpack.c.h.b16 %v3596
        %v3781 = vunpack.c.l.b16 %v3597
        %v3782 = vunpack.c.l.b16 %v3598
        %v3783 = vunpack.c.h.b16 %v3598
        %v3784 = vunpack.c.l.b16 %v3599
        %v3785 = vunpack.c.h.b16 %v3599
        %v3786 = vunpack.c.l.b16 %v3600
        %v3787 = vunpack.c.l.b16 %v3601
        %v3788 = vunpack.c.h.b16 %v3601
        %v3789 = vunpack.c.l.b16 %v3602
        %v3790 = vunpack.c.h.b16 %v3602
        %v3791 = vunpack.c.l.b16 %v3603
        %v3792 = vunpack.c.l.b16 %v3604
        %v3793 = vunpack.c.h.b16 %v3604
        %v3794 = vunpack.c.l.b16 %v3605
        %v3795 = vunpack.c.h.b16 %v3605
        %v3796 = vunpack.c.l.b16 %v3606
        %v3797 = vunpack.c.l.b16 %v3607
        %v3798 = vunpack.c.h.b16 %v3607
        %v3799 = vunpack.c.l.b16 %v3608
        %v3800 = vunpack.c.h.b16 %v3608
        %v3801 = vunpack.c.l.b16 %v3609
        %v3802 = vunpack.c.l.b16 %v3610
        %v3803 = vunpack.c.h.b16 %v3610
        %v3804 = vunpack.c.l.b16 %v3611
        %v3805 = vunpack.c.h.b16 %v3611
        %v3806 = vunpack.c.l.b16 %v3612
        %v3807 = vunpack.c.l.b16 %v3613
        %v3808 = vunpack.c.h.b16 %v3613
        %v3809 = vunpack.c.l.b16 %v3614
        %v3810 = vunpack.c.h.b16 %v3614
        %v3811 = vunpack.c.l.b16 %v3615
        %v3812 = vunpack.c.l.b16 %v3616
        %v3813 = vunpack.c.h.b16 %v3616
        %v3814 = vunpack.c.l.b16 %v3617
        %v3815 = vunpack.c.h.b16 %v3617
        %v3816 = vunpack.c.l.b16 %v3618
        %v3817 = vunpack.c.l.b16 %v3619
        %v3818 = vunpack.c.h.b16 %v3619
        %v3819 = vunpack.c.l.b16 %v3620
        %v3820 = vunpack.c.h.b16 %v3620
        %v3821 = vunpack.c.l.b16 %v3621
        %v3822 = vunpack.c.l.b16 %v3622
        %v3823 = vunpack.c.h.b16 %v3622
        %v3824 = vunpack.c.l.b16 %v3623
        %v3825 = vunpack.c.h.b16 %v3623
        %v3826 = vunpack.c.l.b16 %v3624
        %v3827 = vunpack.c.l.b16 %v3625
        %v3828 = vunpack.c.h.b16 %v3625
        %v3829 = vunpack.c.l.b16 %v3626
        %v3830 = vunpack.c.h.b16 %v3626
        %v3831 = vunpack.c.l.b16 %v3627
        %v3832 = vunpack.c.l.b16 %v3628
        %v3833 = vunpack.c.h.b16 %v3628
        %v3834 = vunpack.c.l.b16 %v3629
        %v3835 = vunpack.c.h.b16 %v3629
        %v3836 = vunpack.c.l.b16 %v3630
        %v3837 = vunpack.c.l.b16 %v3631
        %v3838 = vunpack.c.h.b16 %v3631
        %v3839 = vunpack.c.l.b16 %v3632
        %v3840 = vunpack.c.h.b16 %v3632
        %v3841 = vunpack.c.l.b16 %v3633
        %v3842 = vpack.c.b16 %v3717, %v3712
        %v3843 = vpack.c.b16 %v3718, %v3713
        %v3844 = vpack.c.b16 %v3719, %v3714
        %v3845 = vpack.c.b16 %v3720, %v3715
        %v3846 = vpack.c.b16 %v3721, %v3716
        %v3847 = vpack.c.b16 %v3727, %v3722
        %v3848 = vpack.c.b16 %v3728, %v3723
        %v3849 = vpack.c.b16 %v3729, %v3724
        %v3850 = vpack.c.b16 %v3730, %v3725
        %v3851 = vpack.c.b16 %v3731, %v3726
        %v3852 = vpack.c.b16 %v3737, %v3732
        %v3853 = vpack.c.b16 %v3738, %v3733
        %v3854 = vpack.c.b16 %v3739, %v3734
        %v3855 = vpack.c.b16 %v3740, %v3735
        %v3856 = vpack.c.b16 %v3741, %v3736
        %v3857 = vpack.c.b16 %v3747, %v3742
        %v3858 = vpack.c.b16 %v3748, %v3743
        %v3859 = vpack.c.b16 %v3749, %v3744
        %v3860 = vpack.c.b16 %v3750, %v3745
        %v3861 = vpack.c.b16 %v3751, %v3746
        %v3862 = vpack.c.b16 %v3757, %v3752
        %v3863 = vpack.c.b16 %v3758, %v3753
        %v3864 = vpack.c.b16 %v3759, %v3754
        %v3865 = vpack.c.b16 %v3760, %v3755
        %v3866 = vpack.c.b16 %v3761, %v3756
        %v3867 = vpack.c.b16 %v3767, %v3762
        %v3868 = vpack.c.b16 %v3768, %v3763
        %v3869 = vpack.c.b16 %v3769, %v3764
        %v3870 = vpack.c.b16 %v3770, %v3765
        %v3871 = vpack.c.b16 %v3771, %v3766
        %v3872 = vpack.c.b16 %v3777, %v3772
        %v3873 = vpack.c.b16 %v3778, %v3773
        %v3874 = vpack.c.b16 %v3779, %v3774
        %v3875 = vpack.c.b16 %v3780, %v3775
        %v3876 = vpack.c.b16 %v3781, %v3776
        %v3877 = vpack.c.b16 %v3787, %v3782
        %v3878 = vpack.c.b16 %v3788, %v3783
        %v3879 = vpack.c.b16 %v3789, %v3784
        %v3880 = vpack.c.b16 %v3790, %v3785
        %v3881 = vpack.c.b16 %v3791, %v3786
        %v3882 = vpack.c.b16 %v3797, %v3792
        %v3883 = vpack.c.b16 %v3798, %v3793
        %v3884 = vpack.c.b16 %v3799, %v3794
        %v3885 = vpack.c.b16 %v3800, %v3795
        %v3886 = vpack.c.b16 %v3801, %v3796
        %v3887 = vpack.c.b16 %v3807, %v3802
        %v3888 = vpack.c.b16 %v3808, %v3803
        %v3889 = vpack.c.b16 %v3809, %v3804
        %v3890 = vpack.c.b16 %v3810, %v3805
        %v3891 = vpack.c.b16 %v3811, %v3806
        %v3892 = vpack.c.b16 %v3817, %v3812
        %v3893 = vpack.c.b16 %v3818, %v3813
        %v3894 = vpack.c.b16 %v3819, %v3814
        %v3895 = vpack.c.b16 %v3820, %v3815
        %v3896 = vpack.c.b16 %v3821, %v3816
        %v3897 = vpack.c.b16 %v3827, %v3822
        %v3898 = vpack.c.b16 %v3828, %v3823
        %v3899 = vpack.c.b16 %v3829, %v3824
        %v3900 = vpack.c.b16 %v3830, %v3825
        %v3901 = vpack.c.b16 %v3831, %v3826
        %v3902 = vpack.c.b16 %v3837, %v3832
        %v3903 = vpack.c.b16 %v3838, %v3833
        %v3904 = vpack.c.b16 %v3839, %v3834
        %v3905 = vpack.c.b16 %v3840, %v3835
        %v3906 = vpack.c.b16 %v3841, %v3836
        %vm3967 = vcmask 646144
        %v3969 = vsel %vm3967, %v3549, 0
        %v3972 = vsel %vm3967, %v3551, 0
        %v3975 = vsel %vm3967, %v3553, 0
        %v3978 = vsel %vm3967, %v3555, 0
        %v3981 = vand.u32 %v3902, %v2163
        %v3984 = vand.u32 %v3903, %v2163
        %v3987 = vand.u32 %v3904, %v2163
        %v3990 = vand.u32 %v3905, %v2163
        %v3993 = vand.u32 %v3906, %v2163
        %3995 = vmatpush.bf16.msra.mxu0 %v3877
        %3996 = vmatpush.bf16.msra.mxu0 %v3872
        %3997 = vmatpush.bf16.msra.mxu0 %v3867
        %3998 = vmatpush.bf16.msra.mxu0 %v3862
        %3999 = vmatpush.bf16.msra.mxu0 %v3857
        %4000 = vmatpush.bf16.msra.mxu0 %v3852
        %4001 = vmatpush.bf16.msra.mxu0 %v3847
        %4002 = vmatpush.bf16.msra.mxu0 %v3842
        %4003 = vmatmul.bf16.gmra.mxu0 %v3548
        %v4004 = vpop.f32.mrf.mxu0
        %v4005 = vadd.f32 0.0, %v4004
        %v4006 = vpop.f32.mrf.mxu0
        %v4007 = vadd.f32 0.0, %v4006
        %4008 = vmatmul.bf16.gmra.mxu0 %v3550
        %v4009 = vpop.f32.mrf.mxu0
        %v4010 = vadd.f32 0.0, %v4009
        %v4011 = vpop.f32.mrf.mxu0
        %v4012 = vadd.f32 0.0, %v4011
        %4013 = vmatmul.bf16.gmra.mxu0 %v3552
        %v4014 = vpop.f32.mrf.mxu0
        %v4015 = vadd.f32 0.0, %v4014
        %v4016 = vpop.f32.mrf.mxu0
        %v4017 = vadd.f32 0.0, %v4016
        %4018 = vmatmul.bf16.gmra.mxu0 %v3554
        %v4019 = vpop.f32.mrf.mxu0
        %v4020 = vadd.f32 0.0, %v4019
        %v4021 = vpop.f32.mrf.mxu0
        %v4022 = vadd.f32 0.0, %v4021
        %4023 = vdwg.mxu0
        %4024 = vmatpush.bf16.msra.mxu0 0
        %4025 = vmatpush.bf16.msra.mxu0 0
        %4026 = vmatpush.bf16.msra.mxu0 0
        %4027 = vmatpush.bf16.msra.mxu0 %v3981
        %4028 = vmatpush.bf16.msra.mxu0 %v3897
        %4029 = vmatpush.bf16.msra.mxu0 %v3892
        %4030 = vmatpush.bf16.msra.mxu0 %v3887
        %4031 = vmatpush.bf16.msra.mxu0 %v3882
        %4032 = vmatmul.bf16.gmra.mxu0 %v3969
        %v4033 = vpop.f32.mrf.mxu0
        %v4034 = vadd.f32 %v4005, %v4033
        %v4035 = vpop.f32.mrf.mxu0
        %v4036 = vadd.f32 %v4007, %v4035
        %4037 = vmatmul.bf16.gmra.mxu0 %v3972
        %v4038 = vpop.f32.mrf.mxu0
        %v4039 = vadd.f32 %v4010, %v4038
        %v4040 = vpop.f32.mrf.mxu0
        %v4041 = vadd.f32 %v4012, %v4040
        %4042 = vmatmul.bf16.gmra.mxu0 %v3975
        %v4043 = vpop.f32.mrf.mxu0
        %v4044 = vadd.f32 %v4015, %v4043
        %v4045 = vpop.f32.mrf.mxu0
        %v4046 = vadd.f32 %v4017, %v4045
        %4047 = vmatmul.bf16.gmra.mxu0 %v3978
        %v4048 = vpop.f32.mrf.mxu0
        %v4049 = vadd.f32 %v4020, %v4048
        %v4050 = vpop.f32.mrf.mxu0
        %v4051 = vadd.f32 %v4022, %v4050
        %4052 = vdwg.mxu0
        %4053 = vmatpush.bf16.msra.mxu0 %v3878
        %4054 = vmatpush.bf16.msra.mxu0 %v3873
        %4055 = vmatpush.bf16.msra.mxu0 %v3868
        %4056 = vmatpush.bf16.msra.mxu0 %v3863
        %4057 = vmatpush.bf16.msra.mxu0 %v3858
        %4058 = vmatpush.bf16.msra.mxu0 %v3853
        %4059 = vmatpush.bf16.msra.mxu0 %v3848
        %4060 = vmatpush.bf16.msra.mxu0 %v3843
        %4061 = vmatmul.bf16.gmra.mxu0 %v3548
        %v4062 = vpop.f32.mrf.mxu0
        %v4063 = vadd.f32 0.0, %v4062
        %v4064 = vpop.f32.mrf.mxu0
        %v4065 = vadd.f32 0.0, %v4064
        %4066 = vmatmul.bf16.gmra.mxu0 %v3550
        %v4067 = vpop.f32.mrf.mxu0
        %v4068 = vadd.f32 0.0, %v4067
        %v4069 = vpop.f32.mrf.mxu0
        %v4070 = vadd.f32 0.0, %v4069
        %4071 = vmatmul.bf16.gmra.mxu0 %v3552
        %v4072 = vpop.f32.mrf.mxu0
        %v4073 = vadd.f32 0.0, %v4072
        %v4074 = vpop.f32.mrf.mxu0
        %v4075 = vadd.f32 0.0, %v4074
        %4076 = vmatmul.bf16.gmra.mxu0 %v3554
        %v4077 = vpop.f32.mrf.mxu0
        %v4078 = vadd.f32 0.0, %v4077
        %v4079 = vpop.f32.mrf.mxu0
        %v4080 = vadd.f32 0.0, %v4079
        %4081 = vdwg.mxu0
        %4082 = vmatpush.bf16.msra.mxu0 0
        %4083 = vmatpush.bf16.msra.mxu0 0
        %4084 = vmatpush.bf16.msra.mxu0 0
        %4085 = vmatpush.bf16.msra.mxu0 %v3984
        %4086 = vmatpush.bf16.msra.mxu0 %v3898
        %4087 = vmatpush.bf16.msra.mxu0 %v3893
        %4088 = vmatpush.bf16.msra.mxu0 %v3888
        %4089 = vmatpush.bf16.msra.mxu0 %v3883
        %4090 = vmatmul.bf16.gmra.mxu0 %v3969
        %v4091 = vpop.f32.mrf.mxu0
        %v4092 = vadd.f32 %v4063, %v4091
        %v4093 = vpop.f32.mrf.mxu0
        %v4094 = vadd.f32 %v4065, %v4093
        %4095 = vmatmul.bf16.gmra.mxu0 %v3972
        %v4096 = vpop.f32.mrf.mxu0
        %v4097 = vadd.f32 %v4068, %v4096
        %v4098 = vpop.f32.mrf.mxu0
        %v4099 = vadd.f32 %v4070, %v4098
        %4100 = vmatmul.bf16.gmra.mxu0 %v3975
        %v4101 = vpop.f32.mrf.mxu0
        %v4102 = vadd.f32 %v4073, %v4101
        %v4103 = vpop.f32.mrf.mxu0
        %v4104 = vadd.f32 %v4075, %v4103
        %4105 = vmatmul.bf16.gmra.mxu0 %v3978
        %v4106 = vpop.f32.mrf.mxu0
        %v4107 = vadd.f32 %v4078, %v4106
        %v4108 = vpop.f32.mrf.mxu0
        %v4109 = vadd.f32 %v4080, %v4108
        %4110 = vdwg.mxu0
        %4111 = vmatpush.bf16.msra.mxu0 %v3879
        %4112 = vmatpush.bf16.msra.mxu0 %v3874
        %4113 = vmatpush.bf16.msra.mxu0 %v3869
        %4114 = vmatpush.bf16.msra.mxu0 %v3864
        %4115 = vmatpush.bf16.msra.mxu0 %v3859
        %4116 = vmatpush.bf16.msra.mxu0 %v3854
        %4117 = vmatpush.bf16.msra.mxu0 %v3849
        %4118 = vmatpush.bf16.msra.mxu0 %v3844
        %4119 = vmatmul.bf16.gmra.mxu0 %v3548
        %v4120 = vpop.f32.mrf.mxu0
        %v4121 = vadd.f32 0.0, %v4120
        %v4122 = vpop.f32.mrf.mxu0
        %v4123 = vadd.f32 0.0, %v4122
        %4124 = vmatmul.bf16.gmra.mxu0 %v3550
        %v4125 = vpop.f32.mrf.mxu0
        %v4126 = vadd.f32 0.0, %v4125
        %v4127 = vpop.f32.mrf.mxu0
        %v4128 = vadd.f32 0.0, %v4127
        %4129 = vmatmul.bf16.gmra.mxu0 %v3552
        %v4130 = vpop.f32.mrf.mxu0
        %v4131 = vadd.f32 0.0, %v4130
        %v4132 = vpop.f32.mrf.mxu0
        %v4133 = vadd.f32 0.0, %v4132
        %4134 = vmatmul.bf16.gmra.mxu0 %v3554
        %v4135 = vpop.f32.mrf.mxu0
        %v4136 = vadd.f32 0.0, %v4135
        %v4137 = vpop.f32.mrf.mxu0
        %v4138 = vadd.f32 0.0, %v4137
        %4139 = vdwg.mxu0
        %4140 = vmatpush.bf16.msra.mxu0 0
        %4141 = vmatpush.bf16.msra.mxu0 0
        %4142 = vmatpush.bf16.msra.mxu0 0
        %4143 = vmatpush.bf16.msra.mxu0 %v3987
        %4144 = vmatpush.bf16.msra.mxu0 %v3899
        %4145 = vmatpush.bf16.msra.mxu0 %v3894
        %4146 = vmatpush.bf16.msra.mxu0 %v3889
        %4147 = vmatpush.bf16.msra.mxu0 %v3884
        %4148 = vmatmul.bf16.gmra.mxu0 %v3969
        %v4149 = vpop.f32.mrf.mxu0
        %v4150 = vadd.f32 %v4121, %v4149
        %v4151 = vpop.f32.mrf.mxu0
        %v4152 = vadd.f32 %v4123, %v4151
        %4153 = vmatmul.bf16.gmra.mxu0 %v3972
        %v4154 = vpop.f32.mrf.mxu0
        %v4155 = vadd.f32 %v4126, %v4154
        %v4156 = vpop.f32.mrf.mxu0
        %v4157 = vadd.f32 %v4128, %v4156
        %4158 = vmatmul.bf16.gmra.mxu0 %v3975
        %v4159 = vpop.f32.mrf.mxu0
        %v4160 = vadd.f32 %v4131, %v4159
        %v4161 = vpop.f32.mrf.mxu0
        %v4162 = vadd.f32 %v4133, %v4161
        %4163 = vmatmul.bf16.gmra.mxu0 %v3978
        %v4164 = vpop.f32.mrf.mxu0
        %v4165 = vadd.f32 %v4136, %v4164
        %v4166 = vpop.f32.mrf.mxu0
        %v4167 = vadd.f32 %v4138, %v4166
        %4168 = vdwg.mxu0
        %4169 = vmatpush.bf16.msra.mxu0 %v3880
        %4170 = vmatpush.bf16.msra.mxu0 %v3875
        %4171 = vmatpush.bf16.msra.mxu0 %v3870
        %4172 = vmatpush.bf16.msra.mxu0 %v3865
        %4173 = vmatpush.bf16.msra.mxu0 %v3860
        %4174 = vmatpush.bf16.msra.mxu0 %v3855
        %4175 = vmatpush.bf16.msra.mxu0 %v3850
        %4176 = vmatpush.bf16.msra.mxu0 %v3845
        %4177 = vmatmul.bf16.gmra.mxu0 %v3548
        %v4178 = vpop.f32.mrf.mxu0
        %v4179 = vadd.f32 0.0, %v4178
        %v4180 = vpop.f32.mrf.mxu0
        %v4181 = vadd.f32 0.0, %v4180
        %4182 = vmatmul.bf16.gmra.mxu0 %v3550
        %v4183 = vpop.f32.mrf.mxu0
        %v4184 = vadd.f32 0.0, %v4183
        %v4185 = vpop.f32.mrf.mxu0
        %v4186 = vadd.f32 0.0, %v4185
        %4187 = vmatmul.bf16.gmra.mxu0 %v3552
        %v4188 = vpop.f32.mrf.mxu0
        %v4189 = vadd.f32 0.0, %v4188
        %v4190 = vpop.f32.mrf.mxu0
        %v4191 = vadd.f32 0.0, %v4190
        %4192 = vmatmul.bf16.gmra.mxu0 %v3554
        %v4193 = vpop.f32.mrf.mxu0
        %v4194 = vadd.f32 0.0, %v4193
        %v4195 = vpop.f32.mrf.mxu0
        %v4196 = vadd.f32 0.0, %v4195
        %4197 = vdwg.mxu0
        %4198 = vmatpush.bf16.msra.mxu0 0
        %4199 = vmatpush.bf16.msra.mxu0 0
        %4200 = vmatpush.bf16.msra.mxu0 0
        %4201 = vmatpush.bf16.msra.mxu0 %v3990
        %4202 = vmatpush.bf16.msra.mxu0 %v3900
        %4203 = vmatpush.bf16.msra.mxu0 %v3895
        %4204 = vmatpush.bf16.msra.mxu0 %v3890
        %4205 = vmatpush.bf16.msra.mxu0 %v3885
        %4206 = vmatmul.bf16.gmra.mxu0 %v3969
        %v4207 = vpop.f32.mrf.mxu0
        %v4208 = vadd.f32 %v4179, %v4207
        %v4209 = vpop.f32.mrf.mxu0
        %v4210 = vadd.f32 %v4181, %v4209
        %4211 = vmatmul.bf16.gmra.mxu0 %v3972
        %v4212 = vpop.f32.mrf.mxu0
        %v4213 = vadd.f32 %v4184, %v4212
        %v4214 = vpop.f32.mrf.mxu0
        %v4215 = vadd.f32 %v4186, %v4214
        %4216 = vmatmul.bf16.gmra.mxu0 %v3975
        %v4217 = vpop.f32.mrf.mxu0
        %v4218 = vadd.f32 %v4189, %v4217
        %v4219 = vpop.f32.mrf.mxu0
        %v4220 = vadd.f32 %v4191, %v4219
        %4221 = vmatmul.bf16.gmra.mxu0 %v3978
        %v4222 = vpop.f32.mrf.mxu0
        %v4223 = vadd.f32 %v4194, %v4222
        %v4224 = vpop.f32.mrf.mxu0
        %v4225 = vadd.f32 %v4196, %v4224
        %4226 = vdwg.mxu0
        %4227 = vmatpush.bf16.msra.mxu0 %v3881
        %4228 = vmatpush.bf16.msra.mxu0 %v3876
        %4229 = vmatpush.bf16.msra.mxu0 %v3871
        %4230 = vmatpush.bf16.msra.mxu0 %v3866
        %4231 = vmatpush.bf16.msra.mxu0 %v3861
        %4232 = vmatpush.bf16.msra.mxu0 %v3856
        %4233 = vmatpush.bf16.msra.mxu0 %v3851
        %4234 = vmatpush.bf16.msra.mxu0 %v3846
        %4235 = vmatmul.bf16.gmra.mxu0 %v3548
        %v4236 = vpop.f32.mrf.mxu0
        %v4237 = vadd.f32 0.0, %v4236
        %v4238 = vpop.f32.mrf.mxu0
        %v4239 = vadd.f32 0.0, %v4238
        %4240 = vmatmul.bf16.gmra.mxu0 %v3550
        %v4241 = vpop.f32.mrf.mxu0
        %v4242 = vadd.f32 0.0, %v4241
        %v4243 = vpop.f32.mrf.mxu0
        %v4244 = vadd.f32 0.0, %v4243
        %4245 = vmatmul.bf16.gmra.mxu0 %v3552
        %v4246 = vpop.f32.mrf.mxu0
        %v4247 = vadd.f32 0.0, %v4246
        %v4248 = vpop.f32.mrf.mxu0
        %v4249 = vadd.f32 0.0, %v4248
        %4250 = vmatmul.bf16.gmra.mxu0 %v3554
        %v4251 = vpop.f32.mrf.mxu0
        %v4252 = vadd.f32 0.0, %v4251
        %v4253 = vpop.f32.mrf.mxu0
        %v4254 = vadd.f32 0.0, %v4253
        %4255 = vdwg.mxu0
        %4256 = vmatpush.bf16.msra.mxu0 0
        %4257 = vmatpush.bf16.msra.mxu0 0
        %4258 = vmatpush.bf16.msra.mxu0 0
        %4259 = vmatpush.bf16.msra.mxu0 %v3993
        %4260 = vmatpush.bf16.msra.mxu0 %v3901
        %4261 = vmatpush.bf16.msra.mxu0 %v3896
        %4262 = vmatpush.bf16.msra.mxu0 %v3891
        %4263 = vmatpush.bf16.msra.mxu0 %v3886
        %4264 = vmatmul.bf16.gmra.mxu0 %v3969
        %v4265 = vpop.f32.mrf.mxu0
        %v4266 = vadd.f32 %v4237, %v4265
        %v4267 = vpop.f32.mrf.mxu0
        %v4268 = vadd.f32 %v4239, %v4267
        %4269 = vmatmul.bf16.gmra.mxu0 %v3972
        %v4270 = vpop.f32.mrf.mxu0
        %v4271 = vadd.f32 %v4242, %v4270
        %v4272 = vpop.f32.mrf.mxu0
        %v4273 = vadd.f32 %v4244, %v4272
        %4274 = vmatmul.bf16.gmra.mxu0 %v3975
        %v4275 = vpop.f32.mrf.mxu0
        %v4276 = vadd.f32 %v4247, %v4275
        %v4277 = vpop.f32.mrf.mxu0
        %v4278 = vadd.f32 %v4249, %v4277
        %4279 = vmatmul.bf16.gmra.mxu0 %v3978
        %v4280 = vpop.f32.mrf.mxu0
        %v4281 = vadd.f32 %v4252, %v4280
        %v4282 = vpop.f32.mrf.mxu0
        %v4283 = vadd.f32 %v4254, %v4282
        %4284 = vdwg.mxu0
        %v4285 = vld [vmem:[%s7] sm:$0xff]
        %v4286 = vld [vmem:[%s7 + $0x8] sm:$0xff]
        %v4287 = vld [vmem:[%s7 + $0x10] sm:$0xff]
        %v4288 = vld [vmem:[%s7 + $0x18] sm:$0xff]
        %v4289 = vld [vmem:[%s7 + $0x20] sm:$0xff]
        %v4290 = vld [vmem:[%s7 + $0x28] sm:$0xff]
        %v4291 = vld [vmem:[%s7 + $0x30] sm:$0xff]
        %v4292 = vld [vmem:[%s7 + $0x38] sm:$0xff]
        %v4293 = vld [vmem:[%s7 + $0x40] sm:$0xff]
        %v4294 = vld [vmem:[%s7 + $0x48] sm:$0xff]
        %v4295 = vld [vmem:[%s7 + $0x50] sm:$0xff]
        %v4296 = vld [vmem:[%s7 + $0x58] sm:$0xff]
        %v4297 = vld [vmem:[%s7 + $0x60] sm:$0xff]
        %v4298 = vld [vmem:[%s7 + $0x68] sm:$0xff]
        %v4299 = vld [vmem:[%s7 + $0x70] sm:$0xff]
        %v4300 = vld [vmem:[%s7 + $0x78] sm:$0xff]
        %v4301 = vld [vmem:[%s7 + $0x80] sm:$0xff]
        %v4302 = vld [vmem:[%s7 + $0x88] sm:$0xff]
        %v4303 = vld [vmem:[%s7 + $0x90] sm:$0xff]
        %v4304 = vld [vmem:[%s7 + $0x98] sm:$0xff]
        %v4305 = vld [vmem:[%s7 + $0xa0] sm:$0xff]
        %v4306 = vld [vmem:[%s7 + $0xa8] sm:$0xff]
        %v4307 = vld [vmem:[%s7 + $0xb0] sm:$0xff]
        %v4308 = vld [vmem:[%s7 + $0xb8] sm:$0xff]
        %v4309 = vld [vmem:[%s7 + $0xc0] sm:$0xff]
        %v4310 = vld [vmem:[%s7 + $0xc8] sm:$0xff]
        %v4311 = vld [vmem:[%s7 + $0xd0] sm:$0xff]
        %v4312 = vld [vmem:[%s7 + $0xd8] sm:$0xff]
        %v4313 = vld [vmem:[%s7 + $0xe0] sm:$0xff]
        %v4314 = vld [vmem:[%s7 + $0xe8] sm:$0xff]
        %v4315 = vld [vmem:[%s7 + $0xf0] sm:$0xff]
        %v4316 = vld [vmem:[%s7 + $0xf8] sm:$0xff]
        %v4317 = vld [vmem:[%s7 + $0x100] sm:$0xff]
        %v4318 = vld [vmem:[%s7 + $0x108] sm:$0xff]
        %v4319 = vld [vmem:[%s7 + $0x110] sm:$0xff]
        %v4320 = vld [vmem:[%s7 + $0x118] sm:$0xff]
        %v4321 = vld [vmem:[%s7 + $0x120] sm:$0xff]
        %v4322 = vld [vmem:[%s7 + $0x128] sm:$0xff]
        %v4323 = vld [vmem:[%s7 + $0x130] sm:$0xff]
        %v4324 = vld [vmem:[%s7 + $0x138] sm:$0xff]
        %v4325 = vmul.f32 %v4034, %v4285
        %v4326 = vmul.f32 %v4092, %v4286
        %v4327 = vmul.f32 %v4150, %v4287
        %v4328 = vmul.f32 %v4208, %v4288
        %v4329 = vmul.f32 %v4266, %v4289
        %v4330 = vmul.f32 %v4036, %v4290
        %v4331 = vmul.f32 %v4094, %v4291
        %v4332 = vmul.f32 %v4152, %v4292
        %v4333 = vmul.f32 %v4210, %v4293
        %v4334 = vmul.f32 %v4268, %v4294
        %v4335 = vmul.f32 %v4039, %v4295
        %v4336 = vmul.f32 %v4097, %v4296
        %v4337 = vmul.f32 %v4155, %v4297
        %v4338 = vmul.f32 %v4213, %v4298
        %v4339 = vmul.f32 %v4271, %v4299
        %v4340 = vmul.f32 %v4041, %v4300
        %v4341 = vmul.f32 %v4099, %v4301
        %v4342 = vmul.f32 %v4157, %v4302
        %v4343 = vmul.f32 %v4215, %v4303
        %v4344 = vmul.f32 %v4273, %v4304
        %v4345 = vmul.f32 %v4044, %v4305
        %v4346 = vmul.f32 %v4102, %v4306
        %v4347 = vmul.f32 %v4160, %v4307
        %v4348 = vmul.f32 %v4218, %v4308
        %v4349 = vmul.f32 %v4276, %v4309
        %v4350 = vmul.f32 %v4046, %v4310
        %v4351 = vmul.f32 %v4104, %v4311
        %v4352 = vmul.f32 %v4162, %v4312
        %v4353 = vmul.f32 %v4220, %v4313
        %v4354 = vmul.f32 %v4278, %v4314
        %v4355 = vmul.f32 %v4049, %v4315
        %v4356 = vmul.f32 %v4107, %v4316
        %v4357 = vmul.f32 %v4165, %v4317
        %v4358 = vmul.f32 %v4223, %v4318
        %v4359 = vmul.f32 %v4281, %v4319
        %v4360 = vmul.f32 %v4051, %v4320
        %v4361 = vmul.f32 %v4109, %v4321
        %v4362 = vmul.f32 %v4167, %v4322
        %v4363 = vmul.f32 %v4225, %v4323
        %v4364 = vmul.f32 %v4283, %v4324
        %v4365 = vld [vmem:[%s8] sm:$0xff]
        %v4366 = vld [vmem:[%s8 + $0x8] sm:$0xff]
        %v4367 = vld [vmem:[%s8 + $0x10] sm:$0xff]
        %v4368 = vld [vmem:[%s8 + $0x18] sm:$0xff]
        %v4369 = vld [vmem:[%s8 + $0x20] sm:$0xff]
        %v4370 = vld [vmem:[%s8 + $0x28] sm:$0xff]
        %v4371 = vld [vmem:[%s8 + $0x30] sm:$0xff]
        %v4372 = vld [vmem:[%s8 + $0x38] sm:$0xff]
        %v4373 = vld [vmem:[%s8 + $0x40] sm:$0xff]
        %v4374 = vld [vmem:[%s8 + $0x48] sm:$0xff]
        %v4375 = vld [vmem:[%s8 + $0x50] sm:$0xff]
        %v4376 = vld [vmem:[%s8 + $0x58] sm:$0xff]
        %v4377 = vld [vmem:[%s8 + $0x60] sm:$0xff]
        %v4378 = vld [vmem:[%s8 + $0x68] sm:$0xff]
        %v4379 = vld [vmem:[%s8 + $0x70] sm:$0xff]
        %v4380 = vld [vmem:[%s8 + $0x78] sm:$0xff]
        %v4381 = vld [vmem:[%s8 + $0x80] sm:$0xff]
        %v4382 = vld [vmem:[%s8 + $0x88] sm:$0xff]
        %v4383 = vld [vmem:[%s8 + $0x90] sm:$0xff]
        %v4384 = vld [vmem:[%s8 + $0x98] sm:$0xff]
        %v4385 = vld [vmem:[%s8 + $0xa0] sm:$0xff]
        %v4386 = vld [vmem:[%s8 + $0xa8] sm:$0xff]
        %v4387 = vld [vmem:[%s8 + $0xb0] sm:$0xff]
        %v4388 = vld [vmem:[%s8 + $0xb8] sm:$0xff]
        %v4389 = vld [vmem:[%s8 + $0xc0] sm:$0xff]
        %v4390 = vld [vmem:[%s8 + $0xc8] sm:$0xff]
        %v4391 = vld [vmem:[%s8 + $0xd0] sm:$0xff]
        %v4392 = vld [vmem:[%s8 + $0xd8] sm:$0xff]
        %v4393 = vld [vmem:[%s8 + $0xe0] sm:$0xff]
        %v4394 = vld [vmem:[%s8 + $0xe8] sm:$0xff]
        %v4395 = vld [vmem:[%s8 + $0xf0] sm:$0xff]
        %v4396 = vld [vmem:[%s8 + $0xf8] sm:$0xff]
        %v4397 = vld [vmem:[%s8 + $0x100] sm:$0xff]
        %v4398 = vld [vmem:[%s8 + $0x108] sm:$0xff]
        %v4399 = vld [vmem:[%s8 + $0x110] sm:$0xff]
        %v4400 = vld [vmem:[%s8 + $0x118] sm:$0xff]
        %v4401 = vld [vmem:[%s8 + $0x120] sm:$0xff]
        %v4402 = vld [vmem:[%s8 + $0x128] sm:$0xff]
        %v4403 = vld [vmem:[%s8 + $0x130] sm:$0xff]
        %v4404 = vld [vmem:[%s8 + $0x138] sm:$0xff]
        %v4405 = vld [vmem:[%s8 + $0x140] sm:$0xff]
        %v4406 = vld [vmem:[%s8 + $0x148] sm:$0xff]
        %v4407 = vld [vmem:[%s8 + $0x150] sm:$0xff]
        %v4408 = vld [vmem:[%s8 + $0x158] sm:$0xff]
        %v4409 = vld [vmem:[%s8 + $0x160] sm:$0xff]
        %v4410 = vld [vmem:[%s8 + $0x168] sm:$0xff]
        %v4411 = vld [vmem:[%s8 + $0x170] sm:$0xff]
        %v4412 = vld [vmem:[%s8 + $0x178] sm:$0xff]
        %v4413 = vld [vmem:[%s8 + $0x180] sm:$0xff]
        %v4414 = vld [vmem:[%s8 + $0x188] sm:$0xff]
        %v4415 = vld [vmem:[%s8 + $0x190] sm:$0xff]
        %v4416 = vld [vmem:[%s8 + $0x198] sm:$0xff]
        %v4417 = vld [vmem:[%s8 + $0x1a0] sm:$0xff]
        %v4418 = vld [vmem:[%s8 + $0x1a8] sm:$0xff]
        %v4419 = vld [vmem:[%s8 + $0x1b0] sm:$0xff]
        %v4420 = vld [vmem:[%s8 + $0x1b8] sm:$0xff]
        %v4421 = vld [vmem:[%s8 + $0x1c0] sm:$0xff]
        %v4422 = vld [vmem:[%s8 + $0x1c8] sm:$0xff]
        %v4423 = vld [vmem:[%s8 + $0x1d0] sm:$0xff]
        %v4424 = vld [vmem:[%s8 + $0x1d8] sm:$0xff]
        %v4425 = vld [vmem:[%s8 + $0x1e0] sm:$0xff]
        %v4426 = vld [vmem:[%s8 + $0x1e8] sm:$0xff]
        %v4427 = vld [vmem:[%s8 + $0x1f0] sm:$0xff]
        %v4428 = vld [vmem:[%s8 + $0x1f8] sm:$0xff]
        %v4429 = vld [vmem:[%s8 + $0x200] sm:$0xff]
        %v4430 = vld [vmem:[%s8 + $0x208] sm:$0xff]
        %v4431 = vld [vmem:[%s8 + $0x210] sm:$0xff]
        %v4432 = vld [vmem:[%s8 + $0x218] sm:$0xff]
        %v4433 = vld [vmem:[%s8 + $0x220] sm:$0xff]
        %v4434 = vld [vmem:[%s8 + $0x228] sm:$0xff]
        %v4435 = vld [vmem:[%s8 + $0x230] sm:$0xff]
        %v4436 = vld [vmem:[%s8 + $0x238] sm:$0xff]
        %v4437 = vld [vmem:[%s8 + $0x240] sm:$0xff]
        %v4438 = vld [vmem:[%s8 + $0x248] sm:$0xff]
        %v4439 = vld [vmem:[%s8 + $0x250] sm:$0xff]
        %v4440 = vld [vmem:[%s8 + $0x258] sm:$0xff]
        %v4441 = vld [vmem:[%s8 + $0x260] sm:$0xff]
        %v4442 = vld [vmem:[%s8 + $0x268] sm:$0xff]
        %v4443 = vld [vmem:[%s8 + $0x270] sm:$0xff]
        %v4444 = vld [vmem:[%s8 + $0x278] sm:$0xff]
        %4445 = vmatpush.msra.mxu0 %v4380
        %4446 = vmatpush.msra.mxu0 %v4379
        %4447 = vmatpush.msra.mxu0 %v4378
        %4448 = vmatpush.msra.mxu0 %v4377
        %4449 = vmatpush.msra.mxu0 %v4376
        %4450 = vmatpush.msra.mxu0 %v4375
        %4451 = vmatpush.msra.mxu0 %v4374
        %4452 = vmatpush.msra.mxu0 %v4373
        %4453 = vmatpush.msra.mxu0 %v4372
        %4454 = vmatpush.msra.mxu0 %v4371
        %4455 = vmatpush.msra.mxu0 %v4370
        %4456 = vmatpush.msra.mxu0 %v4369
        %4457 = vmatpush.msra.mxu0 %v4368
        %4458 = vmatpush.msra.mxu0 %v4367
        %4459 = vmatpush.msra.mxu0 %v4366
        %4460 = vmatpush.msra.mxu0 %v4365
        %4461 = vmatmul.f32.gmra.mxu0 %v4325
        %v4462 = vpop.f32.mrf.mxu0
        %v4463 = vadd.f32 0.0, %v4462
        %4464 = vmatmul.f32.gmra.mxu0 %v4330
        %v4465 = vpop.f32.mrf.mxu0
        %v4466 = vadd.f32 0.0, %v4465
        %4467 = vmatmul.f32.gmra.mxu0 %v4335
        %v4468 = vpop.f32.mrf.mxu0
        %v4469 = vadd.f32 0.0, %v4468
        %4470 = vmatmul.f32.gmra.mxu0 %v4340
        %v4471 = vpop.f32.mrf.mxu0
        %v4472 = vadd.f32 0.0, %v4471
        %4473 = vmatmul.f32.gmra.mxu0 %v4345
        %v4474 = vpop.f32.mrf.mxu0
        %v4475 = vadd.f32 0.0, %v4474
        %4476 = vmatmul.f32.gmra.mxu0 %v4350
        %v4477 = vpop.f32.mrf.mxu0
        %v4478 = vadd.f32 0.0, %v4477
        %4479 = vmatmul.f32.gmra.mxu0 %v4355
        %v4480 = vpop.f32.mrf.mxu0
        %v4481 = vadd.f32 0.0, %v4480
        %4482 = vmatmul.f32.gmra.mxu0 %v4360
        %v4483 = vpop.f32.mrf.mxu0
        %v4484 = vadd.f32 0.0, %v4483
        %4485 = vdwg.mxu0
        %4486 = vmatpush.msra.mxu0 %v4396
        %4487 = vmatpush.msra.mxu0 %v4395
        %4488 = vmatpush.msra.mxu0 %v4394
        %4489 = vmatpush.msra.mxu0 %v4393
        %4490 = vmatpush.msra.mxu0 %v4392
        %4491 = vmatpush.msra.mxu0 %v4391
        %4492 = vmatpush.msra.mxu0 %v4390
        %4493 = vmatpush.msra.mxu0 %v4389
        %4494 = vmatpush.msra.mxu0 %v4388
        %4495 = vmatpush.msra.mxu0 %v4387
        %4496 = vmatpush.msra.mxu0 %v4386
        %4497 = vmatpush.msra.mxu0 %v4385
        %4498 = vmatpush.msra.mxu0 %v4384
        %4499 = vmatpush.msra.mxu0 %v4383
        %4500 = vmatpush.msra.mxu0 %v4382
        %4501 = vmatpush.msra.mxu0 %v4381
        %4502 = vmatmul.f32.gmra.mxu0 %v4326
        %v4503 = vpop.f32.mrf.mxu0
        %v4504 = vadd.f32 %v4463, %v4503
        %4505 = vmatmul.f32.gmra.mxu0 %v4331
        %v4506 = vpop.f32.mrf.mxu0
        %v4507 = vadd.f32 %v4466, %v4506
        %4508 = vmatmul.f32.gmra.mxu0 %v4336
        %v4509 = vpop.f32.mrf.mxu0
        %v4510 = vadd.f32 %v4469, %v4509
        %4511 = vmatmul.f32.gmra.mxu0 %v4341
        %v4512 = vpop.f32.mrf.mxu0
        %v4513 = vadd.f32 %v4472, %v4512
        %4514 = vmatmul.f32.gmra.mxu0 %v4346
        %v4515 = vpop.f32.mrf.mxu0
        %v4516 = vadd.f32 %v4475, %v4515
        %4517 = vmatmul.f32.gmra.mxu0 %v4351
        %v4518 = vpop.f32.mrf.mxu0
        %v4519 = vadd.f32 %v4478, %v4518
        %4520 = vmatmul.f32.gmra.mxu0 %v4356
        %v4521 = vpop.f32.mrf.mxu0
        %v4522 = vadd.f32 %v4481, %v4521
        %4523 = vmatmul.f32.gmra.mxu0 %v4361
        %v4524 = vpop.f32.mrf.mxu0
        %v4525 = vadd.f32 %v4484, %v4524
        %4526 = vdwg.mxu0
        %4527 = vmatpush.msra.mxu0 %v4412
        %4528 = vmatpush.msra.mxu0 %v4411
        %4529 = vmatpush.msra.mxu0 %v4410
        %4530 = vmatpush.msra.mxu0 %v4409
        %4531 = vmatpush.msra.mxu0 %v4408
        %4532 = vmatpush.msra.mxu0 %v4407
        %4533 = vmatpush.msra.mxu0 %v4406
        %4534 = vmatpush.msra.mxu0 %v4405
        %4535 = vmatpush.msra.mxu0 %v4404
        %4536 = vmatpush.msra.mxu0 %v4403
        %4537 = vmatpush.msra.mxu0 %v4402
        %4538 = vmatpush.msra.mxu0 %v4401
        %4539 = vmatpush.msra.mxu0 %v4400
        %4540 = vmatpush.msra.mxu0 %v4399
        %4541 = vmatpush.msra.mxu0 %v4398
        %4542 = vmatpush.msra.mxu0 %v4397
        %4543 = vmatmul.f32.gmra.mxu0 %v4327
        %v4544 = vpop.f32.mrf.mxu0
        %v4545 = vadd.f32 %v4504, %v4544
        %4546 = vmatmul.f32.gmra.mxu0 %v4332
        %v4547 = vpop.f32.mrf.mxu0
        %v4548 = vadd.f32 %v4507, %v4547
        %4549 = vmatmul.f32.gmra.mxu0 %v4337
        %v4550 = vpop.f32.mrf.mxu0
        %v4551 = vadd.f32 %v4510, %v4550
        %4552 = vmatmul.f32.gmra.mxu0 %v4342
        %v4553 = vpop.f32.mrf.mxu0
        %v4554 = vadd.f32 %v4513, %v4553
        %4555 = vmatmul.f32.gmra.mxu0 %v4347
        %v4556 = vpop.f32.mrf.mxu0
        %v4557 = vadd.f32 %v4516, %v4556
        %4558 = vmatmul.f32.gmra.mxu0 %v4352
        %v4559 = vpop.f32.mrf.mxu0
        %v4560 = vadd.f32 %v4519, %v4559
        %4561 = vmatmul.f32.gmra.mxu0 %v4357
        %v4562 = vpop.f32.mrf.mxu0
        %v4563 = vadd.f32 %v4522, %v4562
        %4564 = vmatmul.f32.gmra.mxu0 %v4362
        %v4565 = vpop.f32.mrf.mxu0
        %v4566 = vadd.f32 %v4525, %v4565
        %4567 = vdwg.mxu0
        %4568 = vmatpush.msra.mxu0 %v4428
        %4569 = vmatpush.msra.mxu0 %v4427
        %4570 = vmatpush.msra.mxu0 %v4426
        %4571 = vmatpush.msra.mxu0 %v4425
        %4572 = vmatpush.msra.mxu0 %v4424
        %4573 = vmatpush.msra.mxu0 %v4423
        %4574 = vmatpush.msra.mxu0 %v4422
        %4575 = vmatpush.msra.mxu0 %v4421
        %4576 = vmatpush.msra.mxu0 %v4420
        %4577 = vmatpush.msra.mxu0 %v4419
        %4578 = vmatpush.msra.mxu0 %v4418
        %4579 = vmatpush.msra.mxu0 %v4417
        %4580 = vmatpush.msra.mxu0 %v4416
        %4581 = vmatpush.msra.mxu0 %v4415
        %4582 = vmatpush.msra.mxu0 %v4414
        %4583 = vmatpush.msra.mxu0 %v4413
        %4584 = vmatmul.f32.gmra.mxu0 %v4328
        %v4585 = vpop.f32.mrf.mxu0
        %v4586 = vadd.f32 %v4545, %v4585
        %4587 = vmatmul.f32.gmra.mxu0 %v4333
        %v4588 = vpop.f32.mrf.mxu0
        %v4589 = vadd.f32 %v4548, %v4588
        %4590 = vmatmul.f32.gmra.mxu0 %v4338
        %v4591 = vpop.f32.mrf.mxu0
        %v4592 = vadd.f32 %v4551, %v4591
        %4593 = vmatmul.f32.gmra.mxu0 %v4343
        %v4594 = vpop.f32.mrf.mxu0
        %v4595 = vadd.f32 %v4554, %v4594
        %4596 = vmatmul.f32.gmra.mxu0 %v4348
        %v4597 = vpop.f32.mrf.mxu0
        %v4598 = vadd.f32 %v4557, %v4597
        %4599 = vmatmul.f32.gmra.mxu0 %v4353
        %v4600 = vpop.f32.mrf.mxu0
        %v4601 = vadd.f32 %v4560, %v4600
        %4602 = vmatmul.f32.gmra.mxu0 %v4358
        %v4603 = vpop.f32.mrf.mxu0
        %v4604 = vadd.f32 %v4563, %v4603
        %4605 = vmatmul.f32.gmra.mxu0 %v4363
        %v4606 = vpop.f32.mrf.mxu0
        %v4607 = vadd.f32 %v4566, %v4606
        %4608 = vdwg.mxu0
        %4609 = vmatpush.msra.mxu0 %v4444
        %4610 = vmatpush.msra.mxu0 %v4443
        %4611 = vmatpush.msra.mxu0 %v4442
        %4612 = vmatpush.msra.mxu0 %v4441
        %4613 = vmatpush.msra.mxu0 %v4440
        %4614 = vmatpush.msra.mxu0 %v4439
        %4615 = vmatpush.msra.mxu0 %v4438
        %4616 = vmatpush.msra.mxu0 %v4437
        %4617 = vmatpush.msra.mxu0 %v4436
        %4618 = vmatpush.msra.mxu0 %v4435
        %4619 = vmatpush.msra.mxu0 %v4434
        %4620 = vmatpush.msra.mxu0 %v4433
        %4621 = vmatpush.msra.mxu0 %v4432
        %4622 = vmatpush.msra.mxu0 %v4431
        %4623 = vmatpush.msra.mxu0 %v4430
        %4624 = vmatpush.msra.mxu0 %v4429
        %4625 = vmatmul.f32.gmra.mxu0 %v4329
        %v4626 = vpop.f32.mrf.mxu0
        %v4627 = vadd.f32 %v4586, %v4626
        %4628 = vmatmul.f32.gmra.mxu0 %v4334
        %v4629 = vpop.f32.mrf.mxu0
        %v4630 = vadd.f32 %v4589, %v4629
        %4631 = vmatmul.f32.gmra.mxu0 %v4339
        %v4632 = vpop.f32.mrf.mxu0
        %v4633 = vadd.f32 %v4592, %v4632
        %4634 = vmatmul.f32.gmra.mxu0 %v4344
        %v4635 = vpop.f32.mrf.mxu0
        %v4636 = vadd.f32 %v4595, %v4635
        %4637 = vmatmul.f32.gmra.mxu0 %v4349
        %v4638 = vpop.f32.mrf.mxu0
        %v4639 = vadd.f32 %v4598, %v4638
        %4640 = vmatmul.f32.gmra.mxu0 %v4354
        %v4641 = vpop.f32.mrf.mxu0
        %v4642 = vadd.f32 %v4601, %v4641
        %4643 = vmatmul.f32.gmra.mxu0 %v4359
        %v4644 = vpop.f32.mrf.mxu0
        %v4645 = vadd.f32 %v4604, %v4644
        %4646 = vmatmul.f32.gmra.mxu0 %v4364
        %v4647 = vpop.f32.mrf.mxu0
        %v4648 = vadd.f32 %v4607, %v4647
        %4649 = vdwg.mxu0
        %vm4650 = vcmask 80896
        %v4651 = vsel %vm4650, %v4627, 0.0
        %v4652 = vsel %vm4650, %v4630, 0.0
        %v4653 = vadd.f32 %v4651, %v4652
        %v4654 = vsel %vm4650, %v4633, 0.0
        %v4655 = vadd.f32 %v4653, %v4654
        %v4656 = vsel %vm4650, %v4636, 0.0
        %v4657 = vadd.f32 %v4655, %v4656
        %v4658 = vsel %vm4650, %v4639, 0.0
        %v4659 = vadd.f32 %v4657, %v4658
        %v4660 = vsel %vm4650, %v4642, 0.0
        %v4661 = vadd.f32 %v4659, %v4660
        %v4662 = vsel %vm4650, %v4645, 0.0
        %v4663 = vadd.f32 %v4661, %v4662
        %v4664 = vsel %vm4650, %v4648, 0.0
        %v4665 = vadd.f32 %v4663, %v4664
        %v4666 = vrot.slane %v4665, 4
        %v4667 = vadd.f32 %v4665, %v4666
        %v4668 = vrot.slane %v4667, 2
        %v4669 = vadd.f32 %v4667, %v4668
        %v4670 = vrot.slane %v4669, 1
        %v4671 = vadd.f32 %v4669, %v4670
        %v4672 = vld [vmem:[%s9] sm:$0x1]
        %v4673 = vadd.f32 %v4671, %v4672
        %vm4674 = vcmask 73728
        %4675 = vst.msk [vmem:[%s349] sm:$0x1] %vm4674, %v4673
        %s4676 = sand.u32 %s247, 1
        %s4677 = scalar_lea.sflag [#allocation5], %s4676
        %s4678 = sand.u32 %s247, 1
        %s4679 = scalar_lea.vmem [#allocation4], %s4678
        // Predicated region
        $region61: #{cnn_forward.1} parent=59 // pred_check
          %p4680 = pneg %p257
        $region62: #{cnn_forward.1} parent=59 // pred_check_branch
          %4682 = sbr.rel (%p4680) target = $region64
        $region63: #{cnn_forward.1} parent=59 // pred_region
          %4684 = vsyncadd %s4677, 0
          %s4685 = scalar_lea.hbm %s10, %s24
          %s4687 = sshll.u32 %s4679, 4
          %s4688 = int_to_ptr.vmem [resolvable:$true] %s4687
          %s4689 = sshll.u32 %s4685, 4
          %s4690 = int_to_ptr.hbm [resolvable:$true] %s4689
          %4692 = dma.vmem_to_hbm [thread:$0]  %s4688, 16, %s4690, %s4677
        $region64: #{cnn_forward.1} parent=59 // pred_fallthru
          _
      $region60: #{cnn_forward.1} parent=5 // pred_fallthru
        _
      %p4693 = scmp.le.s32.totalorder 2, %s19
      // Predicated region
      $region65: #{cnn_forward.1} parent=5 // pred_check
        %p4694 = pneg %p4693
      $region66: #{cnn_forward.1} parent=5 // pred_check_branch
        %4696 = sbr.rel (%p4694) target = $region68
      $region67: #{cnn_forward.1} parent=5 // pred_region
        %s4697 = ssub.s32 %s19, 2
        // Predicated region
        $region69: #{cnn_forward.1} parent=67 // pred_check
          %p4698 = pneg %p263
        $region70: #{cnn_forward.1} parent=67 // pred_check_branch
          %4700 = sbr.rel (%p4698) target = $region72
        $region71: #{cnn_forward.1} parent=67 // pred_region
          %s4701 = sand.u32 %s248, 1
          %s4702 = scalar_lea.sflag [#allocation5], %s4701
          %s4703 = sand.u32 %s248, 1
          %s4704 = scalar_lea.vmem [#allocation4], %s4703
          %4706 = dma.done %s4702, 16
        $region72: #{cnn_forward.1} parent=67 // pred_fallthru
          _
      $region68: #{cnn_forward.1} parent=5 // pred_fallthru
        _
    $region6: #{cnn_forward.1} parent=1 // loop_footer
      %s23 = sadd.s32 1, %s19
    $region7: #{cnn_forward.1} parent=1 // loop_footer_branch
      %18 = sbr.rel target = $region3
    $region8: #{cnn_forward.1} parent=1 // loop_exit
      _
    %4707 = vsyncpa [#allocation5], 1
    %s4708 = scalar_lea.sflag [#allocation5], 1
    %4709 = vsyncpa %s4708, 1

</llo_original>
